<compile_context>
chip_gen: v7x
topology: tpu7x:2x2x1
jax: 0.10.0
libtpu: 0.0.40
codegen_flags: <defaults>
</compile_context>

<pallas_src>
import functools

import jax
import jax.numpy as jnp
from jax.experimental import pallas as pl
from jax.experimental.pallas import tpu as pltpu

MATMUL_DTYPE = jnp.bfloat16   # MXU operand / activation dtype (f32 accumulation)
LANES = 128                   # lane-dense output width
TAIL_TM = 1024                # max M-tile for the fused conv3/fc1/fc2 tail


def _round_up(x, m):
    return (x + m - 1) // m * m


def _vmem_capacity_bytes():
    """Device VMEM capacity; conservative v7x-sized fallback if unavailable."""
    try:
        info = pltpu.get_tpu_info()
        for attr in ("vmem_capacity_bytes", "vmem_size_bytes", "vmem_bytes"):
            v = getattr(info, attr, None)
            if v:
                return int(v)
    except Exception:
        pass
    return 64 << 20


def _vmem_limit_bytes(*block_nbytes):
    """Double-buffered blocks + headroom, clamped to half the device VMEM."""
    total = 2 * sum(int(b) for b in block_nbytes) + (4 << 20)
    cap = max(_vmem_capacity_bytes() // 2, 16 << 20)
    return int(min(max(total, 16 << 20), cap))


def _pick_tm(m, tm_max):
    """Large M-tile (amortize ~0.35us/grid-step) but keep >=2 grid steps when
    possible so dimension_semantics=('parallel',) can use both v7x cores."""
    half = _round_up(max(-(-m // 2), 16), 16)   # ceil(m/2), multiple of 16
    return int(min(tm_max, half))


def _conv_tm_max(kp):
    """Adaptive M-tile cap: ~2 MiB A-block (4 taps x tm x Kp) in MATMUL_DTYPE."""
    itemsize = jnp.dtype(MATMUL_DTYPE).itemsize
    tm = (2 << 20) // max(4 * kp * itemsize, 1)
    return int(max(512, min(4096, (tm // 512) * 512)))


# ---------------------------------------------------------------------------
# Pallas kernels
# ---------------------------------------------------------------------------
def _conv_pool_kernel(a_ref, w_ref, b_ref, o_ref):
    """Fused conv GEMM + bias + ReLU + 2x2 max-pool.

    a_ref: (4, TM, Kp)  im2col patches; leading axis = the four 2x2 pool taps
    w_ref: (Kp, 128)    weight matrix, Cout zero-padded to 128 lanes
    b_ref: (1, 128)     bias (f32), zero-padded
    o_ref: (TM, 128)    pooled activations (lane-dense, MATMUL_DTYPE)
    """
    taps, tm, kp = a_ref.shape
    n = w_ref.shape[1]
    # Single MXU dot over all taps (tm is a multiple of 16, so the leading-dim
    # merge/split reshapes are layout no-ops), then elementwise max over taps.
    a = a_ref[...].reshape(taps * tm, kp)
    acc = jnp.dot(a, w_ref[...], preferred_element_type=jnp.float32)
    acc = jnp.max(acc.reshape(taps, tm, n), axis=0)
    # max-over-taps commutes with the monotonic bias + ReLU epilogue.
    o_ref[...] = jnp.maximum(acc + b_ref[...], 0.0).astype(o_ref.dtype)


def _tail_kernel(a_ref, w3_ref, b3_ref, w4_ref, b4_ref, w5_ref, b5_ref, o_ref,
                 *, compute_dtype):
    """Fused conv3(=GEMM)+ReLU -> fc1+ReLU -> fc2 in one kernel body."""
    h = jnp.dot(a_ref[...], w3_ref[...], preferred_element_type=jnp.float32)
    h = jnp.maximum(h + b3_ref[...], 0.0).astype(compute_dtype)
    h = jnp.dot(h, w4_ref[...], preferred_element_type=jnp.float32)
    h = jnp.maximum(h + b4_ref[...], 0.0).astype(compute_dtype)
    h = jnp.dot(h, w5_ref[...], preferred_element_type=jnp.float32) + b5_ref[...]
    o_ref[...] = h.astype(o_ref.dtype)


# ---------------------------------------------------------------------------
# Glue: pool-tap im2col + layer wrappers
# ---------------------------------------------------------------------------
def _conv_pool_taps(x_nhwc, kh, kw, padding):
    """im2col patches of the conv evaluated directly at 2x2-pooled positions.

    Returns (taps, (B, Hp, Wp)) with taps of shape (4, B*Hp*Wp, kh*kw*C);
    taps[t] holds the patches for pool tap (t // 2, t % 2).  K ordering is
    (i*kw + j)*C + c, matching the (2, 3, 1, 0) weight transpose.
    """
    x_nhwc = x_nhwc.astype(MATMUL_DTYPE)   # cast BEFORE the im2col expansion
    if padding:
        x_nhwc = jnp.pad(
            x_nhwc, ((0, 0), (padding, padding), (padding, padding), (0, 0))
        )
    B, H, W, C = x_nhwc.shape
    Ho, Wo = H - kh + 1, W - kw + 1
    assert Ho % 2 == 0 and Wo % 2 == 0, (Ho, Wo)
    Hp, Wp = Ho // 2, Wo // 2
    taps = []
    for dh in range(2):
        for dw in range(2):
            cols = []
            for i in range(kh):
                for j in range(kw):
                    sl = x_nhwc[:, dh + i: dh + i + 2 * Hp: 2,
                                dw + j: dw + j + 2 * Wp: 2, :]
                    assert sl.shape == (B, Hp, Wp, C), sl.shape
                    cols.append(sl)
            patch = jnp.stack(cols, axis=-2)            # (B, Hp, Wp, kh*kw, C)
            taps.append(patch.reshape(B * Hp * Wp, kh * kw * C))
    return jnp.stack(taps, axis=0), (B, Hp, Wp)


def conv_relu_pool(x_nhwc, w_oihw, b, *, padding):
    """PyTorch Conv2d(stride=1) + ReLU + MaxPool2d(2,2) as one Pallas call."""
    Cout, Cin, kh, kw = w_oihw.shape
    taps, (B, Hp, Wp) = _conv_pool_taps(x_nhwc, kh, kw, padding)

    K = kh * kw * Cin
    Kp = _round_up(K, 16)                   # sublane-aligned K (bf16-safe)
    Np = _round_up(Cout, LANES)             # lane-dense N (=128 here)
    M = B * Hp * Wp
    tm = _pick_tm(M, _conv_tm_max(Kp))
    Mp = _round_up(M, tm)

    taps = jnp.pad(taps, ((0, 0), (0, Mp - M), (0, Kp - K)))
    w_mat = jnp.transpose(w_oihw, (2, 3, 1, 0)).reshape(K, Cout)
    w_mat = jnp.pad(w_mat, ((0, Kp - K), (0, Np - Cout))).astype(MATMUL_DTYPE)
    b_row = jnp.pad(b, (0, Np - Cout)).reshape(1, Np).astype(jnp.float32)

    itemsize = jnp.dtype(MATMUL_DTYPE).itemsize
    a_blk = 4 * tm * Kp * itemsize
    w_blk = Kp * Np * itemsize
    o_blk = tm * Np * itemsize
    cost = pl.CostEstimate(
        flops=int(2 * 4 * Mp * Kp * Np),
        transcendentals=0,
        bytes_accessed=int(taps.size * itemsize + w_mat.size * itemsize
                           + Np * 4 + Mp * Np * itemsize),
    )

    out = pl.pallas_call(
        _conv_pool_kernel,
        out_shape=jax.ShapeDtypeStruct((Mp, Np), MATMUL_DTYPE),
        grid=(Mp // tm,),
        in_specs=[
            pl.BlockSpec((4, tm, Kp), lambda i: (0, i, 0)),
            pl.BlockSpec((Kp, Np), lambda i: (0, 0)),
            pl.BlockSpec((1, Np), lambda i: (0, 0)),
        ],
        out_specs=pl.BlockSpec((tm, Np), lambda i: (i, 0)),
        compiler_params=pltpu.CompilerParams(
            dimension_semantics=("parallel",),
            vmem_limit_bytes=_vmem_limit_bytes(a_blk, w_blk, Np * 4, o_blk),
        ),
        cost_estimate=cost,
    )(taps, w_mat, b_row)

    out = out[:M].reshape(B, Hp, Wp, Np)
    return out[..., :Cout]                  # drop lane padding for the next layer


def conv3_fc_fused(x_nhwc, params):
    """Fused conv3(5x5 valid) + ReLU + flatten + fc1 + ReLU + fc2, one call."""
    B, H, W, Cin = x_nhwc.shape             # (B, 5, 5, 16)
    K3 = H * W * Cin                        # 400 — the 5x5 window covers the map
    a = x_nhwc.astype(MATMUL_DTYPE).reshape(B, K3)   # matches (i*kw+j)*C+c order

    c3w, c3b = params["conv3_w"], params["conv3_b"]     # (120,16,5,5), (120,)
    f1w, f1b = params["fc1_w"], params["fc1_b"]         # (84,120), (84,)
    f2w, f2b = params["fc2_w"], params["fc2_b"]         # (3,84), (3,)
    N3, N4, N5 = c3w.shape[0], f1w.shape[0], f2w.shape[0]
    N3p, N4p, N5p = (_round_up(n, LANES) for n in (N3, N4, N5))

    w3 = jnp.transpose(c3w, (2, 3, 1, 0)).reshape(K3, N3)
    w3 = jnp.pad(w3, ((0, 0), (0, N3p - N3))).astype(MATMUL_DTYPE)
    b3 = jnp.pad(c3b, (0, N3p - N3)).reshape(1, N3p).astype(jnp.float32)
    w4 = jnp.pad(jnp.transpose(f1w), ((0, N3p - N3), (0, N4p - N4))).astype(MATMUL_DTYPE)
    b4 = jnp.pad(f1b, (0, N4p - N4)).reshape(1, N4p).astype(jnp.float32)
    w5 = jnp.pad(jnp.transpose(f2w), ((0, N4p - N4), (0, N5p - N5))).astype(MATMUL_DTYPE)
    b5 = jnp.pad(f2b, (0, N5p - N5)).reshape(1, N5p).astype(jnp.float32)

    tm = _pick_tm(B, TAIL_TM)
    Mp = _round_up(B, tm)
    a = jnp.pad(a, ((0, Mp - B), (0, 0)))

    itemsize = jnp.dtype(MATMUL_DTYPE).itemsize
    blocks = [tm * K3 * itemsize, K3 * N3p * itemsize, N3p * 4,
              N3p * N4p * itemsize, N4p * 4, N4p * N5p * itemsize, N5p * 4,
              tm * N5p * 4]
    cost = pl.CostEstimate(
        flops=int(2 * Mp * (K3 * N3p + N3p * N4p + N4p * N5p)),
        transcendentals=0,
        bytes_accessed=int(sum(t.size * t.dtype.itemsize for t in (a, w3, w4, w5))
                           + (N3p + N4p + N5p) * 4 + Mp * N5p * 4),
    )

    kernel = functools.partial(_tail_kernel, compute_dtype=MATMUL_DTYPE)
    out = pl.pallas_call(
        kernel,
        out_shape=jax.ShapeDtypeStruct((Mp, N5p), jnp.float32),
        grid=(Mp // tm,),
        in_specs=[
            pl.BlockSpec((tm, K3), lambda i: (i, 0)),
            pl.BlockSpec((K3, N3p), lambda i: (0, 0)),
            pl.BlockSpec((1, N3p), lambda i: (0, 0)),
            pl.BlockSpec((N3p, N4p), lambda i: (0, 0)),
            pl.BlockSpec((1, N4p), lambda i: (0, 0)),
            pl.BlockSpec((N4p, N5p), lambda i: (0, 0)),
            pl.BlockSpec((1, N5p), lambda i: (0, 0)),
        ],
        out_specs=pl.BlockSpec((tm, N5p), lambda i: (i, 0)),
        compiler_params=pltpu.CompilerParams(
            dimension_semantics=("parallel",),
            vmem_limit_bytes=_vmem_limit_bytes(*blocks),
        ),
        cost_estimate=cost,
    )(a, w3, b3, w4, b4, w5, b5)
    return out[:B, :N5]


# ---------------------------------------------------------------------------
# LeNet-5 forward
# ---------------------------------------------------------------------------
def init_params(key):
    ks = jax.random.split(key, 10)

    def w(k, shape, fan_in):
        return (jax.random.normal(k, shape, jnp.float32) / jnp.sqrt(fan_in)).astype(
            jnp.float32
        )

    return {
        "conv1_w": w(ks[0], (6, 1, 5, 5), 1 * 5 * 5),
        "conv1_b": w(ks[1], (6,), 25),
        "conv2_w": w(ks[2], (16, 6, 5, 5), 6 * 5 * 5),
        "conv2_b": w(ks[3], (16,), 150),
        "conv3_w": w(ks[4], (120, 16, 5, 5), 16 * 5 * 5),
        "conv3_b": w(ks[5], (120,), 400),
        "fc1_w": w(ks[6], (84, 120), 120),
        "fc1_b": w(ks[7], (84,), 120),
        "fc2_w": w(ks[8], (3, 84), 84),
        "fc2_b": w(ks[9], (3,), 84),
    }


@jax.jit
def lenet5_forward(params, x_nchw):
    # NCHW (PyTorch) -> NHWC (internal)
    x = jnp.transpose(x_nchw, (0, 2, 3, 1)).astype(jnp.float32)   # (B, 28, 28, 1)
    # Conv2d(1, 6, k=5, pad=2) + ReLU + MaxPool2d(2,2) -> (B, 14, 14, 6)
    x = conv_relu_pool(x, params["conv1_w"], params["conv1_b"], padding=2)
    # Conv2d(6, 16, k=5) + ReLU + MaxPool2d(2,2)       -> (B, 5, 5, 16)
    x = conv_relu_pool(x, params["conv2_w"], params["conv2_b"], padding=0)
    # Conv2d(16, 120, k=5) + ReLU -> flatten -> Linear(120,84)+ReLU -> Linear(84,3)
    return conv3_fc_fused(x, params)                              # (B, 3)


if __name__ == "__main__":
    key = jax.random.PRNGKey(0)
    pkey, xkey = jax.random.split(key)
    params = init_params(pkey)
    # LeNet-5 geometry requires 1x28x28 inputs (conv3 leaves 1x1 spatial -> 120 feats)
    x = jax.random.normal(xkey, (2, 1, 28, 28), jnp.float32)

    out = lenet5_forward(params, x)
    out = jax.block_until_ready(out)
    assert out.shape == (2, 3), out.shape
    assert bool(jnp.all(jnp.isfinite(out)))
    print("KERNEL_OK")
</pallas_src>

<mosaic_0001>
module attributes {stable_mosaic.version = 11 : i64} {
  func.func @_conv_pool_kernel(%arg0: i32, %arg1: memref<4x208x32xbf16, #tpu.memory_space<vmem>>, %arg2: memref<32x128xbf16, #tpu.memory_space<vmem>>, %arg3: memref<1x128xf32, #tpu.memory_space<vmem>>, %arg4: memref<208x128xbf16, #tpu.memory_space<vmem>>) attributes {dimension_semantics = [#tpu.dimension_semantics<parallel>], iteration_bounds = array<i64: 2>, scalar_prefetch = 0 : i64, scratch_operands = 0 : i64, tpu.core_type = #tpu.core_type<tc>, window_params = [{transform_indices = @transform_0, window_bounds = array<i64: 4, 208, 32>}, {pipeline_mode = #tpu.pipeline_mode<synchronous>, transform_indices = @transform_1, window_bounds = array<i64: 32, 128>}, {pipeline_mode = #tpu.pipeline_mode<synchronous>, transform_indices = @transform_2, window_bounds = array<i64: 1, 128>}, {transform_indices = @transform_3, window_bounds = array<i64: 208, 128>}]} {
    %c0 = arith.constant 0 : index
    %c0_0 = arith.constant 0 : index
    %c0_1 = arith.constant 0 : index
    %0 = vector.load %arg1[%c0, %c0_0, %c0_1] : memref<4x208x32xbf16, #tpu.memory_space<vmem>>, vector<4x208x32xbf16>
    %1 = vector.shape_cast %0 : vector<4x208x32xbf16> to vector<832x32xbf16>
    %c0_2 = arith.constant 0 : index
    %c0_3 = arith.constant 0 : index
    %2 = vector.load %arg2[%c0_2, %c0_3] : memref<32x128xbf16, #tpu.memory_space<vmem>>, vector<32x128xbf16>
    %cst = arith.constant dense<0.000000e+00> : vector<832x128xf32>
    %3 = tpu.matmul %1, %2, %cst {dimension_numbers = #tpu.dot_dimension_numbers<[1], [0], [0], [1], [0, 0, 1, 1], [], []>} : vector<832x32xbf16>, vector<32x128xbf16>, vector<832x128xf32> -> vector<832x128xf32>
    %4 = vector.shape_cast %3 : vector<832x128xf32> to vector<4x208x128xf32>
    %cst_4 = arith.constant dense<0xFF800000> : vector<208x128xf32>
    %5 = vector.multi_reduction <maximumf>, %4, %cst_4 [0] : vector<4x208x128xf32> to vector<208x128xf32>
    %c0_5 = arith.constant 0 : index
    %c0_6 = arith.constant 0 : index
    %6 = vector.load %arg3[%c0_5, %c0_6] : memref<1x128xf32, #tpu.memory_space<vmem>>, vector<1x128xf32>
    %7 = vector.broadcast %6 : vector<1x128xf32> to vector<208x128xf32>
    %8 = arith.addf %5, %7 : vector<208x128xf32>
    %cst_7 = arith.constant 0.000000e+00 : f32
    %9 = vector.broadcast %cst_7 : f32 to vector<208x128xf32>
    %10 = arith.maximumf %8, %9 : vector<208x128xf32>
    %11 = arith.truncf %10 : vector<208x128xf32> to vector<208x128xbf16>
    %c0_8 = arith.constant 0 : index
    %c0_9 = arith.constant 0 : index
    %12 = vector.load %arg4[%c0_8, %c0_9] : memref<208x128xbf16, #tpu.memory_space<vmem>>, vector<208x128xbf16>
    tpu.vector_store %arg4[%c0_8, %c0_9], %11 {strides = array<i32>} : memref<208x128xbf16, #tpu.memory_space<vmem>>, vector<208x128xbf16>,
    return
  }
  func.func @transform_0(%arg0: i32) -> (i32, i32, i32) {
    %c0_i32 = arith.constant 0 : i32
    %c0_i32_0 = arith.constant 0 : i32
    %c0_i32_1 = arith.constant 0 : i32
    return %c0_i32, %arg0, %c0_i32_0 : i32, i32, i32
  }
  func.func @transform_1(%arg0: i32) -> (i32, i32) {
    %c0_i32 = arith.constant 0 : i32
    %c0_i32_0 = arith.constant 0 : i32
    %c0_i32_1 = arith.constant 0 : i32
    return %c0_i32, %c0_i32_0 : i32, i32
  }
  func.func @transform_2(%arg0: i32) -> (i32, i32) {
    %c0_i32 = arith.constant 0 : i32
    %c0_i32_0 = arith.constant 0 : i32
    %c0_i32_1 = arith.constant 0 : i32
    return %c0_i32, %c0_i32_0 : i32, i32
  }
  func.func @transform_3(%arg0: i32) -> (i32, i32) {
    %c0_i32 = arith.constant 0 : i32
    %c0_i32_0 = arith.constant 0 : i32
    return %arg0, %c0_i32 : i32, i32
  }
}

module attributes {stable_mosaic.version = 11 : i64} {
  func.func @_conv_pool_kernel(%arg0: i32, %arg1: memref<4x32x160xbf16, #tpu.memory_space<vmem>>, %arg2: memref<160x128xbf16, #tpu.memory_space<vmem>>, %arg3: memref<1x128xf32, #tpu.memory_space<vmem>>, %arg4: memref<32x128xbf16, #tpu.memory_space<vmem>>) attributes {dimension_semantics = [#tpu.dimension_semantics<parallel>], iteration_bounds = array<i64: 2>, scalar_prefetch = 0 : i64, scratch_operands = 0 : i64, tpu.core_type = #tpu.core_type<tc>, window_params = [{transform_indices = @transform_0, window_bounds = array<i64: 4, 32, 160>}, {pipeline_mode = #tpu.pipeline_mode<synchronous>, transform_indices = @transform_1, window_bounds = array<i64: 160, 128>}, {pipeline_mode = #tpu.pipeline_mode<synchronous>, transform_indices = @transform_2, window_bounds = array<i64: 1, 128>}, {transform_indices = @transform_3, window_bounds = array<i64: 32, 128>}]} {
    %c0 = arith.constant 0 : index
    %c0_0 = arith.constant 0 : index
    %c0_1 = arith.constant 0 : index
    %0 = vector.load %arg1[%c0, %c0_0, %c0_1] : memref<4x32x160xbf16, #tpu.memory_space<vmem>>, vector<4x32x160xbf16>
    %1 = vector.shape_cast %0 : vector<4x32x160xbf16> to vector<128x160xbf16>
    %c0_2 = arith.constant 0 : index
    %c0_3 = arith.constant 0 : index
    %2 = vector.load %arg2[%c0_2, %c0_3] : memref<160x128xbf16, #tpu.memory_space<vmem>>, vector<160x128xbf16>
    %cst = arith.constant dense<0.000000e+00> : vector<128x128xf32>
    %3 = tpu.matmul %1, %2, %cst {dimension_numbers = #tpu.dot_dimension_numbers<[1], [0], [0], [1], [0, 0, 1, 1], [], []>} : vector<128x160xbf16>, vector<160x128xbf16>, vector<128x128xf32> -> vector<128x128xf32>
    %4 = vector.shape_cast %3 : vector<128x128xf32> to vector<4x32x128xf32>
    %cst_4 = arith.constant dense<0xFF800000> : vector<32x128xf32>
    %5 = vector.multi_reduction <maximumf>, %4, %cst_4 [0] : vector<4x32x128xf32> to vector<32x128xf32>
    %c0_5 = arith.constant 0 : index
    %c0_6 = arith.constant 0 : index
    %6 = vector.load %arg3[%c0_5, %c0_6] : memref<1x128xf32, #tpu.memory_space<vmem>>, vector<1x128xf32>
    %7 = vector.broadcast %6 : vector<1x128xf32> to vector<32x128xf32>
    %8 = arith.addf %5, %7 : vector<32x128xf32>
    %cst_7 = arith.constant 0.000000e+00 : f32
    %9 = vector.broadcast %cst_7 : f32 to vector<32x128xf32>
    %10 = arith.maximumf %8, %9 : vector<32x128xf32>
    %11 = arith.truncf %10 : vector<32x128xf32> to vector<32x128xbf16>
    %c0_8 = arith.constant 0 : index
    %c0_9 = arith.constant 0 : index
    %12 = vector.load %arg4[%c0_8, %c0_9] : memref<32x128xbf16, #tpu.memory_space<vmem>>, vector<32x128xbf16>
    tpu.vector_store %arg4[%c0_8, %c0_9], %11 {strides = array<i32>} : memref<32x128xbf16, #tpu.memory_space<vmem>>, vector<32x128xbf16>,
    return
  }
  func.func @transform_0(%arg0: i32) -> (i32, i32, i32) {
    %c0_i32 = arith.constant 0 : i32
    %c0_i32_0 = arith.constant 0 : i32
    %c0_i32_1 = arith.constant 0 : i32
    return %c0_i32, %arg0, %c0_i32_0 : i32, i32, i32
  }
  func.func @transform_1(%arg0: i32) -> (i32, i32) {
    %c0_i32 = arith.constant 0 : i32
    %c0_i32_0 = arith.constant 0 : i32
    %c0_i32_1 = arith.constant 0 : i32
    return %c0_i32, %c0_i32_0 : i32, i32
  }
  func.func @transform_2(%arg0: i32) -> (i32, i32) {
    %c0_i32 = arith.constant 0 : i32
    %c0_i32_0 = arith.constant 0 : i32
    %c0_i32_1 = arith.constant 0 : i32
    return %c0_i32, %c0_i32_0 : i32, i32
  }
  func.func @transform_3(%arg0: i32) -> (i32, i32) {
    %c0_i32 = arith.constant 0 : i32
    %c0_i32_0 = arith.constant 0 : i32
    return %arg0, %c0_i32 : i32, i32
  }
}

module attributes {stable_mosaic.version = 11 : i64} {
  func.func @_tail_kernel(%arg0: i32, %arg1: memref<16x400xbf16, #tpu.memory_space<vmem>>, %arg2: memref<400x128xbf16, #tpu.memory_space<vmem>>, %arg3: memref<1x128xf32, #tpu.memory_space<vmem>>, %arg4: memref<128x128xbf16, #tpu.memory_space<vmem>>, %arg5: memref<1x128xf32, #tpu.memory_space<vmem>>, %arg6: memref<128x128xbf16, #tpu.memory_space<vmem>>, %arg7: memref<1x128xf32, #tpu.memory_space<vmem>>, %arg8: memref<16x128xf32, #tpu.memory_space<vmem>>) attributes {dimension_semantics = [#tpu.dimension_semantics<parallel>], iteration_bounds = array<i64: 1>, scalar_prefetch = 0 : i64, scratch_operands = 0 : i64, tpu.core_type = #tpu.core_type<tc>, window_params = [{transform_indices = @transform_0, window_bounds = array<i64: 16, 400>}, {pipeline_mode = #tpu.pipeline_mode<synchronous>, transform_indices = @transform_1, window_bounds = array<i64: 400, 128>}, {pipeline_mode = #tpu.pipeline_mode<synchronous>, transform_indices = @transform_2, window_bounds = array<i64: 1, 128>}, {pipeline_mode = #tpu.pipeline_mode<synchronous>, transform_indices = @transform_3, window_bounds = array<i64: 128, 128>}, {pipeline_mode = #tpu.pipeline_mode<synchronous>, transform_indices = @transform_4, window_bounds = array<i64: 1, 128>}, {pipeline_mode = #tpu.pipeline_mode<synchronous>, transform_indices = @transform_5, window_bounds = array<i64: 128, 128>}, {pipeline_mode = #tpu.pipeline_mode<synchronous>, transform_indices = @transform_6, window_bounds = array<i64: 1, 128>}, {transform_indices = @transform_7, window_bounds = array<i64: 16, 128>}]} {
    %c0 = arith.constant 0 : index
    %c0_0 = arith.constant 0 : index
    %0 = vector.load %arg1[%c0, %c0_0] : memref<16x400xbf16, #tpu.memory_space<vmem>>, vector<16x400xbf16>
    %c0_1 = arith.constant 0 : index
    %c0_2 = arith.constant 0 : index
    %1 = vector.load %arg2[%c0_1, %c0_2] : memref<400x128xbf16, #tpu.memory_space<vmem>>, vector<400x128xbf16>
    %cst = arith.constant dense<0.000000e+00> : vector<16x128xf32>
    %2 = tpu.matmul %0, %1, %cst {dimension_numbers = #tpu.dot_dimension_numbers<[1], [0], [0], [1], [0, 0, 1, 1], [], []>} : vector<16x400xbf16>, vector<400x128xbf16>, vector<16x128xf32> -> vector<16x128xf32>
    %c0_3 = arith.constant 0 : index
    %c0_4 = arith.constant 0 : index
    %3 = vector.load %arg3[%c0_3, %c0_4] : memref<1x128xf32, #tpu.memory_space<vmem>>, vector<1x128xf32>
    %4 = vector.broadcast %3 : vector<1x128xf32> to vector<16x128xf32>
    %5 = arith.addf %2, %4 : vector<16x128xf32>
    %cst_5 = arith.constant 0.000000e+00 : f32
    %6 = vector.broadcast %cst_5 : f32 to vector<16x128xf32>
    %7 = arith.maximumf %5, %6 : vector<16x128xf32>
    %8 = arith.truncf %7 : vector<16x128xf32> to vector<16x128xbf16>
    %c0_6 = arith.constant 0 : index
    %c0_7 = arith.constant 0 : index
    %9 = vector.load %arg4[%c0_6, %c0_7] : memref<128x128xbf16, #tpu.memory_space<vmem>>, vector<128x128xbf16>
    %cst_8 = arith.constant dense<0.000000e+00> : vector<16x128xf32>
    %10 = tpu.matmul %8, %9, %cst_8 {dimension_numbers = #tpu.dot_dimension_numbers<[1], [0], [0], [1], [0, 0, 1, 1], [], []>} : vector<16x128xbf16>, vector<128x128xbf16>, vector<16x128xf32> -> vector<16x128xf32>
    %c0_9 = arith.constant 0 : index
    %c0_10 = arith.constant 0 : index
    %11 = vector.load %arg5[%c0_9, %c0_10] : memref<1x128xf32, #tpu.memory_space<vmem>>, vector<1x128xf32>
    %12 = vector.broadcast %11 : vector<1x128xf32> to vector<16x128xf32>
    %13 = arith.addf %10, %12 : vector<16x128xf32>
    %cst_11 = arith.constant 0.000000e+00 : f32
    %14 = vector.broadcast %cst_11 : f32 to vector<16x128xf32>
    %15 = arith.maximumf %13, %14 : vector<16x128xf32>
    %16 = arith.truncf %15 : vector<16x128xf32> to vector<16x128xbf16>
    %c0_12 = arith.constant 0 : index
    %c0_13 = arith.constant 0 : index
    %17 = vector.load %arg6[%c0_12, %c0_13] : memref<128x128xbf16, #tpu.memory_space<vmem>>, vector<128x128xbf16>
    %cst_14 = arith.constant dense<0.000000e+00> : vector<16x128xf32>
    %18 = tpu.matmul %16, %17, %cst_14 {dimension_numbers = #tpu.dot_dimension_numbers<[1], [0], [0], [1], [0, 0, 1, 1], [], []>} : vector<16x128xbf16>, vector<128x128xbf16>, vector<16x128xf32> -> vector<16x128xf32>
    %c0_15 = arith.constant 0 : index
    %c0_16 = arith.constant 0 : index
    %19 = vector.load %arg7[%c0_15, %c0_16] : memref<1x128xf32, #tpu.memory_space<vmem>>, vector<1x128xf32>
    %20 = vector.broadcast %19 : vector<1x128xf32> to vector<16x128xf32>
    %21 = arith.addf %18, %20 : vector<16x128xf32>
    %c0_17 = arith.constant 0 : index
    %c0_18 = arith.constant 0 : index
    %22 = vector.load %arg8[%c0_17, %c0_18] : memref<16x128xf32, #tpu.memory_space<vmem>>, vector<16x128xf32>
    tpu.vector_store %arg8[%c0_17, %c0_18], %21 {strides = array<i32>} : memref<16x128xf32, #tpu.memory_space<vmem>>, vector<16x128xf32>,
    return
  }
  func.func @transform_0(%arg0: i32) -> (i32, i32) {
    %c0_i32 = arith.constant 0 : i32
    %c0_i32_0 = arith.constant 0 : i32
    return %arg0, %c0_i32 : i32, i32
  }
  func.func @transform_1(%arg0: i32) -> (i32, i32) {
    %c0_i32 = arith.constant 0 : i32
    %c0_i32_0 = arith.constant 0 : i32
    %c0_i32_1 = arith.constant 0 : i32
    return %c0_i32, %c0_i32_0 : i32, i32
  }
  func.func @transform_2(%arg0: i32) -> (i32, i32) {
    %c0_i32 = arith.constant 0 : i32
    %c0_i32_0 = arith.constant 0 : i32
    %c0_i32_1 = arith.constant 0 : i32
    return %c0_i32, %c0_i32_0 : i32, i32
  }
  func.func @transform_3(%arg0: i32) -> (i32, i32) {
    %c0_i32 = arith.constant 0 : i32
    %c0_i32_0 = arith.constant 0 : i32
    %c0_i32_1 = arith.constant 0 : i32
    return %c0_i32, %c0_i32_0 : i32, i32
  }
  func.func @transform_4(%arg0: i32) -> (i32, i32) {
    %c0_i32 = arith.constant 0 : i32
    %c0_i32_0 = arith.constant 0 : i32
    %c0_i32_1 = arith.constant 0 : i32
    return %c0_i32, %c0_i32_0 : i32, i32
  }
  func.func @transform_5(%arg0: i32) -> (i32, i32) {
    %c0_i32 = arith.constant 0 : i32
    %c0_i32_0 = arith.constant 0 : i32
    %c0_i32_1 = arith.constant 0 : i32
    return %c0_i32, %c0_i32_0 : i32, i32
  }
  func.func @transform_6(%arg0: i32) -> (i32, i32) {
    %c0_i32 = arith.constant 0 : i32
    %c0_i32_0 = arith.constant 0 : i32
    %c0_i32_1 = arith.constant 0 : i32
    return %c0_i32, %c0_i32_0 : i32, i32
  }
  func.func @transform_7(%arg0: i32) -> (i32, i32) {
    %c0_i32 = arith.constant 0 : i32
    %c0_i32_0 = arith.constant 0 : i32
    return %arg0, %c0_i32 : i32, i32
  }
}

</mosaic_0001>

<llo_original>
// kernel: lenet5_forward.3
$region0: #{lenet5_forward.3}
  #allocation0 [shape = 'u32[]', space=smem, size = 0x4, offset = 0x4, fixed_abs, tag = 'smem constant byte address 0x4 - core index']
  #allocation1 [shape = 'u32[144,128]{1,0:T(1,128)}', space=vmem, size = 0x12000, scoped, tag = 'internal scratch']
  %s0 = inlined_call_operand.vmem [shape: bf16[4,416,32], index: 0, kind: input, shape index: {}]
  %s1 = inlined_call_operand.vmem [shape: bf16[32,128], index: 1, kind: input, shape index: {}]
  %s2 = inlined_call_operand.vmem [shape: f32[1,128], index: 2, kind: input, shape index: {}]
  %s3 = inlined_call_operand.vmem [shape: bf16[416,128], index: 3, kind: output, shape index: {}]
  %s4 = sld [smem:[#allocation0]]
  $region86: #{lenet5_forward.3} parent=0
    _
  %s6 = ssub.s32 1, %s4
  %s7 = scalar_select 0, %s6, %s4
  $region1: #{lenet5_forward.3} parent=0
    #allocation2 [shape = 'u8[425984]{0}', space=vmem, size = 0x68000, scoped, tag = 'input window, operand 0']
    loop: start=0, step=1, limit=4
    $region2: #{lenet5_forward.3} parent=1 // loop_pre_header
      _
    $region3: #{lenet5_forward.3} parent=1 // loop_header
      %s9 = sphi 0, %s13
      %p10 = scmp.ge.s32.totalorder %s9, 4
      %s19 = sphi 0, %s21
      %s22 = sphi 0, %s19
      %s23 = sphi 0, %s22
      %s39 = sphi 0, %s23
      %s43 = sphi 0, %s43
      %s45 = sphi 0, %s43
      %s46 = sphi 0, %s45
      %s60 = sphi 0, %s46
      %s64 = sphi 0, %s64
      %s66 = sphi 0, %s64
      %s67 = sphi 0, %s66
      %s81 = sphi 0, %s67
      %s87 = sphi 0, %s89
      %s90 = sphi 0, %s87
      %s91 = sphi 0, %s90
      %s107 = sphi 0, %s91
    $region4: #{lenet5_forward.3} parent=1 // loop_header_branch
      %12 = sbr.rel (%p10) target = $region8
    $region5: #{lenet5_forward.3} parent=1 // loop_body
      %s14 = ssub.s32 %s9, 1
      %s15 = ssub.s32 %s9, 2
      %s16 = sadd.s32 %s9, 1
      %s17 = ssub.s32 %s9, %s16
      %p18 = scmp.eq.s32.totalorder %s17, 0
      %s20 = sadd.s32 %s19, 1
      %s21 = scalar_select %p18, %s19, %s20
      %p24 = pneg %p18
      %p25 = scmp.eq.s32.totalorder %s9, 1
      %p26 = por %p24, %p25
      %p27 = scmp.ne.s32.totalorder %s19, %s22
      %p28 = scmp.eq.s32.totalorder %s9, 0
      %p29 = por %p27, %p28
      %p30 = scmp.ne.s32.totalorder %s19, %s22
      %p31 = scmp.eq.s32.totalorder %s14, 1
      %p32 = por %p30, %p31
      %p33 = scmp.ne.s32.totalorder %s22, %s23
      %p34 = scmp.eq.s32.totalorder %s14, 0
      %p35 = por %p33, %p34
      %p36 = scmp.ne.s32.totalorder %s22, %s23
      %p37 = scmp.eq.s32.totalorder %s15, 1
      %p38 = por %p36, %p37
      %p40 = scmp.ne.s32.totalorder %s23, %s39
      %p41 = scmp.eq.s32.totalorder %s15, 0
      %p42 = por %p40, %p41
      %s44 = sadd.s32 %s43, 1
      %p47 = scmp.eq.s32.totalorder %s9, 1
      %p48 = scmp.ne.s32.totalorder %s43, %s45
      %p49 = scmp.eq.s32.totalorder %s9, 0
      %p50 = por %p48, %p49
      %p51 = scmp.ne.s32.totalorder %s43, %s45
      %p52 = scmp.eq.s32.totalorder %s14, 1
      %p53 = por %p51, %p52
      %p54 = scmp.ne.s32.totalorder %s45, %s46
      %p55 = scmp.eq.s32.totalorder %s14, 0
      %p56 = por %p54, %p55
      %p57 = scmp.ne.s32.totalorder %s45, %s46
      %p58 = scmp.eq.s32.totalorder %s15, 1
      %p59 = por %p57, %p58
      %p61 = scmp.ne.s32.totalorder %s46, %s60
      %p62 = scmp.eq.s32.totalorder %s15, 0
      %p63 = por %p61, %p62
      %s65 = sadd.s32 %s64, 1
      %p68 = scmp.eq.s32.totalorder %s9, 1
      %p69 = scmp.ne.s32.totalorder %s64, %s66
      %p70 = scmp.eq.s32.totalorder %s9, 0
      %p71 = por %p69, %p70
      %p72 = scmp.ne.s32.totalorder %s64, %s66
      %p73 = scmp.eq.s32.totalorder %s14, 1
      %p74 = por %p72, %p73
      %p75 = scmp.ne.s32.totalorder %s66, %s67
      %p76 = scmp.eq.s32.totalorder %s14, 0
      %p77 = por %p75, %p76
      %p78 = scmp.ne.s32.totalorder %s66, %s67
      %p79 = scmp.eq.s32.totalorder %s15, 1
      %p80 = por %p78, %p79
      %p82 = scmp.ne.s32.totalorder %s67, %s81
      %p83 = scmp.eq.s32.totalorder %s15, 0
      %p84 = por %p82, %p83
      %s85 = ssub.s32 %s9, %s16
      %p86 = scmp.eq.s32.totalorder %s85, 0
      %s88 = sadd.s32 %s87, 1
      %s89 = scalar_select %p86, %s87, %s88
      %p92 = pneg %p86
      %p93 = scmp.eq.s32.totalorder %s9, 1
      %p94 = por %p92, %p93
      %p95 = scmp.ne.s32.totalorder %s87, %s90
      %p96 = scmp.eq.s32.totalorder %s9, 0
      %p97 = por %p95, %p96
      %p98 = scmp.ne.s32.totalorder %s87, %s90
      %p99 = scmp.eq.s32.totalorder %s14, 1
      %p100 = por %p98, %p99
      %p101 = scmp.ne.s32.totalorder %s90, %s91
      %p102 = scmp.eq.s32.totalorder %s14, 0
      %p103 = por %p101, %p102
      %p104 = scmp.ne.s32.totalorder %s90, %s91
      %p105 = scmp.eq.s32.totalorder %s15, 1
      %p106 = por %p104, %p105
      %p108 = scmp.ne.s32.totalorder %s91, %s107
      %p109 = scmp.eq.s32.totalorder %s15, 0
      %p110 = por %p108, %p109
      %p111 = scmp.le.s32.totalorder 1, %s9
      %p112 = scmp.lt.s32.totalorder %s9, 3
      %p113 = pnand %p111, %p112
      %p114 = pneg %p113
      // Predicated region
      $region9: #{lenet5_forward.3} parent=5 // pred_check
        _
      $region10: #{lenet5_forward.3} parent=5 // pred_check_branch
        %116 = sbr.rel (%p113) target = $region12
      $region11: #{lenet5_forward.3} parent=5 // pred_region
        %s117 = ssub.s32 %s9, 1
        // Predicated region
        $region13: #{lenet5_forward.3} parent=11 // pred_check
          %p118 = pneg %p56
        $region14: #{lenet5_forward.3} parent=11 // pred_check_branch
          %120 = sbr.rel (%p118) target = $region16
        $region15: #{lenet5_forward.3} parent=11 // pred_region
          _
        $region16: #{lenet5_forward.3} parent=11 // pred_fallthru
          _
        // Predicated region
        $region17: #{lenet5_forward.3} parent=11 // pred_check
          %p121 = pneg %p77
        $region18: #{lenet5_forward.3} parent=11 // pred_check_branch
          %123 = sbr.rel (%p121) target = $region20
        $region19: #{lenet5_forward.3} parent=11 // pred_region
          _
        $region20: #{lenet5_forward.3} parent=11 // pred_fallthru
          _
      $region12: #{lenet5_forward.3} parent=5 // pred_fallthru
        _
      %p124 = scmp.lt.s32.totalorder %s9, 2
      // Predicated region
      $region21: #{lenet5_forward.3} parent=5 // pred_check
        %p125 = pneg %p124
      $region22: #{lenet5_forward.3} parent=5 // pred_check_branch
        %127 = sbr.rel (%p125) target = $region24
      $region23: #{lenet5_forward.3} parent=5 // pred_region
        // Predicated region
        $region25: #{lenet5_forward.3} parent=23 // pred_check
          %p128 = pneg %p29
        $region26: #{lenet5_forward.3} parent=23 // pred_check_branch
          %130 = sbr.rel (%p128) target = $region28
        $region27: #{lenet5_forward.3} parent=23 // pred_region
          %s131 = sand.u32 %s19, 1
          %s132 = sand.u32 %s19, 1
          %s133 = smul.addr %s132, 416
          %s134 = scalar_lea.vmem [#allocation2], %s133
          %s135 = smul.u32 26, %s9
          %s136 = smul.addr %s135, 4
          %s137 = scalar_lea.vmem %s0, %s136
          // Predicated region
          $region29: #{lenet5_forward.3} parent=27 // pred_check
            _
          $region30: #{lenet5_forward.3} parent=27 // pred_check_branch
            %139 = sbr.rel (0) target = $region32
          $region31: #{lenet5_forward.3} parent=27 // pred_region
            // Predicated region
            $region33: #{lenet5_forward.3} parent=31 // pred_check
              _
            $region34: #{lenet5_forward.3} parent=31 // pred_check_branch
              %141 = sbr.rel target = $region36
            $region35: #{lenet5_forward.3} parent=31 // pred_region
              // Predicated region
              $region48: #{lenet5_forward.3} parent=35 // pred_check
                _
              $region49: #{lenet5_forward.3} parent=35 // pred_check_branch
                %362 = sbr.rel (0) target = $region51
              $region50: #{lenet5_forward.3} parent=35 // pred_region
                loop: start=0, step=1, limit=1
                $region52: #{lenet5_forward.3} parent=50 // loop_pre_header
                  _
                $region53: #{lenet5_forward.3} parent=50 // loop_header
                  %s364 = sphi 0, %s368
                  %p365 = scmp.ge.s32.totalorder %s364, 1
                  %s369 = sphi %s137, %s137
                  %s370 = sphi %s134, %s134
                $region54: #{lenet5_forward.3} parent=50 // loop_header_branch
                  %367 = sbr.rel (%p365) target = $region58
                $region55: #{lenet5_forward.3} parent=50 // loop_body
                  _
                $region56: #{lenet5_forward.3} parent=50 // loop_footer
                  %s368 = sadd.s32 1, %s364
                $region57: #{lenet5_forward.3} parent=50 // loop_footer_branch
                  %363 = sbr.rel target = $region53
                $region58: #{lenet5_forward.3} parent=50 // loop_exit
                  _
                loop: start=0, step=1, limit=1
                $region59: #{lenet5_forward.3} parent=50 // loop_pre_header
                  _
                $region60: #{lenet5_forward.3} parent=50 // loop_header
                  %s373 = sphi 0, %s377
                  %p374 = scmp.ge.s32.totalorder %s373, 1
                  %s378 = sphi %s137, %s137
                  %s379 = sphi %s134, %s134
                $region61: #{lenet5_forward.3} parent=50 // loop_header_branch
                  %376 = sbr.rel (%p374) target = $region65
                $region62: #{lenet5_forward.3} parent=50 // loop_body
                  %v380 = vld [vmem:[%s378] sm:$0xf]
                  %381 = vst [vmem:[%s379] sm:$0xf] %v380
                  %v382 = vld [vmem:[%s378 + $0x4] sm:$0xf]
                  %383 = vst [vmem:[%s379 + $0x4] sm:$0xf] %v382
                  %v384 = vld [vmem:[%s378 + $0x8] sm:$0xf]
                  %385 = vst [vmem:[%s379 + $0x8] sm:$0xf] %v384
                  %v386 = vld [vmem:[%s378 + $0xc] sm:$0xf]
                  %387 = vst [vmem:[%s379 + $0xc] sm:$0xf] %v386
                  %v388 = vld [vmem:[%s378 + $0x10] sm:$0xf]
                  %389 = vst [vmem:[%s379 + $0x10] sm:$0xf] %v388
                  %v390 = vld [vmem:[%s378 + $0x14] sm:$0xf]
                  %391 = vst [vmem:[%s379 + $0x14] sm:$0xf] %v390
                  %v392 = vld [vmem:[%s378 + $0x18] sm:$0xf]
                  %393 = vst [vmem:[%s379 + $0x18] sm:$0xf] %v392
                  %v394 = vld [vmem:[%s378 + $0x1c] sm:$0xf]
                  %395 = vst [vmem:[%s379 + $0x1c] sm:$0xf] %v394
                  %v396 = vld [vmem:[%s378 + $0x20] sm:$0xf]
                  %397 = vst [vmem:[%s379 + $0x20] sm:$0xf] %v396
                  %v398 = vld [vmem:[%s378 + $0x24] sm:$0xf]
                  %399 = vst [vmem:[%s379 + $0x24] sm:$0xf] %v398
                  %v400 = vld [vmem:[%s378 + $0x28] sm:$0xf]
                  %401 = vst [vmem:[%s379 + $0x28] sm:$0xf] %v400
                  %v402 = vld [vmem:[%s378 + $0x2c] sm:$0xf]
                  %403 = vst [vmem:[%s379 + $0x2c] sm:$0xf] %v402
                  %v404 = vld [vmem:[%s378 + $0x30] sm:$0xf]
                  %405 = vst [vmem:[%s379 + $0x30] sm:$0xf] %v404
                  %v406 = vld [vmem:[%s378 + $0x34] sm:$0xf]
                  %407 = vst [vmem:[%s379 + $0x34] sm:$0xf] %v406
                  %v408 = vld [vmem:[%s378 + $0x38] sm:$0xf]
                  %409 = vst [vmem:[%s379 + $0x38] sm:$0xf] %v408
                  %v410 = vld [vmem:[%s378 + $0x3c] sm:$0xf]
                  %411 = vst [vmem:[%s379 + $0x3c] sm:$0xf] %v410
                  %v412 = vld [vmem:[%s378 + $0x40] sm:$0xf]
                  %413 = vst [vmem:[%s379 + $0x40] sm:$0xf] %v412
                  %v414 = vld [vmem:[%s378 + $0x44] sm:$0xf]
                  %415 = vst [vmem:[%s379 + $0x44] sm:$0xf] %v414
                  %v416 = vld [vmem:[%s378 + $0x48] sm:$0xf]
                  %417 = vst [vmem:[%s379 + $0x48] sm:$0xf] %v416
                  %v418 = vld [vmem:[%s378 + $0x4c] sm:$0xf]
                  %419 = vst [vmem:[%s379 + $0x4c] sm:$0xf] %v418
                  %v420 = vld [vmem:[%s378 + $0x50] sm:$0xf]
                  %421 = vst [vmem:[%s379 + $0x50] sm:$0xf] %v420
                  %v422 = vld [vmem:[%s378 + $0x54] sm:$0xf]
                  %423 = vst [vmem:[%s379 + $0x54] sm:$0xf] %v422
                  %v424 = vld [vmem:[%s378 + $0x58] sm:$0xf]
                  %425 = vst [vmem:[%s379 + $0x58] sm:$0xf] %v424
                  %v426 = vld [vmem:[%s378 + $0x5c] sm:$0xf]
                  %427 = vst [vmem:[%s379 + $0x5c] sm:$0xf] %v426
                  %v428 = vld [vmem:[%s378 + $0x60] sm:$0xf]
                  %429 = vst [vmem:[%s379 + $0x60] sm:$0xf] %v428
                  %v430 = vld [vmem:[%s378 + $0x64] sm:$0xf]
                  %431 = vst [vmem:[%s379 + $0x64] sm:$0xf] %v430
                  %v432 = vld [vmem:[%s378 + $0xd0] sm:$0xf]
                  %433 = vst [vmem:[%s379 + $0x68] sm:$0xf] %v432
                  %v434 = vld [vmem:[%s378 + $0xd4] sm:$0xf]
                  %435 = vst [vmem:[%s379 + $0x6c] sm:$0xf] %v434
                  %v436 = vld [vmem:[%s378 + $0xd8] sm:$0xf]
                  %437 = vst [vmem:[%s379 + $0x70] sm:$0xf] %v436
                  %v438 = vld [vmem:[%s378 + $0xdc] sm:$0xf]
                  %439 = vst [vmem:[%s379 + $0x74] sm:$0xf] %v438
                  %v440 = vld [vmem:[%s378 + $0xe0] sm:$0xf]
                  %441 = vst [vmem:[%s379 + $0x78] sm:$0xf] %v440
                  %v442 = vld [vmem:[%s378 + $0xe4] sm:$0xf]
                  %443 = vst [vmem:[%s379 + $0x7c] sm:$0xf] %v442
                  %v444 = vld [vmem:[%s378 + $0xe8] sm:$0xf]
                  %445 = vst [vmem:[%s379 + $0x80] sm:$0xf] %v444
                  %v446 = vld [vmem:[%s378 + $0xec] sm:$0xf]
                  %447 = vst [vmem:[%s379 + $0x84] sm:$0xf] %v446
                  %v448 = vld [vmem:[%s378 + $0xf0] sm:$0xf]
                  %449 = vst [vmem:[%s379 + $0x88] sm:$0xf] %v448
                  %v450 = vld [vmem:[%s378 + $0xf4] sm:$0xf]
                  %451 = vst [vmem:[%s379 + $0x8c] sm:$0xf] %v450
                  %v452 = vld [vmem:[%s378 + $0xf8] sm:$0xf]
                  %453 = vst [vmem:[%s379 + $0x90] sm:$0xf] %v452
                  %v454 = vld [vmem:[%s378 + $0xfc] sm:$0xf]
                  %455 = vst [vmem:[%s379 + $0x94] sm:$0xf] %v454
                  %v456 = vld [vmem:[%s378 + $0x100] sm:$0xf]
                  %457 = vst [vmem:[%s379 + $0x98] sm:$0xf] %v456
                  %v458 = vld [vmem:[%s378 + $0x104] sm:$0xf]
                  %459 = vst [vmem:[%s379 + $0x9c] sm:$0xf] %v458
                  %v460 = vld [vmem:[%s378 + $0x108] sm:$0xf]
                  %461 = vst [vmem:[%s379 + $0xa0] sm:$0xf] %v460
                  %v462 = vld [vmem:[%s378 + $0x10c] sm:$0xf]
                  %463 = vst [vmem:[%s379 + $0xa4] sm:$0xf] %v462
                  %v464 = vld [vmem:[%s378 + $0x110] sm:$0xf]
                  %465 = vst [vmem:[%s379 + $0xa8] sm:$0xf] %v464
                  %v466 = vld [vmem:[%s378 + $0x114] sm:$0xf]
                  %467 = vst [vmem:[%s379 + $0xac] sm:$0xf] %v466
                  %v468 = vld [vmem:[%s378 + $0x118] sm:$0xf]
                  %469 = vst [vmem:[%s379 + $0xb0] sm:$0xf] %v468
                  %v470 = vld [vmem:[%s378 + $0x11c] sm:$0xf]
                  %471 = vst [vmem:[%s379 + $0xb4] sm:$0xf] %v470
                  %v472 = vld [vmem:[%s378 + $0x120] sm:$0xf]
                  %473 = vst [vmem:[%s379 + $0xb8] sm:$0xf] %v472
                  %v474 = vld [vmem:[%s378 + $0x124] sm:$0xf]
                  %475 = vst [vmem:[%s379 + $0xbc] sm:$0xf] %v474
                  %v476 = vld [vmem:[%s378 + $0x128] sm:$0xf]
                  %477 = vst [vmem:[%s379 + $0xc0] sm:$0xf] %v476
                  %v478 = vld [vmem:[%s378 + $0x12c] sm:$0xf]
                  %479 = vst [vmem:[%s379 + $0xc4] sm:$0xf] %v478
                  %v480 = vld [vmem:[%s378 + $0x130] sm:$0xf]
                  %481 = vst [vmem:[%s379 + $0xc8] sm:$0xf] %v480
                  %v482 = vld [vmem:[%s378 + $0x134] sm:$0xf]
                  %483 = vst [vmem:[%s379 + $0xcc] sm:$0xf] %v482
                  %v484 = vld [vmem:[%s378 + $0x1a0] sm:$0xf]
                  %485 = vst [vmem:[%s379 + $0xd0] sm:$0xf] %v484
                  %v486 = vld [vmem:[%s378 + $0x1a4] sm:$0xf]
                  %487 = vst [vmem:[%s379 + $0xd4] sm:$0xf] %v486
                  %v488 = vld [vmem:[%s378 + $0x1a8] sm:$0xf]
                  %489 = vst [vmem:[%s379 + $0xd8] sm:$0xf] %v488
                  %v490 = vld [vmem:[%s378 + $0x1ac] sm:$0xf]
                  %491 = vst [vmem:[%s379 + $0xdc] sm:$0xf] %v490
                  %v492 = vld [vmem:[%s378 + $0x1b0] sm:$0xf]
                  %493 = vst [vmem:[%s379 + $0xe0] sm:$0xf] %v492
                  %v494 = vld [vmem:[%s378 + $0x1b4] sm:$0xf]
                  %495 = vst [vmem:[%s379 + $0xe4] sm:$0xf] %v494
                  %v496 = vld [vmem:[%s378 + $0x1b8] sm:$0xf]
                  %497 = vst [vmem:[%s379 + $0xe8] sm:$0xf] %v496
                  %v498 = vld [vmem:[%s378 + $0x1bc] sm:$0xf]
                  %499 = vst [vmem:[%s379 + $0xec] sm:$0xf] %v498
                  %v500 = vld [vmem:[%s378 + $0x1c0] sm:$0xf]
                  %501 = vst [vmem:[%s379 + $0xf0] sm:$0xf] %v500
                  %v502 = vld [vmem:[%s378 + $0x1c4] sm:$0xf]
                  %503 = vst [vmem:[%s379 + $0xf4] sm:$0xf] %v502
                  %v504 = vld [vmem:[%s378 + $0x1c8] sm:$0xf]
                  %505 = vst [vmem:[%s379 + $0xf8] sm:$0xf] %v504
                  %v506 = vld [vmem:[%s378 + $0x1cc] sm:$0xf]
                  %507 = vst [vmem:[%s379 + $0xfc] sm:$0xf] %v506
                  %v508 = vld [vmem:[%s378 + $0x1d0] sm:$0xf]
                  %509 = vst [vmem:[%s379 + $0x100] sm:$0xf] %v508
                  %v510 = vld [vmem:[%s378 + $0x1d4] sm:$0xf]
                  %511 = vst [vmem:[%s379 + $0x104] sm:$0xf] %v510
                  %v512 = vld [vmem:[%s378 + $0x1d8] sm:$0xf]
                  %513 = vst [vmem:[%s379 + $0x108] sm:$0xf] %v512
                  %v514 = vld [vmem:[%s378 + $0x1dc] sm:$0xf]
                  %515 = vst [vmem:[%s379 + $0x10c] sm:$0xf] %v514
                  %v516 = vld [vmem:[%s378 + $0x1e0] sm:$0xf]
                  %517 = vst [vmem:[%s379 + $0x110] sm:$0xf] %v516
                  %v518 = vld [vmem:[%s378 + $0x1e4] sm:$0xf]
                  %519 = vst [vmem:[%s379 + $0x114] sm:$0xf] %v518
                  %v520 = vld [vmem:[%s378 + $0x1e8] sm:$0xf]
                  %521 = vst [vmem:[%s379 + $0x118] sm:$0xf] %v520
                  %v522 = vld [vmem:[%s378 + $0x1ec] sm:$0xf]
                  %523 = vst [vmem:[%s379 + $0x11c] sm:$0xf] %v522
                  %v524 = vld [vmem:[%s378 + $0x1f0] sm:$0xf]
                  %525 = vst [vmem:[%s379 + $0x120] sm:$0xf] %v524
                  %v526 = vld [vmem:[%s378 + $0x1f4] sm:$0xf]
                  %527 = vst [vmem:[%s379 + $0x124] sm:$0xf] %v526
                  %v528 = vld [vmem:[%s378 + $0x1f8] sm:$0xf]
                  %529 = vst [vmem:[%s379 + $0x128] sm:$0xf] %v528
                  %v530 = vld [vmem:[%s378 + $0x1fc] sm:$0xf]
                  %531 = vst [vmem:[%s379 + $0x12c] sm:$0xf] %v530
                  %v532 = vld [vmem:[%s378 + $0x200] sm:$0xf]
                  %533 = vst [vmem:[%s379 + $0x130] sm:$0xf] %v532
                  %v534 = vld [vmem:[%s378 + $0x204] sm:$0xf]
                  %535 = vst [vmem:[%s379 + $0x134] sm:$0xf] %v534
                  %v536 = vld [vmem:[%s378 + $0x270] sm:$0xf]
                  %537 = vst [vmem:[%s379 + $0x138] sm:$0xf] %v536
                  %v538 = vld [vmem:[%s378 + $0x274] sm:$0xf]
                  %539 = vst [vmem:[%s379 + $0x13c] sm:$0xf] %v538
                  %v540 = vld [vmem:[%s378 + $0x278] sm:$0xf]
                  %541 = vst [vmem:[%s379 + $0x140] sm:$0xf] %v540
                  %v542 = vld [vmem:[%s378 + $0x27c] sm:$0xf]
                  %543 = vst [vmem:[%s379 + $0x144] sm:$0xf] %v542
                  %v544 = vld [vmem:[%s378 + $0x280] sm:$0xf]
                  %545 = vst [vmem:[%s379 + $0x148] sm:$0xf] %v544
                  %v546 = vld [vmem:[%s378 + $0x284] sm:$0xf]
                  %547 = vst [vmem:[%s379 + $0x14c] sm:$0xf] %v546
                  %v548 = vld [vmem:[%s378 + $0x288] sm:$0xf]
                  %549 = vst [vmem:[%s379 + $0x150] sm:$0xf] %v548
                  %v550 = vld [vmem:[%s378 + $0x28c] sm:$0xf]
                  %551 = vst [vmem:[%s379 + $0x154] sm:$0xf] %v550
                  %v552 = vld [vmem:[%s378 + $0x290] sm:$0xf]
                  %553 = vst [vmem:[%s379 + $0x158] sm:$0xf] %v552
                  %v554 = vld [vmem:[%s378 + $0x294] sm:$0xf]
                  %555 = vst [vmem:[%s379 + $0x15c] sm:$0xf] %v554
                  %v556 = vld [vmem:[%s378 + $0x298] sm:$0xf]
                  %557 = vst [vmem:[%s379 + $0x160] sm:$0xf] %v556
                  %v558 = vld [vmem:[%s378 + $0x29c] sm:$0xf]
                  %559 = vst [vmem:[%s379 + $0x164] sm:$0xf] %v558
                  %v560 = vld [vmem:[%s378 + $0x2a0] sm:$0xf]
                  %561 = vst [vmem:[%s379 + $0x168] sm:$0xf] %v560
                  %v562 = vld [vmem:[%s378 + $0x2a4] sm:$0xf]
                  %563 = vst [vmem:[%s379 + $0x16c] sm:$0xf] %v562
                  %v564 = vld [vmem:[%s378 + $0x2a8] sm:$0xf]
                  %565 = vst [vmem:[%s379 + $0x170] sm:$0xf] %v564
                  %v566 = vld [vmem:[%s378 + $0x2ac] sm:$0xf]
                  %567 = vst [vmem:[%s379 + $0x174] sm:$0xf] %v566
                  %v568 = vld [vmem:[%s378 + $0x2b0] sm:$0xf]
                  %569 = vst [vmem:[%s379 + $0x178] sm:$0xf] %v568
                  %v570 = vld [vmem:[%s378 + $0x2b4] sm:$0xf]
                  %571 = vst [vmem:[%s379 + $0x17c] sm:$0xf] %v570
                  %v572 = vld [vmem:[%s378 + $0x2b8] sm:$0xf]
                  %573 = vst [vmem:[%s379 + $0x180] sm:$0xf] %v572
                  %v574 = vld [vmem:[%s378 + $0x2bc] sm:$0xf]
                  %575 = vst [vmem:[%s379 + $0x184] sm:$0xf] %v574
                  %v576 = vld [vmem:[%s378 + $0x2c0] sm:$0xf]
                  %577 = vst [vmem:[%s379 + $0x188] sm:$0xf] %v576
                  %v578 = vld [vmem:[%s378 + $0x2c4] sm:$0xf]
                  %579 = vst [vmem:[%s379 + $0x18c] sm:$0xf] %v578
                  %v580 = vld [vmem:[%s378 + $0x2c8] sm:$0xf]
                  %581 = vst [vmem:[%s379 + $0x190] sm:$0xf] %v580
                  %v582 = vld [vmem:[%s378 + $0x2cc] sm:$0xf]
                  %583 = vst [vmem:[%s379 + $0x194] sm:$0xf] %v582
                  %v584 = vld [vmem:[%s378 + $0x2d0] sm:$0xf]
                  %585 = vst [vmem:[%s379 + $0x198] sm:$0xf] %v584
                  %v586 = vld [vmem:[%s378 + $0x2d4] sm:$0xf]
                  %587 = vst [vmem:[%s379 + $0x19c] sm:$0xf] %v586
                $region63: #{lenet5_forward.3} parent=50 // loop_footer
                  %s377 = sadd.s32 1, %s373
                $region64: #{lenet5_forward.3} parent=50 // loop_footer_branch
                  %372 = sbr.rel target = $region60
                $region65: #{lenet5_forward.3} parent=50 // loop_exit
                  _
              $region51: #{lenet5_forward.3} parent=35 // pred_fallthru
                _
            $region36: #{lenet5_forward.3} parent=31 // pred_fallthru
              _
            // Predicated region
            $region37: #{lenet5_forward.3} parent=31 // pred_check
              _
            $region38: #{lenet5_forward.3} parent=31 // pred_check_branch
              %143 = sbr.rel (0) target = $region40
            $region39: #{lenet5_forward.3} parent=31 // pred_region
              loop: start=0, step=1, limit=1
              $region41: #{lenet5_forward.3} parent=39 // loop_pre_header
                _
              $region42: #{lenet5_forward.3} parent=39 // loop_header
                %s146 = sphi 0, %s150
                %p147 = scmp.ge.s32.totalorder %s146, 1
                %s151 = sphi %s137, %s137
                %s152 = sphi %s134, %s134
              $region43: #{lenet5_forward.3} parent=39 // loop_header_branch
                %149 = sbr.rel (%p147) target = $region47
              $region44: #{lenet5_forward.3} parent=39 // loop_body
                %v153 = vld [vmem:[%s151] sm:$0xf]
                %154 = vst [vmem:[%s152] sm:$0xf] %v153
                %v155 = vld [vmem:[%s151 + $0x4] sm:$0xf]
                %156 = vst [vmem:[%s152 + $0x4] sm:$0xf] %v155
                %v157 = vld [vmem:[%s151 + $0x8] sm:$0xf]
                %158 = vst [vmem:[%s152 + $0x8] sm:$0xf] %v157
                %v159 = vld [vmem:[%s151 + $0xc] sm:$0xf]
                %160 = vst [vmem:[%s152 + $0xc] sm:$0xf] %v159
                %v161 = vld [vmem:[%s151 + $0x10] sm:$0xf]
                %162 = vst [vmem:[%s152 + $0x10] sm:$0xf] %v161
                %v163 = vld [vmem:[%s151 + $0x14] sm:$0xf]
                %164 = vst [vmem:[%s152 + $0x14] sm:$0xf] %v163
                %v165 = vld [vmem:[%s151 + $0x18] sm:$0xf]
                %166 = vst [vmem:[%s152 + $0x18] sm:$0xf] %v165
                %v167 = vld [vmem:[%s151 + $0x1c] sm:$0xf]
                %168 = vst [vmem:[%s152 + $0x1c] sm:$0xf] %v167
                %v169 = vld [vmem:[%s151 + $0x20] sm:$0xf]
                %170 = vst [vmem:[%s152 + $0x20] sm:$0xf] %v169
                %v171 = vld [vmem:[%s151 + $0x24] sm:$0xf]
                %172 = vst [vmem:[%s152 + $0x24] sm:$0xf] %v171
                %v173 = vld [vmem:[%s151 + $0x28] sm:$0xf]
                %174 = vst [vmem:[%s152 + $0x28] sm:$0xf] %v173
                %v175 = vld [vmem:[%s151 + $0x2c] sm:$0xf]
                %176 = vst [vmem:[%s152 + $0x2c] sm:$0xf] %v175
                %v177 = vld [vmem:[%s151 + $0x30] sm:$0xf]
                %178 = vst [vmem:[%s152 + $0x30] sm:$0xf] %v177
                %v179 = vld [vmem:[%s151 + $0x34] sm:$0xf]
                %180 = vst [vmem:[%s152 + $0x34] sm:$0xf] %v179
                %v181 = vld [vmem:[%s151 + $0x38] sm:$0xf]
                %182 = vst [vmem:[%s152 + $0x38] sm:$0xf] %v181
                %v183 = vld [vmem:[%s151 + $0x3c] sm:$0xf]
                %184 = vst [vmem:[%s152 + $0x3c] sm:$0xf] %v183
                %v185 = vld [vmem:[%s151 + $0x40] sm:$0xf]
                %186 = vst [vmem:[%s152 + $0x40] sm:$0xf] %v185
                %v187 = vld [vmem:[%s151 + $0x44] sm:$0xf]
                %188 = vst [vmem:[%s152 + $0x44] sm:$0xf] %v187
                %v189 = vld [vmem:[%s151 + $0x48] sm:$0xf]
                %190 = vst [vmem:[%s152 + $0x48] sm:$0xf] %v189
                %v191 = vld [vmem:[%s151 + $0x4c] sm:$0xf]
                %192 = vst [vmem:[%s152 + $0x4c] sm:$0xf] %v191
                %v193 = vld [vmem:[%s151 + $0x50] sm:$0xf]
                %194 = vst [vmem:[%s152 + $0x50] sm:$0xf] %v193
                %v195 = vld [vmem:[%s151 + $0x54] sm:$0xf]
                %196 = vst [vmem:[%s152 + $0x54] sm:$0xf] %v195
                %v197 = vld [vmem:[%s151 + $0x58] sm:$0xf]
                %198 = vst [vmem:[%s152 + $0x58] sm:$0xf] %v197
                %v199 = vld [vmem:[%s151 + $0x5c] sm:$0xf]
                %200 = vst [vmem:[%s152 + $0x5c] sm:$0xf] %v199
                %v201 = vld [vmem:[%s151 + $0x60] sm:$0xf]
                %202 = vst [vmem:[%s152 + $0x60] sm:$0xf] %v201
                %v203 = vld [vmem:[%s151 + $0x64] sm:$0xf]
                %204 = vst [vmem:[%s152 + $0x64] sm:$0xf] %v203
                %v205 = vld [vmem:[%s151 + $0xd0] sm:$0xf]
                %206 = vst [vmem:[%s152 + $0x68] sm:$0xf] %v205
                %v207 = vld [vmem:[%s151 + $0xd4] sm:$0xf]
                %208 = vst [vmem:[%s152 + $0x6c] sm:$0xf] %v207
                %v209 = vld [vmem:[%s151 + $0xd8] sm:$0xf]
                %210 = vst [vmem:[%s152 + $0x70] sm:$0xf] %v209
                %v211 = vld [vmem:[%s151 + $0xdc] sm:$0xf]
                %212 = vst [vmem:[%s152 + $0x74] sm:$0xf] %v211
                %v213 = vld [vmem:[%s151 + $0xe0] sm:$0xf]
                %214 = vst [vmem:[%s152 + $0x78] sm:$0xf] %v213
                %v215 = vld [vmem:[%s151 + $0xe4] sm:$0xf]
                %216 = vst [vmem:[%s152 + $0x7c] sm:$0xf] %v215
                %v217 = vld [vmem:[%s151 + $0xe8] sm:$0xf]
                %218 = vst [vmem:[%s152 + $0x80] sm:$0xf] %v217
                %v219 = vld [vmem:[%s151 + $0xec] sm:$0xf]
                %220 = vst [vmem:[%s152 + $0x84] sm:$0xf] %v219
                %v221 = vld [vmem:[%s151 + $0xf0] sm:$0xf]
                %222 = vst [vmem:[%s152 + $0x88] sm:$0xf] %v221
                %v223 = vld [vmem:[%s151 + $0xf4] sm:$0xf]
                %224 = vst [vmem:[%s152 + $0x8c] sm:$0xf] %v223
                %v225 = vld [vmem:[%s151 + $0xf8] sm:$0xf]
                %226 = vst [vmem:[%s152 + $0x90] sm:$0xf] %v225
                %v227 = vld [vmem:[%s151 + $0xfc] sm:$0xf]
                %228 = vst [vmem:[%s152 + $0x94] sm:$0xf] %v227
                %v229 = vld [vmem:[%s151 + $0x100] sm:$0xf]
                %230 = vst [vmem:[%s152 + $0x98] sm:$0xf] %v229
                %v231 = vld [vmem:[%s151 + $0x104] sm:$0xf]
                %232 = vst [vmem:[%s152 + $0x9c] sm:$0xf] %v231
                %v233 = vld [vmem:[%s151 + $0x108] sm:$0xf]
                %234 = vst [vmem:[%s152 + $0xa0] sm:$0xf] %v233
                %v235 = vld [vmem:[%s151 + $0x10c] sm:$0xf]
                %236 = vst [vmem:[%s152 + $0xa4] sm:$0xf] %v235
                %v237 = vld [vmem:[%s151 + $0x110] sm:$0xf]
                %238 = vst [vmem:[%s152 + $0xa8] sm:$0xf] %v237
                %v239 = vld [vmem:[%s151 + $0x114] sm:$0xf]
                %240 = vst [vmem:[%s152 + $0xac] sm:$0xf] %v239
                %v241 = vld [vmem:[%s151 + $0x118] sm:$0xf]
                %242 = vst [vmem:[%s152 + $0xb0] sm:$0xf] %v241
                %v243 = vld [vmem:[%s151 + $0x11c] sm:$0xf]
                %244 = vst [vmem:[%s152 + $0xb4] sm:$0xf] %v243
                %v245 = vld [vmem:[%s151 + $0x120] sm:$0xf]
                %246 = vst [vmem:[%s152 + $0xb8] sm:$0xf] %v245
                %v247 = vld [vmem:[%s151 + $0x124] sm:$0xf]
                %248 = vst [vmem:[%s152 + $0xbc] sm:$0xf] %v247
                %v249 = vld [vmem:[%s151 + $0x128] sm:$0xf]
                %250 = vst [vmem:[%s152 + $0xc0] sm:$0xf] %v249
                %v251 = vld [vmem:[%s151 + $0x12c] sm:$0xf]
                %252 = vst [vmem:[%s152 + $0xc4] sm:$0xf] %v251
                %v253 = vld [vmem:[%s151 + $0x130] sm:$0xf]
                %254 = vst [vmem:[%s152 + $0xc8] sm:$0xf] %v253
                %v255 = vld [vmem:[%s151 + $0x134] sm:$0xf]
                %256 = vst [vmem:[%s152 + $0xcc] sm:$0xf] %v255
                %v257 = vld [vmem:[%s151 + $0x1a0] sm:$0xf]
                %258 = vst [vmem:[%s152 + $0xd0] sm:$0xf] %v257
                %v259 = vld [vmem:[%s151 + $0x1a4] sm:$0xf]
                %260 = vst [vmem:[%s152 + $0xd4] sm:$0xf] %v259
                %v261 = vld [vmem:[%s151 + $0x1a8] sm:$0xf]
                %262 = vst [vmem:[%s152 + $0xd8] sm:$0xf] %v261
                %v263 = vld [vmem:[%s151 + $0x1ac] sm:$0xf]
                %264 = vst [vmem:[%s152 + $0xdc] sm:$0xf] %v263
                %v265 = vld [vmem:[%s151 + $0x1b0] sm:$0xf]
                %266 = vst [vmem:[%s152 + $0xe0] sm:$0xf] %v265
                %v267 = vld [vmem:[%s151 + $0x1b4] sm:$0xf]
                %268 = vst [vmem:[%s152 + $0xe4] sm:$0xf] %v267
                %v269 = vld [vmem:[%s151 + $0x1b8] sm:$0xf]
                %270 = vst [vmem:[%s152 + $0xe8] sm:$0xf] %v269
                %v271 = vld [vmem:[%s151 + $0x1bc] sm:$0xf]
                %272 = vst [vmem:[%s152 + $0xec] sm:$0xf] %v271
                %v273 = vld [vmem:[%s151 + $0x1c0] sm:$0xf]
                %274 = vst [vmem:[%s152 + $0xf0] sm:$0xf] %v273
                %v275 = vld [vmem:[%s151 + $0x1c4] sm:$0xf]
                %276 = vst [vmem:[%s152 + $0xf4] sm:$0xf] %v275
                %v277 = vld [vmem:[%s151 + $0x1c8] sm:$0xf]
                %278 = vst [vmem:[%s152 + $0xf8] sm:$0xf] %v277
                %v279 = vld [vmem:[%s151 + $0x1cc] sm:$0xf]
                %280 = vst [vmem:[%s152 + $0xfc] sm:$0xf] %v279
                %v281 = vld [vmem:[%s151 + $0x1d0] sm:$0xf]
                %282 = vst [vmem:[%s152 + $0x100] sm:$0xf] %v281
                %v283 = vld [vmem:[%s151 + $0x1d4] sm:$0xf]
                %284 = vst [vmem:[%s152 + $0x104] sm:$0xf] %v283
                %v285 = vld [vmem:[%s151 + $0x1d8] sm:$0xf]
                %286 = vst [vmem:[%s152 + $0x108] sm:$0xf] %v285
                %v287 = vld [vmem:[%s151 + $0x1dc] sm:$0xf]
                %288 = vst [vmem:[%s152 + $0x10c] sm:$0xf] %v287
                %v289 = vld [vmem:[%s151 + $0x1e0] sm:$0xf]
                %290 = vst [vmem:[%s152 + $0x110] sm:$0xf] %v289
                %v291 = vld [vmem:[%s151 + $0x1e4] sm:$0xf]
                %292 = vst [vmem:[%s152 + $0x114] sm:$0xf] %v291
                %v293 = vld [vmem:[%s151 + $0x1e8] sm:$0xf]
                %294 = vst [vmem:[%s152 + $0x118] sm:$0xf] %v293
                %v295 = vld [vmem:[%s151 + $0x1ec] sm:$0xf]
                %296 = vst [vmem:[%s152 + $0x11c] sm:$0xf] %v295
                %v297 = vld [vmem:[%s151 + $0x1f0] sm:$0xf]
                %298 = vst [vmem:[%s152 + $0x120] sm:$0xf] %v297
                %v299 = vld [vmem:[%s151 + $0x1f4] sm:$0xf]
                %300 = vst [vmem:[%s152 + $0x124] sm:$0xf] %v299
                %v301 = vld [vmem:[%s151 + $0x1f8] sm:$0xf]
                %302 = vst [vmem:[%s152 + $0x128] sm:$0xf] %v301
                %v303 = vld [vmem:[%s151 + $0x1fc] sm:$0xf]
                %304 = vst [vmem:[%s152 + $0x12c] sm:$0xf] %v303
                %v305 = vld [vmem:[%s151 + $0x200] sm:$0xf]
                %306 = vst [vmem:[%s152 + $0x130] sm:$0xf] %v305
                %v307 = vld [vmem:[%s151 + $0x204] sm:$0xf]
                %308 = vst [vmem:[%s152 + $0x134] sm:$0xf] %v307
                %v309 = vld [vmem:[%s151 + $0x270] sm:$0xf]
                %310 = vst [vmem:[%s152 + $0x138] sm:$0xf] %v309
                %v311 = vld [vmem:[%s151 + $0x274] sm:$0xf]
                %312 = vst [vmem:[%s152 + $0x13c] sm:$0xf] %v311
                %v313 = vld [vmem:[%s151 + $0x278] sm:$0xf]
                %314 = vst [vmem:[%s152 + $0x140] sm:$0xf] %v313
                %v315 = vld [vmem:[%s151 + $0x27c] sm:$0xf]
                %316 = vst [vmem:[%s152 + $0x144] sm:$0xf] %v315
                %v317 = vld [vmem:[%s151 + $0x280] sm:$0xf]
                %318 = vst [vmem:[%s152 + $0x148] sm:$0xf] %v317
                %v319 = vld [vmem:[%s151 + $0x284] sm:$0xf]
                %320 = vst [vmem:[%s152 + $0x14c] sm:$0xf] %v319
                %v321 = vld [vmem:[%s151 + $0x288] sm:$0xf]
                %322 = vst [vmem:[%s152 + $0x150] sm:$0xf] %v321
                %v323 = vld [vmem:[%s151 + $0x28c] sm:$0xf]
                %324 = vst [vmem:[%s152 + $0x154] sm:$0xf] %v323
                %v325 = vld [vmem:[%s151 + $0x290] sm:$0xf]
                %326 = vst [vmem:[%s152 + $0x158] sm:$0xf] %v325
                %v327 = vld [vmem:[%s151 + $0x294] sm:$0xf]
                %328 = vst [vmem:[%s152 + $0x15c] sm:$0xf] %v327
                %v329 = vld [vmem:[%s151 + $0x298] sm:$0xf]
                %330 = vst [vmem:[%s152 + $0x160] sm:$0xf] %v329
                %v331 = vld [vmem:[%s151 + $0x29c] sm:$0xf]
                %332 = vst [vmem:[%s152 + $0x164] sm:$0xf] %v331
                %v333 = vld [vmem:[%s151 + $0x2a0] sm:$0xf]
                %334 = vst [vmem:[%s152 + $0x168] sm:$0xf] %v333
                %v335 = vld [vmem:[%s151 + $0x2a4] sm:$0xf]
                %336 = vst [vmem:[%s152 + $0x16c] sm:$0xf] %v335
                %v337 = vld [vmem:[%s151 + $0x2a8] sm:$0xf]
                %338 = vst [vmem:[%s152 + $0x170] sm:$0xf] %v337
                %v339 = vld [vmem:[%s151 + $0x2ac] sm:$0xf]
                %340 = vst [vmem:[%s152 + $0x174] sm:$0xf] %v339
                %v341 = vld [vmem:[%s151 + $0x2b0] sm:$0xf]
                %342 = vst [vmem:[%s152 + $0x178] sm:$0xf] %v341
                %v343 = vld [vmem:[%s151 + $0x2b4] sm:$0xf]
                %344 = vst [vmem:[%s152 + $0x17c] sm:$0xf] %v343
                %v345 = vld [vmem:[%s151 + $0x2b8] sm:$0xf]
                %346 = vst [vmem:[%s152 + $0x180] sm:$0xf] %v345
                %v347 = vld [vmem:[%s151 + $0x2bc] sm:$0xf]
                %348 = vst [vmem:[%s152 + $0x184] sm:$0xf] %v347
                %v349 = vld [vmem:[%s151 + $0x2c0] sm:$0xf]
                %350 = vst [vmem:[%s152 + $0x188] sm:$0xf] %v349
                %v351 = vld [vmem:[%s151 + $0x2c4] sm:$0xf]
                %352 = vst [vmem:[%s152 + $0x18c] sm:$0xf] %v351
                %v353 = vld [vmem:[%s151 + $0x2c8] sm:$0xf]
                %354 = vst [vmem:[%s152 + $0x190] sm:$0xf] %v353
                %v355 = vld [vmem:[%s151 + $0x2cc] sm:$0xf]
                %356 = vst [vmem:[%s152 + $0x194] sm:$0xf] %v355
                %v357 = vld [vmem:[%s151 + $0x2d0] sm:$0xf]
                %358 = vst [vmem:[%s152 + $0x198] sm:$0xf] %v357
                %v359 = vld [vmem:[%s151 + $0x2d4] sm:$0xf]
                %360 = vst [vmem:[%s152 + $0x19c] sm:$0xf] %v359
              $region45: #{lenet5_forward.3} parent=39 // loop_footer
                %s150 = sadd.s32 1, %s146
              $region46: #{lenet5_forward.3} parent=39 // loop_footer_branch
                %145 = sbr.rel target = $region42
              $region47: #{lenet5_forward.3} parent=39 // loop_exit
                _
            $region40: #{lenet5_forward.3} parent=31 // pred_fallthru
              _
          $region32: #{lenet5_forward.3} parent=27 // pred_fallthru
            _
          %588 = vnop
        $region28: #{lenet5_forward.3} parent=23 // pred_fallthru
          _
      $region24: #{lenet5_forward.3} parent=5 // pred_fallthru
        _
      %p589 = scmp.le.s32.totalorder 1, %s9
      %p590 = scmp.lt.s32.totalorder %s9, 3
      %p591 = pnand %p589, %p590
      %p592 = pneg %p591
      // Predicated region
      $region66: #{lenet5_forward.3} parent=5 // pred_check
        _
      $region67: #{lenet5_forward.3} parent=5 // pred_check_branch
        %594 = sbr.rel (%p591) target = $region69
      $region68: #{lenet5_forward.3} parent=5 // pred_region
        %s595 = ssub.s32 %s9, 1
        %s596 = sand.u32 %s22, 1
        %s597 = sand.u32 %s22, 1
        %s598 = smul.addr %s597, 416
        %s599 = scalar_lea.vmem [#allocation2], %s598
        // Predicated region
        $region70: #{lenet5_forward.3} parent=68 // pred_check
          %p600 = pneg %p35
        $region71: #{lenet5_forward.3} parent=68 // pred_check_branch
          %602 = sbr.rel (%p600) target = $region73
        $region72: #{lenet5_forward.3} parent=68 // pred_region
          _
        $region73: #{lenet5_forward.3} parent=68 // pred_fallthru
          _
        %s603 = sand.u32 %s22, 1
        %s604 = sand.u32 %s22, 1
        %s605 = smul.addr %s604, 416
        %s606 = scalar_lea.vmem [#allocation2], %s605
        %p607 = pneg %p35
        %p608 = pneg %p32
        %p609 = pneg %p56
        %p610 = pneg %p53
        %p611 = pneg %p77
        %p612 = pneg %p74
        %p613 = pneg %p103
        %p614 = pneg %p100
        %s615 = smul.u32 26, %s14
        %p616 = scmp.lt.s32.totalorder %s615, 51
        %s617 = scalar_select %p616, %s615, 51
        %s618 = smul.addr %s617, 4
        %s619 = scalar_lea.vmem %s3, %s618
        %s620 = smul.u32 26, %s14
        %s621 = smul.u32 26, %s14
        %p622 = scmp.lt.s32.totalorder %s621, 51
        %s623 = scalar_select %p622, %s621, 51
        %s624 = smul.addr %s623, 4
        %s625 = scalar_lea.vmem %s3, %s624
        %s626 = smul.u32 26, %s14
        %v628 = vld [vmem:[%s599] sm:$0xf]
        %v629 = vld [vmem:[%s599 + $0x4] sm:$0xf]
        %v630 = vld [vmem:[%s599 + $0x8] sm:$0xf]
        %v631 = vld [vmem:[%s599 + $0xc] sm:$0xf]
        %v632 = vld [vmem:[%s599 + $0x10] sm:$0xf]
        %v633 = vld [vmem:[%s599 + $0x14] sm:$0xf]
        %v634 = vld [vmem:[%s599 + $0x18] sm:$0xf]
        %v635 = vld [vmem:[%s599 + $0x1c] sm:$0xf]
        %v636 = vld [vmem:[%s599 + $0x20] sm:$0xf]
        %v637 = vld [vmem:[%s599 + $0x24] sm:$0xf]
        %v638 = vld [vmem:[%s599 + $0x28] sm:$0xf]
        %v639 = vld [vmem:[%s599 + $0x2c] sm:$0xf]
        %v640 = vld [vmem:[%s599 + $0x30] sm:$0xf]
        %v641 = vld [vmem:[%s599 + $0x34] sm:$0xf]
        %v642 = vld [vmem:[%s599 + $0x38] sm:$0xf]
        %v643 = vld [vmem:[%s599 + $0x3c] sm:$0xf]
        %v644 = vld [vmem:[%s599 + $0x40] sm:$0xf]
        %v645 = vld [vmem:[%s599 + $0x44] sm:$0xf]
        %v646 = vld [vmem:[%s599 + $0x48] sm:$0xf]
        %v647 = vld [vmem:[%s599 + $0x4c] sm:$0xf]
        %v648 = vld [vmem:[%s599 + $0x50] sm:$0xf]
        %v649 = vld [vmem:[%s599 + $0x54] sm:$0xf]
        %v650 = vld [vmem:[%s599 + $0x58] sm:$0xf]
        %v651 = vld [vmem:[%s599 + $0x5c] sm:$0xf]
        %v652 = vld [vmem:[%s599 + $0x60] sm:$0xf]
        %v653 = vld [vmem:[%s599 + $0x64] sm:$0xf]
        %v654 = vld [vmem:[%s599 + $0x68] sm:$0xf]
        %v655 = vld [vmem:[%s599 + $0x6c] sm:$0xf]
        %v656 = vld [vmem:[%s599 + $0x70] sm:$0xf]
        %v657 = vld [vmem:[%s599 + $0x74] sm:$0xf]
        %v658 = vld [vmem:[%s599 + $0x78] sm:$0xf]
        %v659 = vld [vmem:[%s599 + $0x7c] sm:$0xf]
        %v660 = vld [vmem:[%s599 + $0x80] sm:$0xf]
        %v661 = vld [vmem:[%s599 + $0x84] sm:$0xf]
        %v662 = vld [vmem:[%s599 + $0x88] sm:$0xf]
        %v663 = vld [vmem:[%s599 + $0x8c] sm:$0xf]
        %v664 = vld [vmem:[%s599 + $0x90] sm:$0xf]
        %v665 = vld [vmem:[%s599 + $0x94] sm:$0xf]
        %v666 = vld [vmem:[%s599 + $0x98] sm:$0xf]
        %v667 = vld [vmem:[%s599 + $0x9c] sm:$0xf]
        %v668 = vld [vmem:[%s599 + $0xa0] sm:$0xf]
        %v669 = vld [vmem:[%s599 + $0xa4] sm:$0xf]
        %v670 = vld [vmem:[%s599 + $0xa8] sm:$0xf]
        %v671 = vld [vmem:[%s599 + $0xac] sm:$0xf]
        %v672 = vld [vmem:[%s599 + $0xb0] sm:$0xf]
        %v673 = vld [vmem:[%s599 + $0xb4] sm:$0xf]
        %v674 = vld [vmem:[%s599 + $0xb8] sm:$0xf]
        %v675 = vld [vmem:[%s599 + $0xbc] sm:$0xf]
        %v676 = vld [vmem:[%s599 + $0xc0] sm:$0xf]
        %v677 = vld [vmem:[%s599 + $0xc4] sm:$0xf]
        %v678 = vld [vmem:[%s599 + $0xc8] sm:$0xf]
        %v679 = vld [vmem:[%s599 + $0xcc] sm:$0xf]
        %v680 = vld [vmem:[%s599 + $0xd0] sm:$0xf]
        %v681 = vld [vmem:[%s599 + $0xd4] sm:$0xf]
        %v682 = vld [vmem:[%s599 + $0xd8] sm:$0xf]
        %v683 = vld [vmem:[%s599 + $0xdc] sm:$0xf]
        %v684 = vld [vmem:[%s599 + $0xe0] sm:$0xf]
        %v685 = vld [vmem:[%s599 + $0xe4] sm:$0xf]
        %v686 = vld [vmem:[%s599 + $0xe8] sm:$0xf]
        %v687 = vld [vmem:[%s599 + $0xec] sm:$0xf]
        %v688 = vld [vmem:[%s599 + $0xf0] sm:$0xf]
        %v689 = vld [vmem:[%s599 + $0xf4] sm:$0xf]
        %v690 = vld [vmem:[%s599 + $0xf8] sm:$0xf]
        %v691 = vld [vmem:[%s599 + $0xfc] sm:$0xf]
        %v692 = vld [vmem:[%s599 + $0x100] sm:$0xf]
        %v693 = vld [vmem:[%s599 + $0x104] sm:$0xf]
        %v694 = vld [vmem:[%s599 + $0x108] sm:$0xf]
        %v695 = vld [vmem:[%s599 + $0x10c] sm:$0xf]
        %v696 = vld [vmem:[%s599 + $0x110] sm:$0xf]
        %v697 = vld [vmem:[%s599 + $0x114] sm:$0xf]
        %v698 = vld [vmem:[%s599 + $0x118] sm:$0xf]
        %v699 = vld [vmem:[%s599 + $0x11c] sm:$0xf]
        %v700 = vld [vmem:[%s599 + $0x120] sm:$0xf]
        %v701 = vld [vmem:[%s599 + $0x124] sm:$0xf]
        %v702 = vld [vmem:[%s599 + $0x128] sm:$0xf]
        %v703 = vld [vmem:[%s599 + $0x12c] sm:$0xf]
        %v704 = vld [vmem:[%s599 + $0x130] sm:$0xf]
        %v705 = vld [vmem:[%s599 + $0x134] sm:$0xf]
        %v706 = vld [vmem:[%s599 + $0x138] sm:$0xf]
        %v707 = vld [vmem:[%s599 + $0x13c] sm:$0xf]
        %v708 = vld [vmem:[%s599 + $0x140] sm:$0xf]
        %v709 = vld [vmem:[%s599 + $0x144] sm:$0xf]
        %v710 = vld [vmem:[%s599 + $0x148] sm:$0xf]
        %v711 = vld [vmem:[%s599 + $0x14c] sm:$0xf]
        %v712 = vld [vmem:[%s599 + $0x150] sm:$0xf]
        %v713 = vld [vmem:[%s599 + $0x154] sm:$0xf]
        %v714 = vld [vmem:[%s599 + $0x158] sm:$0xf]
        %v715 = vld [vmem:[%s599 + $0x15c] sm:$0xf]
        %v716 = vld [vmem:[%s599 + $0x160] sm:$0xf]
        %v717 = vld [vmem:[%s599 + $0x164] sm:$0xf]
        %v718 = vld [vmem:[%s599 + $0x168] sm:$0xf]
        %v719 = vld [vmem:[%s599 + $0x16c] sm:$0xf]
        %v720 = vld [vmem:[%s599 + $0x170] sm:$0xf]
        %v721 = vld [vmem:[%s599 + $0x174] sm:$0xf]
        %v722 = vld [vmem:[%s599 + $0x178] sm:$0xf]
        %v723 = vld [vmem:[%s599 + $0x17c] sm:$0xf]
        %v724 = vld [vmem:[%s599 + $0x180] sm:$0xf]
        %v725 = vld [vmem:[%s599 + $0x184] sm:$0xf]
        %v726 = vld [vmem:[%s599 + $0x188] sm:$0xf]
        %v727 = vld [vmem:[%s599 + $0x18c] sm:$0xf]
        %v728 = vld [vmem:[%s599 + $0x190] sm:$0xf]
        %v729 = vld [vmem:[%s599 + $0x194] sm:$0xf]
        %v730 = vld [vmem:[%s599 + $0x198] sm:$0xf]
        %v731 = vld [vmem:[%s599 + $0x19c] sm:$0xf]
        %v732 = vld [vmem:[%s1] sm:$0xf]
        %v733 = vld [vmem:[%s1 + $0x4] sm:$0xf]
        %v734 = vld [vmem:[%s1 + $0x8] sm:$0xf]
        %v735 = vld [vmem:[%s1 + $0xc] sm:$0xf]
        %v840 = vunpack.c.l.b16 %v628
        %v841 = vunpack.c.l.b16 %v629
        %v842 = vunpack.c.l.b16 %v630
        %v843 = vunpack.c.l.b16 %v631
        %v844 = vunpack.c.l.b16 %v632
        %v845 = vunpack.c.l.b16 %v633
        %v846 = vunpack.c.l.b16 %v634
        %v847 = vunpack.c.l.b16 %v635
        %v848 = vunpack.c.l.b16 %v636
        %v849 = vunpack.c.l.b16 %v637
        %v850 = vunpack.c.l.b16 %v638
        %v851 = vunpack.c.l.b16 %v639
        %v852 = vunpack.c.l.b16 %v640
        %v853 = vunpack.c.l.b16 %v641
        %v854 = vunpack.c.l.b16 %v642
        %v855 = vunpack.c.l.b16 %v643
        %v856 = vunpack.c.l.b16 %v644
        %v857 = vunpack.c.l.b16 %v645
        %v858 = vunpack.c.l.b16 %v646
        %v859 = vunpack.c.l.b16 %v647
        %v860 = vunpack.c.l.b16 %v648
        %v861 = vunpack.c.l.b16 %v649
        %v862 = vunpack.c.l.b16 %v650
        %v863 = vunpack.c.l.b16 %v651
        %v864 = vunpack.c.l.b16 %v652
        %v865 = vunpack.c.l.b16 %v653
        %v866 = vunpack.c.l.b16 %v654
        %v867 = vunpack.c.l.b16 %v655
        %v868 = vunpack.c.l.b16 %v656
        %v869 = vunpack.c.l.b16 %v657
        %v870 = vunpack.c.l.b16 %v658
        %v871 = vunpack.c.l.b16 %v659
        %v872 = vunpack.c.l.b16 %v660
        %v873 = vunpack.c.l.b16 %v661
        %v874 = vunpack.c.l.b16 %v662
        %v875 = vunpack.c.l.b16 %v663
        %v876 = vunpack.c.l.b16 %v664
        %v877 = vunpack.c.l.b16 %v665
        %v878 = vunpack.c.l.b16 %v666
        %v879 = vunpack.c.l.b16 %v667
        %v880 = vunpack.c.l.b16 %v668
        %v881 = vunpack.c.l.b16 %v669
        %v882 = vunpack.c.l.b16 %v670
        %v883 = vunpack.c.l.b16 %v671
        %v884 = vunpack.c.l.b16 %v672
        %v885 = vunpack.c.l.b16 %v673
        %v886 = vunpack.c.l.b16 %v674
        %v887 = vunpack.c.l.b16 %v675
        %v888 = vunpack.c.l.b16 %v676
        %v889 = vunpack.c.l.b16 %v677
        %v890 = vunpack.c.l.b16 %v678
        %v891 = vunpack.c.l.b16 %v679
        %v892 = vunpack.c.l.b16 %v680
        %v893 = vunpack.c.l.b16 %v681
        %v894 = vunpack.c.l.b16 %v682
        %v895 = vunpack.c.l.b16 %v683
        %v896 = vunpack.c.l.b16 %v684
        %v897 = vunpack.c.l.b16 %v685
        %v898 = vunpack.c.l.b16 %v686
        %v899 = vunpack.c.l.b16 %v687
        %v900 = vunpack.c.l.b16 %v688
        %v901 = vunpack.c.l.b16 %v689
        %v902 = vunpack.c.l.b16 %v690
        %v903 = vunpack.c.l.b16 %v691
        %v904 = vunpack.c.l.b16 %v692
        %v905 = vunpack.c.l.b16 %v693
        %v906 = vunpack.c.l.b16 %v694
        %v907 = vunpack.c.l.b16 %v695
        %v908 = vunpack.c.l.b16 %v696
        %v909 = vunpack.c.l.b16 %v697
        %v910 = vunpack.c.l.b16 %v698
        %v911 = vunpack.c.l.b16 %v699
        %v912 = vunpack.c.l.b16 %v700
        %v913 = vunpack.c.l.b16 %v701
        %v914 = vunpack.c.l.b16 %v702
        %v915 = vunpack.c.l.b16 %v703
        %v916 = vunpack.c.l.b16 %v704
        %v917 = vunpack.c.l.b16 %v705
        %v918 = vunpack.c.l.b16 %v706
        %v919 = vunpack.c.l.b16 %v707
        %v920 = vunpack.c.l.b16 %v708
        %v921 = vunpack.c.l.b16 %v709
        %v922 = vunpack.c.l.b16 %v710
        %v923 = vunpack.c.l.b16 %v711
        %v924 = vunpack.c.l.b16 %v712
        %v925 = vunpack.c.l.b16 %v713
        %v926 = vunpack.c.l.b16 %v714
        %v927 = vunpack.c.l.b16 %v715
        %v928 = vunpack.c.l.b16 %v716
        %v929 = vunpack.c.l.b16 %v717
        %v930 = vunpack.c.l.b16 %v718
        %v931 = vunpack.c.l.b16 %v719
        %v932 = vunpack.c.l.b16 %v720
        %v933 = vunpack.c.l.b16 %v721
        %v934 = vunpack.c.l.b16 %v722
        %v935 = vunpack.c.l.b16 %v723
        %v936 = vunpack.c.l.b16 %v724
        %v937 = vunpack.c.l.b16 %v725
        %v938 = vunpack.c.l.b16 %v726
        %v939 = vunpack.c.l.b16 %v727
        %v940 = vunpack.c.l.b16 %v728
        %v941 = vunpack.c.l.b16 %v729
        %v942 = vunpack.c.l.b16 %v730
        %v943 = vunpack.c.l.b16 %v731
        %v944 = vpack.c.b16 %v841, %v840
        %v945 = vpack.c.b16 %v843, %v842
        %v946 = vpack.c.b16 %v845, %v844
        %v947 = vpack.c.b16 %v847, %v846
        %v948 = vpack.c.b16 %v849, %v848
        %v949 = vpack.c.b16 %v851, %v850
        %v950 = vpack.c.b16 %v853, %v852
        %v951 = vpack.c.b16 %v855, %v854
        %v952 = vpack.c.b16 %v857, %v856
        %v953 = vpack.c.b16 %v859, %v858
        %v954 = vpack.c.b16 %v861, %v860
        %v955 = vpack.c.b16 %v863, %v862
        %v956 = vpack.c.b16 %v865, %v864
        %v957 = vpack.c.b16 %v867, %v866
        %v958 = vpack.c.b16 %v869, %v868
        %v959 = vpack.c.b16 %v871, %v870
        %v960 = vpack.c.b16 %v873, %v872
        %v961 = vpack.c.b16 %v875, %v874
        %v962 = vpack.c.b16 %v877, %v876
        %v963 = vpack.c.b16 %v879, %v878
        %v964 = vpack.c.b16 %v881, %v880
        %v965 = vpack.c.b16 %v883, %v882
        %v966 = vpack.c.b16 %v885, %v884
        %v967 = vpack.c.b16 %v887, %v886
        %v968 = vpack.c.b16 %v889, %v888
        %v969 = vpack.c.b16 %v891, %v890
        %v970 = vpack.c.b16 %v893, %v892
        %v971 = vpack.c.b16 %v895, %v894
        %v972 = vpack.c.b16 %v897, %v896
        %v973 = vpack.c.b16 %v899, %v898
        %v974 = vpack.c.b16 %v901, %v900
        %v975 = vpack.c.b16 %v903, %v902
        %v976 = vpack.c.b16 %v905, %v904
        %v977 = vpack.c.b16 %v907, %v906
        %v978 = vpack.c.b16 %v909, %v908
        %v979 = vpack.c.b16 %v911, %v910
        %v980 = vpack.c.b16 %v913, %v912
        %v981 = vpack.c.b16 %v915, %v914
        %v982 = vpack.c.b16 %v917, %v916
        %v983 = vpack.c.b16 %v919, %v918
        %v984 = vpack.c.b16 %v921, %v920
        %v985 = vpack.c.b16 %v923, %v922
        %v986 = vpack.c.b16 %v925, %v924
        %v987 = vpack.c.b16 %v927, %v926
        %v988 = vpack.c.b16 %v929, %v928
        %v989 = vpack.c.b16 %v931, %v930
        %v990 = vpack.c.b16 %v933, %v932
        %v991 = vpack.c.b16 %v935, %v934
        %v992 = vpack.c.b16 %v937, %v936
        %v993 = vpack.c.b16 %v939, %v938
        %v994 = vpack.c.b16 %v941, %v940
        %v995 = vpack.c.b16 %v943, %v942
        %v1000 = vunpack.c.l.b16 %v732
        %v1001 = vunpack.c.l.b16 %v733
        %v1002 = vunpack.c.l.b16 %v734
        %v1003 = vunpack.c.l.b16 %v735
        %v1004 = vpack.c.b16 %v1001, %v1000
        %v1005 = vpack.c.b16 %v1003, %v1002
        %vm1008 = vcmask 261120
        %v1010 = vsel %vm1008, %v944, 0
        %v1013 = vsel %vm1008, %v945, 0
        %v1016 = vsel %vm1008, %v946, 0
        %v1019 = vsel %vm1008, %v947, 0
        %v1022 = vsel %vm1008, %v948, 0
        %v1025 = vsel %vm1008, %v949, 0
        %v1028 = vsel %vm1008, %v950, 0
        %v1031 = vsel %vm1008, %v951, 0
        %v1034 = vsel %vm1008, %v952, 0
        %v1037 = vsel %vm1008, %v953, 0
        %v1040 = vsel %vm1008, %v954, 0
        %v1043 = vsel %vm1008, %v955, 0
        %v1046 = vsel %vm1008, %v956, 0
        %v1049 = vsel %vm1008, %v957, 0
        %v1052 = vsel %vm1008, %v958, 0
        %v1055 = vsel %vm1008, %v959, 0
        %v1058 = vsel %vm1008, %v960, 0
        %v1061 = vsel %vm1008, %v961, 0
        %v1064 = vsel %vm1008, %v962, 0
        %v1067 = vsel %vm1008, %v963, 0
        %v1070 = vsel %vm1008, %v964, 0
        %v1073 = vsel %vm1008, %v965, 0
        %v1076 = vsel %vm1008, %v966, 0
        %v1079 = vsel %vm1008, %v967, 0
        %v1082 = vsel %vm1008, %v968, 0
        %v1085 = vsel %vm1008, %v969, 0
        %v1088 = vsel %vm1008, %v970, 0
        %v1091 = vsel %vm1008, %v971, 0
        %v1094 = vsel %vm1008, %v972, 0
        %v1097 = vsel %vm1008, %v973, 0
        %v1100 = vsel %vm1008, %v974, 0
        %v1103 = vsel %vm1008, %v975, 0
        %v1106 = vsel %vm1008, %v976, 0
        %v1109 = vsel %vm1008, %v977, 0
        %v1112 = vsel %vm1008, %v978, 0
        %v1115 = vsel %vm1008, %v979, 0
        %v1118 = vsel %vm1008, %v980, 0
        %v1121 = vsel %vm1008, %v981, 0
        %v1124 = vsel %vm1008, %v982, 0
        %v1127 = vsel %vm1008, %v983, 0
        %v1130 = vsel %vm1008, %v984, 0
        %v1133 = vsel %vm1008, %v985, 0
        %v1136 = vsel %vm1008, %v986, 0
        %v1139 = vsel %vm1008, %v987, 0
        %v1142 = vsel %vm1008, %v988, 0
        %v1145 = vsel %vm1008, %v989, 0
        %v1148 = vsel %vm1008, %v990, 0
        %v1151 = vsel %vm1008, %v991, 0
        %v1154 = vsel %vm1008, %v992, 0
        %v1157 = vsel %vm1008, %v993, 0
        %v1160 = vsel %vm1008, %v994, 0
        %v1163 = vsel %vm1008, %v995, 0
        %1165 = vmatprep.subr.bf16.mxu0 0
        %1166 = vmatpush1.bf16.msra.mxu0 %v1004
        %1167 = vmatprep.subr.bf16.mxu0 0
        %1168 = vmatpush1.bf16.msra.mxu0 %v1005
        %1169 = vmatprep.subr.bf16.mxu0 0
        %1170 = vmatpush1.bf16.msra.mxu0 0
        %1171 = vmatprep.subr.bf16.mxu0 0
        %1172 = vmatpush1.bf16.msra.mxu0 0
        %1173 = vmatprep.subr.bf16.mxu0 0
        %1174 = vmatpush1.bf16.msra.mxu0 0
        %1175 = vmatprep.subr.bf16.mxu0 0
        %1176 = vmatpush1.bf16.msra.mxu0 0
        %1177 = vmatprep.subr.bf16.mxu0 0
        %1178 = vmatpush1.bf16.msra.mxu0 0
        %1179 = vmatprep.subr.bf16.mxu0 0
        %1180 = vmatpush1.bf16.msra.mxu0 0
        %1181 = vmatprep.subr.bf16.mxu0 0
        %1182 = vmatpush1.bf16.msra.mxu0 0
        %1183 = vmatprep.subr.bf16.mxu0 0
        %1184 = vmatpush1.bf16.msra.mxu0 0
        %1185 = vmatprep.subr.bf16.mxu0 0
        %1186 = vmatpush1.bf16.msra.mxu0 0
        %1187 = vmatprep.subr.bf16.mxu0 0
        %1188 = vmatpush1.bf16.msra.mxu0 0
        %1189 = vmatprep.subr.bf16.mxu0 0
        %1190 = vmatpush1.bf16.msra.mxu0 0
        %1191 = vmatprep.subr.bf16.mxu0 0
        %1192 = vmatpush1.bf16.msra.mxu0 0
        %1193 = vmatprep.subr.bf16.mxu0 0
        %1194 = vmatpush1.bf16.msra.mxu0 0
        %1195 = vmatprep.subr.bf16.mxu0 0
        %1196 = vmatpush1.bf16.msra.mxu0 0
        %1197 = vmatprep.mubr.bf16.mxu0 0
        %1198 = vmatmul.mubr.bf16.gmra.mrb[0].mxu0 %v1010
        %v1199 = vpop.f32.mrb[0].mxu0
        %v1200 = vadd.f32 0.0, %v1199
        %v1201 = vpop.f32.mrb[0].mxu0
        %v1202 = vpop.f32.mrb[0].mxu0
        %v1203 = vadd.f32 0.0, %v1202
        %v1204 = vpop.f32.mrb[0].mxu0
        %1205 = vmatprep.mubr.bf16.mxu0 0
        %1206 = vmatmul.mubr.bf16.gmra.mrb[0].mxu0 %v1013
        %v1207 = vpop.f32.mrb[0].mxu0
        %v1208 = vadd.f32 0.0, %v1207
        %v1209 = vpop.f32.mrb[0].mxu0
        %v1210 = vpop.f32.mrb[0].mxu0
        %v1211 = vadd.f32 0.0, %v1210
        %v1212 = vpop.f32.mrb[0].mxu0
        %1213 = vmatprep.mubr.bf16.mxu0 0
        %1214 = vmatmul.mubr.bf16.gmra.mrb[0].mxu0 %v1016
        %v1215 = vpop.f32.mrb[0].mxu0
        %v1216 = vadd.f32 0.0, %v1215
        %v1217 = vpop.f32.mrb[0].mxu0
        %v1218 = vpop.f32.mrb[0].mxu0
        %v1219 = vadd.f32 0.0, %v1218
        %v1220 = vpop.f32.mrb[0].mxu0
        %1221 = vmatprep.mubr.bf16.mxu0 0
        %1222 = vmatmul.mubr.bf16.gmra.mrb[0].mxu0 %v1019
        %v1223 = vpop.f32.mrb[0].mxu0
        %v1224 = vadd.f32 0.0, %v1223
        %v1225 = vpop.f32.mrb[0].mxu0
        %v1226 = vpop.f32.mrb[0].mxu0
        %v1227 = vadd.f32 0.0, %v1226
        %v1228 = vpop.f32.mrb[0].mxu0
        %1229 = vmatprep.mubr.bf16.mxu0 0
        %1230 = vmatmul.mubr.bf16.gmra.mrb[0].mxu0 %v1022
        %v1231 = vpop.f32.mrb[0].mxu0
        %v1232 = vadd.f32 0.0, %v1231
        %v1233 = vpop.f32.mrb[0].mxu0
        %v1234 = vpop.f32.mrb[0].mxu0
        %v1235 = vadd.f32 0.0, %v1234
        %v1236 = vpop.f32.mrb[0].mxu0
        %1237 = vmatprep.mubr.bf16.mxu0 0
        %1238 = vmatmul.mubr.bf16.gmra.mrb[0].mxu0 %v1025
        %v1239 = vpop.f32.mrb[0].mxu0
        %v1240 = vadd.f32 0.0, %v1239
        %v1241 = vpop.f32.mrb[0].mxu0
        %v1242 = vpop.f32.mrb[0].mxu0
        %v1243 = vadd.f32 0.0, %v1242
        %v1244 = vpop.f32.mrb[0].mxu0
        %1245 = vmatprep.mubr.bf16.mxu0 0
        %1246 = vmatmul.mubr.bf16.gmra.mrb[0].mxu0 %v1028
        %v1247 = vpop.f32.mrb[0].mxu0
        %v1248 = vadd.f32 0.0, %v1247
        %v1249 = vpop.f32.mrb[0].mxu0
        %v1250 = vpop.f32.mrb[0].mxu0
        %v1251 = vadd.f32 0.0, %v1250
        %v1252 = vpop.f32.mrb[0].mxu0
        %1253 = vmatprep.mubr.bf16.mxu0 0
        %1254 = vmatmul.mubr.bf16.gmra.mrb[0].mxu0 %v1031
        %v1255 = vpop.f32.mrb[0].mxu0
        %v1256 = vadd.f32 0.0, %v1255
        %v1257 = vpop.f32.mrb[0].mxu0
        %v1258 = vpop.f32.mrb[0].mxu0
        %v1259 = vadd.f32 0.0, %v1258
        %v1260 = vpop.f32.mrb[0].mxu0
        %1261 = vmatprep.mubr.bf16.mxu0 0
        %1262 = vmatmul.mubr.bf16.gmra.mrb[0].mxu0 %v1034
        %v1263 = vpop.f32.mrb[0].mxu0
        %v1264 = vadd.f32 0.0, %v1263
        %v1265 = vpop.f32.mrb[0].mxu0
        %v1266 = vpop.f32.mrb[0].mxu0
        %v1267 = vadd.f32 0.0, %v1266
        %v1268 = vpop.f32.mrb[0].mxu0
        %1269 = vmatprep.mubr.bf16.mxu0 0
        %1270 = vmatmul.mubr.bf16.gmra.mrb[0].mxu0 %v1037
        %v1271 = vpop.f32.mrb[0].mxu0
        %v1272 = vadd.f32 0.0, %v1271
        %v1273 = vpop.f32.mrb[0].mxu0
        %v1274 = vpop.f32.mrb[0].mxu0
        %v1275 = vadd.f32 0.0, %v1274
        %v1276 = vpop.f32.mrb[0].mxu0
        %1277 = vmatprep.mubr.bf16.mxu0 0
        %1278 = vmatmul.mubr.bf16.gmra.mrb[0].mxu0 %v1040
        %v1279 = vpop.f32.mrb[0].mxu0
        %v1280 = vadd.f32 0.0, %v1279
        %v1281 = vpop.f32.mrb[0].mxu0
        %v1282 = vpop.f32.mrb[0].mxu0
        %v1283 = vadd.f32 0.0, %v1282
        %v1284 = vpop.f32.mrb[0].mxu0
        %1285 = vmatprep.mubr.bf16.mxu0 0
        %1286 = vmatmul.mubr.bf16.gmra.mrb[0].mxu0 %v1043
        %v1287 = vpop.f32.mrb[0].mxu0
        %v1288 = vadd.f32 0.0, %v1287
        %v1289 = vpop.f32.mrb[0].mxu0
        %v1290 = vpop.f32.mrb[0].mxu0
        %v1291 = vadd.f32 0.0, %v1290
        %v1292 = vpop.f32.mrb[0].mxu0
        %1293 = vmatprep.mubr.bf16.mxu0 0
        %1294 = vmatmul.mubr.bf16.gmra.mrb[0].mxu0 %v1046
        %v1295 = vpop.f32.mrb[0].mxu0
        %v1296 = vadd.f32 0.0, %v1295
        %v1297 = vpop.f32.mrb[0].mxu0
        %v1298 = vpop.f32.mrb[0].mxu0
        %v1299 = vadd.f32 0.0, %v1298
        %v1300 = vpop.f32.mrb[0].mxu0
        %1301 = vmatprep.mubr.bf16.mxu0 0
        %1302 = vmatmul.mubr.bf16.gmra.mrb[0].mxu0 %v1049
        %v1303 = vpop.f32.mrb[0].mxu0
        %v1304 = vadd.f32 0.0, %v1303
        %v1305 = vpop.f32.mrb[0].mxu0
        %v1306 = vpop.f32.mrb[0].mxu0
        %v1307 = vadd.f32 0.0, %v1306
        %v1308 = vpop.f32.mrb[0].mxu0
        %1309 = vmatprep.mubr.bf16.mxu0 0
        %1310 = vmatmul.mubr.bf16.gmra.mrb[0].mxu0 %v1052
        %v1311 = vpop.f32.mrb[0].mxu0
        %v1312 = vadd.f32 0.0, %v1311
        %v1313 = vpop.f32.mrb[0].mxu0
        %v1314 = vpop.f32.mrb[0].mxu0
        %v1315 = vadd.f32 0.0, %v1314
        %v1316 = vpop.f32.mrb[0].mxu0
        %1317 = vmatprep.mubr.bf16.mxu0 0
        %1318 = vmatmul.mubr.bf16.gmra.mrb[0].mxu0 %v1055
        %v1319 = vpop.f32.mrb[0].mxu0
        %v1320 = vadd.f32 0.0, %v1319
        %v1321 = vpop.f32.mrb[0].mxu0
        %v1322 = vpop.f32.mrb[0].mxu0
        %v1323 = vadd.f32 0.0, %v1322
        %v1324 = vpop.f32.mrb[0].mxu0
        %1325 = vmatprep.mubr.bf16.mxu0 0
        %1326 = vmatmul.mubr.bf16.gmra.mrb[0].mxu0 %v1058
        %v1327 = vpop.f32.mrb[0].mxu0
        %v1328 = vadd.f32 0.0, %v1327
        %v1329 = vpop.f32.mrb[0].mxu0
        %v1330 = vpop.f32.mrb[0].mxu0
        %v1331 = vadd.f32 0.0, %v1330
        %v1332 = vpop.f32.mrb[0].mxu0
        %1333 = vmatprep.mubr.bf16.mxu0 0
        %1334 = vmatmul.mubr.bf16.gmra.mrb[0].mxu0 %v1061
        %v1335 = vpop.f32.mrb[0].mxu0
        %v1336 = vadd.f32 0.0, %v1335
        %v1337 = vpop.f32.mrb[0].mxu0
        %v1338 = vpop.f32.mrb[0].mxu0
        %v1339 = vadd.f32 0.0, %v1338
        %v1340 = vpop.f32.mrb[0].mxu0
        %1341 = vmatprep.mubr.bf16.mxu0 0
        %1342 = vmatmul.mubr.bf16.gmra.mrb[0].mxu0 %v1064
        %v1343 = vpop.f32.mrb[0].mxu0
        %v1344 = vadd.f32 0.0, %v1343
        %v1345 = vpop.f32.mrb[0].mxu0
        %v1346 = vpop.f32.mrb[0].mxu0
        %v1347 = vadd.f32 0.0, %v1346
        %v1348 = vpop.f32.mrb[0].mxu0
        %1349 = vmatprep.mubr.bf16.mxu0 0
        %1350 = vmatmul.mubr.bf16.gmra.mrb[0].mxu0 %v1067
        %v1351 = vpop.f32.mrb[0].mxu0
        %v1352 = vadd.f32 0.0, %v1351
        %v1353 = vpop.f32.mrb[0].mxu0
        %v1354 = vpop.f32.mrb[0].mxu0
        %v1355 = vadd.f32 0.0, %v1354
        %v1356 = vpop.f32.mrb[0].mxu0
        %1357 = vmatprep.mubr.bf16.mxu0 0
        %1358 = vmatmul.mubr.bf16.gmra.mrb[0].mxu0 %v1070
        %v1359 = vpop.f32.mrb[0].mxu0
        %v1360 = vadd.f32 0.0, %v1359
        %v1361 = vpop.f32.mrb[0].mxu0
        %v1362 = vpop.f32.mrb[0].mxu0
        %v1363 = vadd.f32 0.0, %v1362
        %v1364 = vpop.f32.mrb[0].mxu0
        %1365 = vmatprep.mubr.bf16.mxu0 0
        %1366 = vmatmul.mubr.bf16.gmra.mrb[0].mxu0 %v1073
        %v1367 = vpop.f32.mrb[0].mxu0
        %v1368 = vadd.f32 0.0, %v1367
        %v1369 = vpop.f32.mrb[0].mxu0
        %v1370 = vpop.f32.mrb[0].mxu0
        %v1371 = vadd.f32 0.0, %v1370
        %v1372 = vpop.f32.mrb[0].mxu0
        %1373 = vmatprep.mubr.bf16.mxu0 0
        %1374 = vmatmul.mubr.bf16.gmra.mrb[0].mxu0 %v1076
        %v1375 = vpop.f32.mrb[0].mxu0
        %v1376 = vadd.f32 0.0, %v1375
        %v1377 = vpop.f32.mrb[0].mxu0
        %v1378 = vpop.f32.mrb[0].mxu0
        %v1379 = vadd.f32 0.0, %v1378
        %v1380 = vpop.f32.mrb[0].mxu0
        %1381 = vmatprep.mubr.bf16.mxu0 0
        %1382 = vmatmul.mubr.bf16.gmra.mrb[0].mxu0 %v1079
        %v1383 = vpop.f32.mrb[0].mxu0
        %v1384 = vadd.f32 0.0, %v1383
        %v1385 = vpop.f32.mrb[0].mxu0
        %v1386 = vpop.f32.mrb[0].mxu0
        %v1387 = vadd.f32 0.0, %v1386
        %v1388 = vpop.f32.mrb[0].mxu0
        %1389 = vmatprep.mubr.bf16.mxu0 0
        %1390 = vmatmul.mubr.bf16.gmra.mrb[0].mxu0 %v1082
        %v1391 = vpop.f32.mrb[0].mxu0
        %v1392 = vadd.f32 0.0, %v1391
        %v1393 = vpop.f32.mrb[0].mxu0
        %v1394 = vpop.f32.mrb[0].mxu0
        %v1395 = vadd.f32 0.0, %v1394
        %v1396 = vpop.f32.mrb[0].mxu0
        %1397 = vmatprep.mubr.bf16.mxu0 0
        %1398 = vmatmul.mubr.bf16.gmra.mrb[0].mxu0 %v1085
        %v1399 = vpop.f32.mrb[0].mxu0
        %v1400 = vadd.f32 0.0, %v1399
        %v1401 = vpop.f32.mrb[0].mxu0
        %v1402 = vpop.f32.mrb[0].mxu0
        %v1403 = vadd.f32 0.0, %v1402
        %v1404 = vpop.f32.mrb[0].mxu0
        %1405 = vmatprep.mubr.bf16.mxu0 0
        %1406 = vmatmul.mubr.bf16.gmra.mrb[0].mxu0 %v1088
        %v1407 = vpop.f32.mrb[0].mxu0
        %v1408 = vadd.f32 0.0, %v1407
        %v1409 = vpop.f32.mrb[0].mxu0
        %v1410 = vpop.f32.mrb[0].mxu0
        %v1411 = vadd.f32 0.0, %v1410
        %v1412 = vpop.f32.mrb[0].mxu0
        %1413 = vmatprep.mubr.bf16.mxu0 0
        %1414 = vmatmul.mubr.bf16.gmra.mrb[0].mxu0 %v1091
        %v1415 = vpop.f32.mrb[0].mxu0
        %v1416 = vadd.f32 0.0, %v1415
        %v1417 = vpop.f32.mrb[0].mxu0
        %v1418 = vpop.f32.mrb[0].mxu0
        %v1419 = vadd.f32 0.0, %v1418
        %v1420 = vpop.f32.mrb[0].mxu0
        %1421 = vmatprep.mubr.bf16.mxu0 0
        %1422 = vmatmul.mubr.bf16.gmra.mrb[0].mxu0 %v1094
        %v1423 = vpop.f32.mrb[0].mxu0
        %v1424 = vadd.f32 0.0, %v1423
        %v1425 = vpop.f32.mrb[0].mxu0
        %v1426 = vpop.f32.mrb[0].mxu0
        %v1427 = vadd.f32 0.0, %v1426
        %v1428 = vpop.f32.mrb[0].mxu0
        %1429 = vmatprep.mubr.bf16.mxu0 0
        %1430 = vmatmul.mubr.bf16.gmra.mrb[0].mxu0 %v1097
        %v1431 = vpop.f32.mrb[0].mxu0
        %v1432 = vadd.f32 0.0, %v1431
        %v1433 = vpop.f32.mrb[0].mxu0
        %v1434 = vpop.f32.mrb[0].mxu0
        %v1435 = vadd.f32 0.0, %v1434
        %v1436 = vpop.f32.mrb[0].mxu0
        %1437 = vmatprep.mubr.bf16.mxu0 0
        %1438 = vmatmul.mubr.bf16.gmra.mrb[0].mxu0 %v1100
        %v1439 = vpop.f32.mrb[0].mxu0
        %v1440 = vadd.f32 0.0, %v1439
        %v1441 = vpop.f32.mrb[0].mxu0
        %v1442 = vpop.f32.mrb[0].mxu0
        %v1443 = vadd.f32 0.0, %v1442
        %v1444 = vpop.f32.mrb[0].mxu0
        %1445 = vmatprep.mubr.bf16.mxu0 0
        %1446 = vmatmul.mubr.bf16.gmra.mrb[0].mxu0 %v1103
        %v1447 = vpop.f32.mrb[0].mxu0
        %v1448 = vadd.f32 0.0, %v1447
        %v1449 = vpop.f32.mrb[0].mxu0
        %v1450 = vpop.f32.mrb[0].mxu0
        %v1451 = vadd.f32 0.0, %v1450
        %v1452 = vpop.f32.mrb[0].mxu0
        %1453 = vmatprep.mubr.bf16.mxu0 0
        %1454 = vmatmul.mubr.bf16.gmra.mrb[0].mxu0 %v1106
        %v1455 = vpop.f32.mrb[0].mxu0
        %v1456 = vadd.f32 0.0, %v1455
        %v1457 = vpop.f32.mrb[0].mxu0
        %v1458 = vpop.f32.mrb[0].mxu0
        %v1459 = vadd.f32 0.0, %v1458
        %v1460 = vpop.f32.mrb[0].mxu0
        %1461 = vmatprep.mubr.bf16.mxu0 0
        %1462 = vmatmul.mubr.bf16.gmra.mrb[0].mxu0 %v1109
        %v1463 = vpop.f32.mrb[0].mxu0
        %v1464 = vadd.f32 0.0, %v1463
        %v1465 = vpop.f32.mrb[0].mxu0
        %v1466 = vpop.f32.mrb[0].mxu0
        %v1467 = vadd.f32 0.0, %v1466
        %v1468 = vpop.f32.mrb[0].mxu0
        %1469 = vmatprep.mubr.bf16.mxu0 0
        %1470 = vmatmul.mubr.bf16.gmra.mrb[0].mxu0 %v1112
        %v1471 = vpop.f32.mrb[0].mxu0
        %v1472 = vadd.f32 0.0, %v1471
        %v1473 = vpop.f32.mrb[0].mxu0
        %v1474 = vpop.f32.mrb[0].mxu0
        %v1475 = vadd.f32 0.0, %v1474
        %v1476 = vpop.f32.mrb[0].mxu0
        %1477 = vmatprep.mubr.bf16.mxu0 0
        %1478 = vmatmul.mubr.bf16.gmra.mrb[0].mxu0 %v1115
        %v1479 = vpop.f32.mrb[0].mxu0
        %v1480 = vadd.f32 0.0, %v1479
        %v1481 = vpop.f32.mrb[0].mxu0
        %v1482 = vpop.f32.mrb[0].mxu0
        %v1483 = vadd.f32 0.0, %v1482
        %v1484 = vpop.f32.mrb[0].mxu0
        %1485 = vmatprep.mubr.bf16.mxu0 0
        %1486 = vmatmul.mubr.bf16.gmra.mrb[0].mxu0 %v1118
        %v1487 = vpop.f32.mrb[0].mxu0
        %v1488 = vadd.f32 0.0, %v1487
        %v1489 = vpop.f32.mrb[0].mxu0
        %v1490 = vpop.f32.mrb[0].mxu0
        %v1491 = vadd.f32 0.0, %v1490
        %v1492 = vpop.f32.mrb[0].mxu0
        %1493 = vmatprep.mubr.bf16.mxu0 0
        %1494 = vmatmul.mubr.bf16.gmra.mrb[0].mxu0 %v1121
        %v1495 = vpop.f32.mrb[0].mxu0
        %v1496 = vadd.f32 0.0, %v1495
        %v1497 = vpop.f32.mrb[0].mxu0
        %v1498 = vpop.f32.mrb[0].mxu0
        %v1499 = vadd.f32 0.0, %v1498
        %v1500 = vpop.f32.mrb[0].mxu0
        %1501 = vmatprep.mubr.bf16.mxu0 0
        %1502 = vmatmul.mubr.bf16.gmra.mrb[0].mxu0 %v1124
        %v1503 = vpop.f32.mrb[0].mxu0
        %v1504 = vadd.f32 0.0, %v1503
        %v1505 = vpop.f32.mrb[0].mxu0
        %v1506 = vpop.f32.mrb[0].mxu0
        %v1507 = vadd.f32 0.0, %v1506
        %v1508 = vpop.f32.mrb[0].mxu0
        %1509 = vmatprep.mubr.bf16.mxu0 0
        %1510 = vmatmul.mubr.bf16.gmra.mrb[0].mxu0 %v1127
        %v1511 = vpop.f32.mrb[0].mxu0
        %v1512 = vadd.f32 0.0, %v1511
        %v1513 = vpop.f32.mrb[0].mxu0
        %v1514 = vpop.f32.mrb[0].mxu0
        %v1515 = vadd.f32 0.0, %v1514
        %v1516 = vpop.f32.mrb[0].mxu0
        %1517 = vmatprep.mubr.bf16.mxu0 0
        %1518 = vmatmul.mubr.bf16.gmra.mrb[0].mxu0 %v1130
        %v1519 = vpop.f32.mrb[0].mxu0
        %v1520 = vadd.f32 0.0, %v1519
        %v1521 = vpop.f32.mrb[0].mxu0
        %v1522 = vpop.f32.mrb[0].mxu0
        %v1523 = vadd.f32 0.0, %v1522
        %v1524 = vpop.f32.mrb[0].mxu0
        %1525 = vmatprep.mubr.bf16.mxu0 0
        %1526 = vmatmul.mubr.bf16.gmra.mrb[0].mxu0 %v1133
        %v1527 = vpop.f32.mrb[0].mxu0
        %v1528 = vadd.f32 0.0, %v1527
        %v1529 = vpop.f32.mrb[0].mxu0
        %v1530 = vpop.f32.mrb[0].mxu0
        %v1531 = vadd.f32 0.0, %v1530
        %v1532 = vpop.f32.mrb[0].mxu0
        %1533 = vmatprep.mubr.bf16.mxu0 0
        %1534 = vmatmul.mubr.bf16.gmra.mrb[0].mxu0 %v1136
        %v1535 = vpop.f32.mrb[0].mxu0
        %v1536 = vadd.f32 0.0, %v1535
        %v1537 = vpop.f32.mrb[0].mxu0
        %v1538 = vpop.f32.mrb[0].mxu0
        %v1539 = vadd.f32 0.0, %v1538
        %v1540 = vpop.f32.mrb[0].mxu0
        %1541 = vmatprep.mubr.bf16.mxu0 0
        %1542 = vmatmul.mubr.bf16.gmra.mrb[0].mxu0 %v1139
        %v1543 = vpop.f32.mrb[0].mxu0
        %v1544 = vadd.f32 0.0, %v1543
        %v1545 = vpop.f32.mrb[0].mxu0
        %v1546 = vpop.f32.mrb[0].mxu0
        %v1547 = vadd.f32 0.0, %v1546
        %v1548 = vpop.f32.mrb[0].mxu0
        %1549 = vmatprep.mubr.bf16.mxu0 0
        %1550 = vmatmul.mubr.bf16.gmra.mrb[0].mxu0 %v1142
        %v1551 = vpop.f32.mrb[0].mxu0
        %v1552 = vadd.f32 0.0, %v1551
        %v1553 = vpop.f32.mrb[0].mxu0
        %v1554 = vpop.f32.mrb[0].mxu0
        %v1555 = vadd.f32 0.0, %v1554
        %v1556 = vpop.f32.mrb[0].mxu0
        %1557 = vmatprep.mubr.bf16.mxu0 0
        %1558 = vmatmul.mubr.bf16.gmra.mrb[0].mxu0 %v1145
        %v1559 = vpop.f32.mrb[0].mxu0
        %v1560 = vadd.f32 0.0, %v1559
        %v1561 = vpop.f32.mrb[0].mxu0
        %v1562 = vpop.f32.mrb[0].mxu0
        %v1563 = vadd.f32 0.0, %v1562
        %v1564 = vpop.f32.mrb[0].mxu0
        %1565 = vmatprep.mubr.bf16.mxu0 0
        %1566 = vmatmul.mubr.bf16.gmra.mrb[0].mxu0 %v1148
        %v1567 = vpop.f32.mrb[0].mxu0
        %v1568 = vadd.f32 0.0, %v1567
        %v1569 = vpop.f32.mrb[0].mxu0
        %v1570 = vpop.f32.mrb[0].mxu0
        %v1571 = vadd.f32 0.0, %v1570
        %v1572 = vpop.f32.mrb[0].mxu0
        %1573 = vmatprep.mubr.bf16.mxu0 0
        %1574 = vmatmul.mubr.bf16.gmra.mrb[0].mxu0 %v1151
        %v1575 = vpop.f32.mrb[0].mxu0
        %v1576 = vadd.f32 0.0, %v1575
        %v1577 = vpop.f32.mrb[0].mxu0
        %v1578 = vpop.f32.mrb[0].mxu0
        %v1579 = vadd.f32 0.0, %v1578
        %v1580 = vpop.f32.mrb[0].mxu0
        %1581 = vmatprep.mubr.bf16.mxu0 0
        %1582 = vmatmul.mubr.bf16.gmra.mrb[0].mxu0 %v1154
        %v1583 = vpop.f32.mrb[0].mxu0
        %v1584 = vadd.f32 0.0, %v1583
        %v1585 = vpop.f32.mrb[0].mxu0
        %v1586 = vpop.f32.mrb[0].mxu0
        %v1587 = vadd.f32 0.0, %v1586
        %v1588 = vpop.f32.mrb[0].mxu0
        %1589 = vmatprep.mubr.bf16.mxu0 0
        %1590 = vmatmul.mubr.bf16.gmra.mrb[0].mxu0 %v1157
        %v1591 = vpop.f32.mrb[0].mxu0
        %v1592 = vadd.f32 0.0, %v1591
        %v1593 = vpop.f32.mrb[0].mxu0
        %v1594 = vpop.f32.mrb[0].mxu0
        %v1595 = vadd.f32 0.0, %v1594
        %v1596 = vpop.f32.mrb[0].mxu0
        %1597 = vmatprep.mubr.bf16.mxu0 0
        %1598 = vmatmul.mubr.bf16.gmra.mrb[0].mxu0 %v1160
        %v1599 = vpop.f32.mrb[0].mxu0
        %v1600 = vadd.f32 0.0, %v1599
        %v1601 = vpop.f32.mrb[0].mxu0
        %v1602 = vpop.f32.mrb[0].mxu0
        %v1603 = vadd.f32 0.0, %v1602
        %v1604 = vpop.f32.mrb[0].mxu0
        %1605 = vmatprep.mubr.bf16.mxu0 0
        %1606 = vmatmul.mubr.bf16.gmra.mrb[0].mxu0 %v1163
        %v1607 = vpop.f32.mrb[0].mxu0
        %v1608 = vadd.f32 0.0, %v1607
        %v1609 = vpop.f32.mrb[0].mxu0
        %v1610 = vpop.f32.mrb[0].mxu0
        %v1611 = vadd.f32 0.0, %v1610
        %v1612 = vpop.f32.mrb[0].mxu0
        %1613 = vdwg.mxu0
        %v1614 = vmax.f32 %v1200, %v1304
        %v1615 = vmax.f32 %v1614, %v1408
        %v1616 = vmax.f32 %v1615, %v1512
        %v1617 = vmax.f32 %v1203, %v1307
        %v1618 = vmax.f32 %v1617, %v1411
        %v1619 = vmax.f32 %v1618, %v1515
        %v1620 = vmax.f32 %v1208, %v1312
        %v1621 = vmax.f32 %v1620, %v1416
        %v1622 = vmax.f32 %v1621, %v1520
        %v1623 = vmax.f32 %v1211, %v1315
        %v1624 = vmax.f32 %v1623, %v1419
        %v1625 = vmax.f32 %v1624, %v1523
        %v1626 = vmax.f32 %v1216, %v1320
        %v1627 = vmax.f32 %v1626, %v1424
        %v1628 = vmax.f32 %v1627, %v1528
        %v1629 = vmax.f32 %v1219, %v1323
        %v1630 = vmax.f32 %v1629, %v1427
        %v1631 = vmax.f32 %v1630, %v1531
        %v1632 = vmax.f32 %v1224, %v1328
        %v1633 = vmax.f32 %v1632, %v1432
        %v1634 = vmax.f32 %v1633, %v1536
        %v1635 = vmax.f32 %v1227, %v1331
        %v1636 = vmax.f32 %v1635, %v1435
        %v1637 = vmax.f32 %v1636, %v1539
        %v1638 = vmax.f32 %v1232, %v1336
        %v1639 = vmax.f32 %v1638, %v1440
        %v1640 = vmax.f32 %v1639, %v1544
        %v1641 = vmax.f32 %v1235, %v1339
        %v1642 = vmax.f32 %v1641, %v1443
        %v1643 = vmax.f32 %v1642, %v1547
        %v1644 = vmax.f32 %v1240, %v1344
        %v1645 = vmax.f32 %v1644, %v1448
        %v1646 = vmax.f32 %v1645, %v1552
        %v1647 = vmax.f32 %v1243, %v1347
        %v1648 = vmax.f32 %v1647, %v1451
        %v1649 = vmax.f32 %v1648, %v1555
        %v1650 = vmax.f32 %v1248, %v1352
        %v1651 = vmax.f32 %v1650, %v1456
        %v1652 = vmax.f32 %v1651, %v1560
        %v1653 = vmax.f32 %v1251, %v1355
        %v1654 = vmax.f32 %v1653, %v1459
        %v1655 = vmax.f32 %v1654, %v1563
        %v1656 = vmax.f32 %v1256, %v1360
        %v1657 = vmax.f32 %v1656, %v1464
        %v1658 = vmax.f32 %v1657, %v1568
        %v1659 = vmax.f32 %v1259, %v1363
        %v1660 = vmax.f32 %v1659, %v1467
        %v1661 = vmax.f32 %v1660, %v1571
        %v1662 = vmax.f32 %v1264, %v1368
        %v1663 = vmax.f32 %v1662, %v1472
        %v1664 = vmax.f32 %v1663, %v1576
        %v1665 = vmax.f32 %v1267, %v1371
        %v1666 = vmax.f32 %v1665, %v1475
        %v1667 = vmax.f32 %v1666, %v1579
        %v1668 = vmax.f32 %v1272, %v1376
        %v1669 = vmax.f32 %v1668, %v1480
        %v1670 = vmax.f32 %v1669, %v1584
        %v1671 = vmax.f32 %v1275, %v1379
        %v1672 = vmax.f32 %v1671, %v1483
        %v1673 = vmax.f32 %v1672, %v1587
        %v1674 = vmax.f32 %v1280, %v1384
        %v1675 = vmax.f32 %v1674, %v1488
        %v1676 = vmax.f32 %v1675, %v1592
        %v1677 = vmax.f32 %v1283, %v1387
        %v1678 = vmax.f32 %v1677, %v1491
        %v1679 = vmax.f32 %v1678, %v1595
        %v1680 = vmax.f32 %v1288, %v1392
        %v1681 = vmax.f32 %v1680, %v1496
        %v1682 = vmax.f32 %v1681, %v1600
        %v1683 = vmax.f32 %v1291, %v1395
        %v1684 = vmax.f32 %v1683, %v1499
        %v1685 = vmax.f32 %v1684, %v1603
        %v1686 = vmax.f32 %v1296, %v1400
        %v1687 = vmax.f32 %v1686, %v1504
        %v1688 = vmax.f32 %v1687, %v1608
        %v1689 = vmax.f32 %v1299, %v1403
        %v1690 = vmax.f32 %v1689, %v1507
        %v1691 = vmax.f32 %v1690, %v1611
        %v1692 = vld [vmem:[%s2] sm:$0x1]
        %v1694 = vlaneseq
        %v1695 = vshrl.u32 %v1694, 7
        %v1696 = vsub.s32 0, %v1695
        %v1697 = vrot.slane %v1692, %v1696
        %v1699 = vadd.f32 %v1616, %v1697
        %v1700 = vadd.f32 %v1619, %v1697
        %v1701 = vadd.f32 %v1622, %v1697
        %v1702 = vadd.f32 %v1625, %v1697
        %v1703 = vadd.f32 %v1628, %v1697
        %v1704 = vadd.f32 %v1631, %v1697
        %v1705 = vadd.f32 %v1634, %v1697
        %v1706 = vadd.f32 %v1637, %v1697
        %v1707 = vadd.f32 %v1640, %v1697
        %v1708 = vadd.f32 %v1643, %v1697
        %v1709 = vadd.f32 %v1646, %v1697
        %v1710 = vadd.f32 %v1649, %v1697
        %v1711 = vadd.f32 %v1652, %v1697
        %v1712 = vadd.f32 %v1655, %v1697
        %v1713 = vadd.f32 %v1658, %v1697
        %v1714 = vadd.f32 %v1661, %v1697
        %v1715 = vadd.f32 %v1664, %v1697
        %v1716 = vadd.f32 %v1667, %v1697
        %v1717 = vadd.f32 %v1670, %v1697
        %v1718 = vadd.f32 %v1673, %v1697
        %v1719 = vadd.f32 %v1676, %v1697
        %v1720 = vadd.f32 %v1679, %v1697
        %v1721 = vadd.f32 %v1682, %v1697
        %v1722 = vadd.f32 %v1685, %v1697
        %v1723 = vadd.f32 %v1688, %v1697
        %v1724 = vadd.f32 %v1691, %v1697
        %v1725 = vmax.f32 %v1699, 0.0
        %v1726 = vmax.f32 %v1700, 0.0
        %v1727 = vmax.f32 %v1701, 0.0
        %v1728 = vmax.f32 %v1702, 0.0
        %v1729 = vmax.f32 %v1703, 0.0
        %v1730 = vmax.f32 %v1704, 0.0
        %v1731 = vmax.f32 %v1705, 0.0
        %v1732 = vmax.f32 %v1706, 0.0
        %v1733 = vmax.f32 %v1707, 0.0
        %v1734 = vmax.f32 %v1708, 0.0
        %v1735 = vmax.f32 %v1709, 0.0
        %v1736 = vmax.f32 %v1710, 0.0
        %v1737 = vmax.f32 %v1711, 0.0
        %v1738 = vmax.f32 %v1712, 0.0
        %v1739 = vmax.f32 %v1713, 0.0
        %v1740 = vmax.f32 %v1714, 0.0
        %v1741 = vmax.f32 %v1715, 0.0
        %v1742 = vmax.f32 %v1716, 0.0
        %v1743 = vmax.f32 %v1717, 0.0
        %v1744 = vmax.f32 %v1718, 0.0
        %v1745 = vmax.f32 %v1719, 0.0
        %v1746 = vmax.f32 %v1720, 0.0
        %v1747 = vmax.f32 %v1721, 0.0
        %v1748 = vmax.f32 %v1722, 0.0
        %v1749 = vmax.f32 %v1723, 0.0
        %v1750 = vmax.f32 %v1724, 0.0
        %v1751 = vpack.c.bf16 %v1726, %v1725
        %v1752 = vpack.c.bf16 %v1728, %v1727
        %v1753 = vpack.c.bf16 %v1730, %v1729
        %v1754 = vpack.c.bf16 %v1732, %v1731
        %v1755 = vpack.c.bf16 %v1734, %v1733
        %v1756 = vpack.c.bf16 %v1736, %v1735
        %v1757 = vpack.c.bf16 %v1738, %v1737
        %v1758 = vpack.c.bf16 %v1740, %v1739
        %v1759 = vpack.c.bf16 %v1742, %v1741
        %v1760 = vpack.c.bf16 %v1744, %v1743
        %v1761 = vpack.c.bf16 %v1746, %v1745
        %v1762 = vpack.c.bf16 %v1748, %v1747
        %v1763 = vpack.c.bf16 %v1750, %v1749
        %v1777 = vunpack.c.l.b16 %v1751
        %v1778 = vunpack.c.h.b16 %v1751
        %v1779 = vunpack.c.l.b16 %v1752
        %v1780 = vunpack.c.h.b16 %v1752
        %v1781 = vunpack.c.l.b16 %v1753
        %v1782 = vunpack.c.h.b16 %v1753
        %v1783 = vunpack.c.l.b16 %v1754
        %v1784 = vunpack.c.h.b16 %v1754
        %v1785 = vunpack.c.l.b16 %v1755
        %v1786 = vunpack.c.h.b16 %v1755
        %v1787 = vunpack.c.l.b16 %v1756
        %v1788 = vunpack.c.h.b16 %v1756
        %v1789 = vunpack.c.l.b16 %v1757
        %v1790 = vunpack.c.h.b16 %v1757
        %v1791 = vunpack.c.l.b16 %v1758
        %v1792 = vunpack.c.h.b16 %v1758
        %v1793 = vunpack.c.l.b16 %v1759
        %v1794 = vunpack.c.h.b16 %v1759
        %v1795 = vunpack.c.l.b16 %v1760
        %v1796 = vunpack.c.h.b16 %v1760
        %v1797 = vunpack.c.l.b16 %v1761
        %v1798 = vunpack.c.h.b16 %v1761
        %v1799 = vunpack.c.l.b16 %v1762
        %v1800 = vunpack.c.h.b16 %v1762
        %v1801 = vunpack.c.l.b16 %v1763
        %v1802 = vunpack.c.h.b16 %v1763
        %v1803 = vpack.c.b16 %v1777, %v1777
        %v1804 = vpack.c.b16 %v1778, %v1778
        %v1805 = vpack.c.b16 %v1779, %v1779
        %v1806 = vpack.c.b16 %v1780, %v1780
        %v1807 = vpack.c.b16 %v1781, %v1781
        %v1808 = vpack.c.b16 %v1782, %v1782
        %v1809 = vpack.c.b16 %v1783, %v1783
        %v1810 = vpack.c.b16 %v1784, %v1784
        %v1811 = vpack.c.b16 %v1785, %v1785
        %v1812 = vpack.c.b16 %v1786, %v1786
        %v1813 = vpack.c.b16 %v1787, %v1787
        %v1814 = vpack.c.b16 %v1788, %v1788
        %v1815 = vpack.c.b16 %v1789, %v1789
        %v1816 = vpack.c.b16 %v1790, %v1790
        %v1817 = vpack.c.b16 %v1791, %v1791
        %v1818 = vpack.c.b16 %v1792, %v1792
        %v1819 = vpack.c.b16 %v1793, %v1793
        %v1820 = vpack.c.b16 %v1794, %v1794
        %v1821 = vpack.c.b16 %v1795, %v1795
        %v1822 = vpack.c.b16 %v1796, %v1796
        %v1823 = vpack.c.b16 %v1797, %v1797
        %v1824 = vpack.c.b16 %v1798, %v1798
        %v1825 = vpack.c.b16 %v1799, %v1799
        %v1826 = vpack.c.b16 %v1800, %v1800
        %v1827 = vpack.c.b16 %v1801, %v1801
        %v1828 = vpack.c.b16 %v1802, %v1802
        %1855 = vst [vmem:[%s625] sm:$0xf] %v1803
        %1856 = vst [vmem:[%s625 + $0x4] sm:$0xf] %v1804
        %1857 = vst [vmem:[%s625 + $0x8] sm:$0xf] %v1805
        %1858 = vst [vmem:[%s625 + $0xc] sm:$0xf] %v1806
        %1859 = vst [vmem:[%s625 + $0x10] sm:$0xf] %v1807
        %1860 = vst [vmem:[%s625 + $0x14] sm:$0xf] %v1808
        %1861 = vst [vmem:[%s625 + $0x18] sm:$0xf] %v1809
        %1862 = vst [vmem:[%s625 + $0x1c] sm:$0xf] %v1810
        %1863 = vst [vmem:[%s625 + $0x20] sm:$0xf] %v1811
        %1864 = vst [vmem:[%s625 + $0x24] sm:$0xf] %v1812
        %1865 = vst [vmem:[%s625 + $0x28] sm:$0xf] %v1813
        %1866 = vst [vmem:[%s625 + $0x2c] sm:$0xf] %v1814
        %1867 = vst [vmem:[%s625 + $0x30] sm:$0xf] %v1815
        %1868 = vst [vmem:[%s625 + $0x34] sm:$0xf] %v1816
        %1869 = vst [vmem:[%s625 + $0x38] sm:$0xf] %v1817
        %1870 = vst [vmem:[%s625 + $0x3c] sm:$0xf] %v1818
        %1871 = vst [vmem:[%s625 + $0x40] sm:$0xf] %v1819
        %1872 = vst [vmem:[%s625 + $0x44] sm:$0xf] %v1820
        %1873 = vst [vmem:[%s625 + $0x48] sm:$0xf] %v1821
        %1874 = vst [vmem:[%s625 + $0x4c] sm:$0xf] %v1822
        %1875 = vst [vmem:[%s625 + $0x50] sm:$0xf] %v1823
        %1876 = vst [vmem:[%s625 + $0x54] sm:$0xf] %v1824
        %1877 = vst [vmem:[%s625 + $0x58] sm:$0xf] %v1825
        %1878 = vst [vmem:[%s625 + $0x5c] sm:$0xf] %v1826
        %1879 = vst [vmem:[%s625 + $0x60] sm:$0xf] %v1827
        %1880 = vst [vmem:[%s625 + $0x64] sm:$0xf] %v1828
        %s1881 = smul.u32 26, %s14
        %p1882 = scmp.lt.s32.totalorder %s1881, 51
        %s1883 = scalar_select %p1882, %s1881, 51
        %s1884 = smul.addr %s1883, 4
        %s1885 = scalar_lea.vmem %s3, %s1884
        // Predicated region
        $region74: #{lenet5_forward.3} parent=68 // pred_check
          %p1886 = pneg %p100
        $region75: #{lenet5_forward.3} parent=68 // pred_check_branch
          %1888 = sbr.rel (%p1886) target = $region77
        $region76: #{lenet5_forward.3} parent=68 // pred_region
          %s1889 = smul.u32 26, %s14
        $region77: #{lenet5_forward.3} parent=68 // pred_fallthru
          _
      $region69: #{lenet5_forward.3} parent=5 // pred_fallthru
        _
      %p1890 = scmp.le.s32.totalorder 2, %s9
      // Predicated region
      $region78: #{lenet5_forward.3} parent=5 // pred_check
        %p1891 = pneg %p1890
      $region79: #{lenet5_forward.3} parent=5 // pred_check_branch
        %1893 = sbr.rel (%p1891) target = $region81
      $region80: #{lenet5_forward.3} parent=5 // pred_region
        %s1894 = ssub.s32 %s9, 2
        // Predicated region
        $region82: #{lenet5_forward.3} parent=80 // pred_check
          %p1895 = pneg %p106
        $region83: #{lenet5_forward.3} parent=80 // pred_check_branch
          %1897 = sbr.rel (%p1895) target = $region85
        $region84: #{lenet5_forward.3} parent=80 // pred_region
          %s1898 = smul.u32 26, %s15
          %p1899 = scmp.lt.s32.totalorder %s1898, 51
          %s1900 = scalar_select %p1899, %s1898, 51
          %s1901 = smul.addr %s1900, 4
          %s1902 = scalar_lea.vmem %s3, %s1901
        $region85: #{lenet5_forward.3} parent=80 // pred_fallthru
          _
      $region81: #{lenet5_forward.3} parent=5 // pred_fallthru
        _
    $region6: #{lenet5_forward.3} parent=1 // loop_footer
      %s13 = sadd.s32 1, %s9
    $region7: #{lenet5_forward.3} parent=1 // loop_footer_branch
      %8 = sbr.rel target = $region3
    $region8: #{lenet5_forward.3} parent=1 // loop_exit
      _

// kernel: lenet5_forward.4
$region0: #{lenet5_forward.4}
  #allocation0 [shape = 'u32[]', space=smem, size = 0x4, offset = 0x4, fixed_abs, tag = 'smem constant byte address 0x4 - core index']
  #allocation1 [shape = 'u32[144,128]{1,0:T(1,128)}', space=vmem, size = 0x12000, scoped, tag = 'internal scratch']
  %s0 = inlined_call_operand.vmem [shape: bf16[4,64,160], index: 0, kind: input, shape index: {}]
  %s1 = inlined_call_operand.vmem [shape: bf16[160,128], index: 1, kind: input, shape index: {}]
  %s2 = inlined_call_operand.vmem [shape: f32[1,128], index: 2, kind: input, shape index: {}]
  %s3 = inlined_call_operand.vmem [shape: bf16[64,128], index: 3, kind: output, shape index: {}]
  %s4 = sld [smem:[#allocation0]]
  $region83: #{lenet5_forward.4} parent=0
    _
  %s6 = ssub.s32 1, %s4
  %s7 = scalar_select 0, %s6, %s4
  $region1: #{lenet5_forward.4} parent=0
    #allocation2 [shape = 'u8[131072]{0}', space=vmem, size = 0x20000, scoped, tag = 'input window, operand 0']
    loop: start=0, step=1, limit=4
    $region2: #{lenet5_forward.4} parent=1 // loop_pre_header
      _
    $region3: #{lenet5_forward.4} parent=1 // loop_header
      %s9 = sphi 0, %s13
      %p10 = scmp.ge.s32.totalorder %s9, 4
      %s19 = sphi 0, %s21
      %s22 = sphi 0, %s19
      %s23 = sphi 0, %s22
      %s39 = sphi 0, %s23
      %s43 = sphi 0, %s43
      %s45 = sphi 0, %s43
      %s46 = sphi 0, %s45
      %s60 = sphi 0, %s46
      %s64 = sphi 0, %s64
      %s66 = sphi 0, %s64
      %s67 = sphi 0, %s66
      %s81 = sphi 0, %s67
      %s87 = sphi 0, %s89
      %s90 = sphi 0, %s87
      %s91 = sphi 0, %s90
      %s107 = sphi 0, %s91
    $region4: #{lenet5_forward.4} parent=1 // loop_header_branch
      %12 = sbr.rel (%p10) target = $region8
    $region5: #{lenet5_forward.4} parent=1 // loop_body
      %s14 = ssub.s32 %s9, 1
      %s15 = ssub.s32 %s9, 2
      %s16 = sadd.s32 %s9, 1
      %s17 = ssub.s32 %s9, %s16
      %p18 = scmp.eq.s32.totalorder %s17, 0
      %s20 = sadd.s32 %s19, 1
      %s21 = scalar_select %p18, %s19, %s20
      %p24 = pneg %p18
      %p25 = scmp.eq.s32.totalorder %s9, 1
      %p26 = por %p24, %p25
      %p27 = scmp.ne.s32.totalorder %s19, %s22
      %p28 = scmp.eq.s32.totalorder %s9, 0
      %p29 = por %p27, %p28
      %p30 = scmp.ne.s32.totalorder %s19, %s22
      %p31 = scmp.eq.s32.totalorder %s14, 1
      %p32 = por %p30, %p31
      %p33 = scmp.ne.s32.totalorder %s22, %s23
      %p34 = scmp.eq.s32.totalorder %s14, 0
      %p35 = por %p33, %p34
      %p36 = scmp.ne.s32.totalorder %s22, %s23
      %p37 = scmp.eq.s32.totalorder %s15, 1
      %p38 = por %p36, %p37
      %p40 = scmp.ne.s32.totalorder %s23, %s39
      %p41 = scmp.eq.s32.totalorder %s15, 0
      %p42 = por %p40, %p41
      %s44 = sadd.s32 %s43, 1
      %p47 = scmp.eq.s32.totalorder %s9, 1
      %p48 = scmp.ne.s32.totalorder %s43, %s45
      %p49 = scmp.eq.s32.totalorder %s9, 0
      %p50 = por %p48, %p49
      %p51 = scmp.ne.s32.totalorder %s43, %s45
      %p52 = scmp.eq.s32.totalorder %s14, 1
      %p53 = por %p51, %p52
      %p54 = scmp.ne.s32.totalorder %s45, %s46
      %p55 = scmp.eq.s32.totalorder %s14, 0
      %p56 = por %p54, %p55
      %p57 = scmp.ne.s32.totalorder %s45, %s46
      %p58 = scmp.eq.s32.totalorder %s15, 1
      %p59 = por %p57, %p58
      %p61 = scmp.ne.s32.totalorder %s46, %s60
      %p62 = scmp.eq.s32.totalorder %s15, 0
      %p63 = por %p61, %p62
      %s65 = sadd.s32 %s64, 1
      %p68 = scmp.eq.s32.totalorder %s9, 1
      %p69 = scmp.ne.s32.totalorder %s64, %s66
      %p70 = scmp.eq.s32.totalorder %s9, 0
      %p71 = por %p69, %p70
      %p72 = scmp.ne.s32.totalorder %s64, %s66
      %p73 = scmp.eq.s32.totalorder %s14, 1
      %p74 = por %p72, %p73
      %p75 = scmp.ne.s32.totalorder %s66, %s67
      %p76 = scmp.eq.s32.totalorder %s14, 0
      %p77 = por %p75, %p76
      %p78 = scmp.ne.s32.totalorder %s66, %s67
      %p79 = scmp.eq.s32.totalorder %s15, 1
      %p80 = por %p78, %p79
      %p82 = scmp.ne.s32.totalorder %s67, %s81
      %p83 = scmp.eq.s32.totalorder %s15, 0
      %p84 = por %p82, %p83
      %s85 = ssub.s32 %s9, %s16
      %p86 = scmp.eq.s32.totalorder %s85, 0
      %s88 = sadd.s32 %s87, 1
      %s89 = scalar_select %p86, %s87, %s88
      %p92 = pneg %p86
      %p93 = scmp.eq.s32.totalorder %s9, 1
      %p94 = por %p92, %p93
      %p95 = scmp.ne.s32.totalorder %s87, %s90
      %p96 = scmp.eq.s32.totalorder %s9, 0
      %p97 = por %p95, %p96
      %p98 = scmp.ne.s32.totalorder %s87, %s90
      %p99 = scmp.eq.s32.totalorder %s14, 1
      %p100 = por %p98, %p99
      %p101 = scmp.ne.s32.totalorder %s90, %s91
      %p102 = scmp.eq.s32.totalorder %s14, 0
      %p103 = por %p101, %p102
      %p104 = scmp.ne.s32.totalorder %s90, %s91
      %p105 = scmp.eq.s32.totalorder %s15, 1
      %p106 = por %p104, %p105
      %p108 = scmp.ne.s32.totalorder %s91, %s107
      %p109 = scmp.eq.s32.totalorder %s15, 0
      %p110 = por %p108, %p109
      %p111 = scmp.le.s32.totalorder 1, %s9
      %p112 = scmp.lt.s32.totalorder %s9, 3
      %p113 = pnand %p111, %p112
      %p114 = pneg %p113
      // Predicated region
      $region9: #{lenet5_forward.4} parent=5 // pred_check
        _
      $region10: #{lenet5_forward.4} parent=5 // pred_check_branch
        %116 = sbr.rel (%p113) target = $region12
      $region11: #{lenet5_forward.4} parent=5 // pred_region
        %s117 = ssub.s32 %s9, 1
        // Predicated region
        $region13: #{lenet5_forward.4} parent=11 // pred_check
          %p118 = pneg %p56
        $region14: #{lenet5_forward.4} parent=11 // pred_check_branch
          %120 = sbr.rel (%p118) target = $region16
        $region15: #{lenet5_forward.4} parent=11 // pred_region
          _
        $region16: #{lenet5_forward.4} parent=11 // pred_fallthru
          _
        // Predicated region
        $region17: #{lenet5_forward.4} parent=11 // pred_check
          %p121 = pneg %p77
        $region18: #{lenet5_forward.4} parent=11 // pred_check_branch
          %123 = sbr.rel (%p121) target = $region20
        $region19: #{lenet5_forward.4} parent=11 // pred_region
          _
        $region20: #{lenet5_forward.4} parent=11 // pred_fallthru
          _
      $region12: #{lenet5_forward.4} parent=5 // pred_fallthru
        _
      %p124 = scmp.lt.s32.totalorder %s9, 2
      // Predicated region
      $region21: #{lenet5_forward.4} parent=5 // pred_check
        %p125 = pneg %p124
      $region22: #{lenet5_forward.4} parent=5 // pred_check_branch
        %127 = sbr.rel (%p125) target = $region24
      $region23: #{lenet5_forward.4} parent=5 // pred_region
        // Predicated region
        $region25: #{lenet5_forward.4} parent=23 // pred_check
          %p128 = pneg %p29
        $region26: #{lenet5_forward.4} parent=23 // pred_check_branch
          %130 = sbr.rel (%p128) target = $region28
        $region27: #{lenet5_forward.4} parent=23 // pred_region
          %s131 = sand.u32 %s19, 1
          %s132 = sand.u32 %s19, 1
          %s133 = smul.addr %s132, 128
          %s134 = scalar_lea.vmem [#allocation2], %s133
          %s135 = smul.u32 4, %s9
          %s136 = smul.addr %s135, 2
          %s137 = smul.addr %s136, 4
          %s138 = scalar_lea.vmem %s0, %s137
          // Predicated region
          $region29: #{lenet5_forward.4} parent=27 // pred_check
            _
          $region30: #{lenet5_forward.4} parent=27 // pred_check_branch
            %140 = sbr.rel (0) target = $region32
          $region31: #{lenet5_forward.4} parent=27 // pred_region
            // Predicated region
            $region33: #{lenet5_forward.4} parent=31 // pred_check
              _
            $region34: #{lenet5_forward.4} parent=31 // pred_check_branch
              %142 = sbr.rel (0) target = $region36
            $region35: #{lenet5_forward.4} parent=31 // pred_region
              // Predicated region
              $region48: #{lenet5_forward.4} parent=35 // pred_check
                _
              $region49: #{lenet5_forward.4} parent=35 // pred_check_branch
                %187 = sbr.rel (0) target = $region51
              $region50: #{lenet5_forward.4} parent=35 // pred_region
                loop: start=0, step=1, limit=1
                $region52: #{lenet5_forward.4} parent=50 // loop_pre_header
                  _
                $region53: #{lenet5_forward.4} parent=50 // loop_header
                  %s189 = sphi 0, %s193
                  %p190 = scmp.ge.s32.totalorder %s189, 1
                  %s194 = sphi %s138, %s138
                  %s195 = sphi %s134, %s134
                $region54: #{lenet5_forward.4} parent=50 // loop_header_branch
                  %192 = sbr.rel (%p190) target = $region58
                $region55: #{lenet5_forward.4} parent=50 // loop_body
                  %v196 = vld [vmem:[%s194] sm:$0xff]
                  %197 = vst [vmem:[%s195] sm:$0xff] %v196
                  %v198 = vld [vmem:[%s194 + $0x8] sm:$0xff]
                  %199 = vst [vmem:[%s195 + $0x8] sm:$0xff] %v198
                  %v200 = vld [vmem:[%s194 + $0x10] sm:$0xff]
                  %201 = vst [vmem:[%s195 + $0x10] sm:$0xff] %v200
                  %v202 = vld [vmem:[%s194 + $0x18] sm:$0xff]
                  %203 = vst [vmem:[%s195 + $0x18] sm:$0xff] %v202
                  %v204 = vld [vmem:[%s194 + $0x40] sm:$0xff]
                  %205 = vst [vmem:[%s195 + $0x20] sm:$0xff] %v204
                  %v206 = vld [vmem:[%s194 + $0x48] sm:$0xff]
                  %207 = vst [vmem:[%s195 + $0x28] sm:$0xff] %v206
                  %v208 = vld [vmem:[%s194 + $0x50] sm:$0xff]
                  %209 = vst [vmem:[%s195 + $0x30] sm:$0xff] %v208
                  %v210 = vld [vmem:[%s194 + $0x58] sm:$0xff]
                  %211 = vst [vmem:[%s195 + $0x38] sm:$0xff] %v210
                  %v212 = vld [vmem:[%s194 + $0x80] sm:$0xff]
                  %213 = vst [vmem:[%s195 + $0x40] sm:$0xff] %v212
                  %v214 = vld [vmem:[%s194 + $0x88] sm:$0xff]
                  %215 = vst [vmem:[%s195 + $0x48] sm:$0xff] %v214
                  %v216 = vld [vmem:[%s194 + $0x90] sm:$0xff]
                  %217 = vst [vmem:[%s195 + $0x50] sm:$0xff] %v216
                  %v218 = vld [vmem:[%s194 + $0x98] sm:$0xff]
                  %219 = vst [vmem:[%s195 + $0x58] sm:$0xff] %v218
                  %v220 = vld [vmem:[%s194 + $0xc0] sm:$0xff]
                  %221 = vst [vmem:[%s195 + $0x60] sm:$0xff] %v220
                  %v222 = vld [vmem:[%s194 + $0xc8] sm:$0xff]
                  %223 = vst [vmem:[%s195 + $0x68] sm:$0xff] %v222
                  %v224 = vld [vmem:[%s194 + $0xd0] sm:$0xff]
                  %225 = vst [vmem:[%s195 + $0x70] sm:$0xff] %v224
                  %v226 = vld [vmem:[%s194 + $0xd8] sm:$0xff]
                  %227 = vst [vmem:[%s195 + $0x78] sm:$0xff] %v226
                $region56: #{lenet5_forward.4} parent=50 // loop_footer
                  %s193 = sadd.s32 1, %s189
                $region57: #{lenet5_forward.4} parent=50 // loop_footer_branch
                  %188 = sbr.rel target = $region53
                $region58: #{lenet5_forward.4} parent=50 // loop_exit
                  _
              $region51: #{lenet5_forward.4} parent=35 // pred_fallthru
                _
              // Predicated region
              $region59: #{lenet5_forward.4} parent=35 // pred_check
                _
              $region60: #{lenet5_forward.4} parent=35 // pred_check_branch
                %229 = sbr.rel target = $region62
              $region61: #{lenet5_forward.4} parent=35 // pred_region
                _
              $region62: #{lenet5_forward.4} parent=35 // pred_fallthru
                _
            $region36: #{lenet5_forward.4} parent=31 // pred_fallthru
              _
            // Predicated region
            $region37: #{lenet5_forward.4} parent=31 // pred_check
              _
            $region38: #{lenet5_forward.4} parent=31 // pred_check_branch
              %144 = sbr.rel target = $region40
            $region39: #{lenet5_forward.4} parent=31 // pred_region
              loop: start=0, step=1, limit=1
              $region41: #{lenet5_forward.4} parent=39 // loop_pre_header
                _
              $region42: #{lenet5_forward.4} parent=39 // loop_header
                %s147 = sphi 0, %s151
                %p148 = scmp.ge.s32.totalorder %s147, 1
                %s152 = sphi %s138, %s138
                %s153 = sphi %s134, %s134
              $region43: #{lenet5_forward.4} parent=39 // loop_header_branch
                %150 = sbr.rel (%p148) target = $region47
              $region44: #{lenet5_forward.4} parent=39 // loop_body
                %v154 = vld [vmem:[%s152] sm:$0xff]
                %155 = vst [vmem:[%s153] sm:$0xff] %v154
                %v156 = vld [vmem:[%s152 + $0x8] sm:$0xff]
                %157 = vst [vmem:[%s153 + $0x8] sm:$0xff] %v156
                %v158 = vld [vmem:[%s152 + $0x10] sm:$0xff]
                %159 = vst [vmem:[%s153 + $0x10] sm:$0xff] %v158
                %v160 = vld [vmem:[%s152 + $0x18] sm:$0xff]
                %161 = vst [vmem:[%s153 + $0x18] sm:$0xff] %v160
                %v162 = vld [vmem:[%s152 + $0x40] sm:$0xff]
                %163 = vst [vmem:[%s153 + $0x20] sm:$0xff] %v162
                %v164 = vld [vmem:[%s152 + $0x48] sm:$0xff]
                %165 = vst [vmem:[%s153 + $0x28] sm:$0xff] %v164
                %v166 = vld [vmem:[%s152 + $0x50] sm:$0xff]
                %167 = vst [vmem:[%s153 + $0x30] sm:$0xff] %v166
                %v168 = vld [vmem:[%s152 + $0x58] sm:$0xff]
                %169 = vst [vmem:[%s153 + $0x38] sm:$0xff] %v168
                %v170 = vld [vmem:[%s152 + $0x80] sm:$0xff]
                %171 = vst [vmem:[%s153 + $0x40] sm:$0xff] %v170
                %v172 = vld [vmem:[%s152 + $0x88] sm:$0xff]
                %173 = vst [vmem:[%s153 + $0x48] sm:$0xff] %v172
                %v174 = vld [vmem:[%s152 + $0x90] sm:$0xff]
                %175 = vst [vmem:[%s153 + $0x50] sm:$0xff] %v174
                %v176 = vld [vmem:[%s152 + $0x98] sm:$0xff]
                %177 = vst [vmem:[%s153 + $0x58] sm:$0xff] %v176
                %v178 = vld [vmem:[%s152 + $0xc0] sm:$0xff]
                %179 = vst [vmem:[%s153 + $0x60] sm:$0xff] %v178
                %v180 = vld [vmem:[%s152 + $0xc8] sm:$0xff]
                %181 = vst [vmem:[%s153 + $0x68] sm:$0xff] %v180
                %v182 = vld [vmem:[%s152 + $0xd0] sm:$0xff]
                %183 = vst [vmem:[%s153 + $0x70] sm:$0xff] %v182
                %v184 = vld [vmem:[%s152 + $0xd8] sm:$0xff]
                %185 = vst [vmem:[%s153 + $0x78] sm:$0xff] %v184
              $region45: #{lenet5_forward.4} parent=39 // loop_footer
                %s151 = sadd.s32 1, %s147
              $region46: #{lenet5_forward.4} parent=39 // loop_footer_branch
                %146 = sbr.rel target = $region42
              $region47: #{lenet5_forward.4} parent=39 // loop_exit
                _
            $region40: #{lenet5_forward.4} parent=31 // pred_fallthru
              _
          $region32: #{lenet5_forward.4} parent=27 // pred_fallthru
            _
          %230 = vnop
        $region28: #{lenet5_forward.4} parent=23 // pred_fallthru
          _
      $region24: #{lenet5_forward.4} parent=5 // pred_fallthru
        _
      %p231 = scmp.le.s32.totalorder 1, %s9
      %p232 = scmp.lt.s32.totalorder %s9, 3
      %p233 = pnand %p231, %p232
      %p234 = pneg %p233
      // Predicated region
      $region63: #{lenet5_forward.4} parent=5 // pred_check
        _
      $region64: #{lenet5_forward.4} parent=5 // pred_check_branch
        %236 = sbr.rel (%p233) target = $region66
      $region65: #{lenet5_forward.4} parent=5 // pred_region
        %s237 = ssub.s32 %s9, 1
        %s238 = sand.u32 %s22, 1
        %s239 = sand.u32 %s22, 1
        %s240 = smul.addr %s239, 128
        %s241 = scalar_lea.vmem [#allocation2], %s240
        // Predicated region
        $region67: #{lenet5_forward.4} parent=65 // pred_check
          %p242 = pneg %p35
        $region68: #{lenet5_forward.4} parent=65 // pred_check_branch
          %244 = sbr.rel (%p242) target = $region70
        $region69: #{lenet5_forward.4} parent=65 // pred_region
          _
        $region70: #{lenet5_forward.4} parent=65 // pred_fallthru
          _
        %s245 = sand.u32 %s22, 1
        %s246 = sand.u32 %s22, 1
        %s247 = smul.addr %s246, 128
        %s248 = scalar_lea.vmem [#allocation2], %s247
        %p249 = pneg %p35
        %p250 = pneg %p32
        %p251 = pneg %p56
        %p252 = pneg %p53
        %p253 = pneg %p77
        %p254 = pneg %p74
        %p255 = pneg %p103
        %p256 = pneg %p100
        %s257 = smul.u32 4, %s14
        %p258 = scmp.lt.s32.totalorder %s257, 7
        %s259 = scalar_select %p258, %s257, 7
        %s260 = smul.addr %s259, 4
        %s261 = scalar_lea.vmem %s3, %s260
        %s262 = smul.u32 4, %s14
        %s263 = smul.u32 4, %s14
        %p264 = scmp.lt.s32.totalorder %s263, 7
        %s265 = scalar_select %p264, %s263, 7
        %s266 = smul.addr %s265, 4
        %s267 = scalar_lea.vmem %s3, %s266
        %s268 = smul.u32 4, %s14
        %v270 = vld [vmem:[%s241] sm:$0xff]
        %v271 = vld [vmem:[%s241 + $0x8] sm:$0xff]
        %v272 = vld [vmem:[%s241 + $0x10] sm:$0xff]
        %v273 = vld [vmem:[%s241 + $0x18] sm:$0xff]
        %v274 = vld [vmem:[%s241 + $0x20] sm:$0xff]
        %v275 = vld [vmem:[%s241 + $0x28] sm:$0xff]
        %v276 = vld [vmem:[%s241 + $0x30] sm:$0xff]
        %v277 = vld [vmem:[%s241 + $0x38] sm:$0xff]
        %v278 = vld [vmem:[%s241 + $0x40] sm:$0xff]
        %v279 = vld [vmem:[%s241 + $0x48] sm:$0xff]
        %v280 = vld [vmem:[%s241 + $0x50] sm:$0xff]
        %v281 = vld [vmem:[%s241 + $0x58] sm:$0xff]
        %v282 = vld [vmem:[%s241 + $0x60] sm:$0xff]
        %v283 = vld [vmem:[%s241 + $0x68] sm:$0xff]
        %v284 = vld [vmem:[%s241 + $0x70] sm:$0xff]
        %v285 = vld [vmem:[%s241 + $0x78] sm:$0xff]
        %v286 = vld [vmem:[%s1] sm:$0xf]
        %v287 = vld [vmem:[%s1 + $0x4] sm:$0xf]
        %v288 = vld [vmem:[%s1 + $0x8] sm:$0xf]
        %v289 = vld [vmem:[%s1 + $0xc] sm:$0xf]
        %v290 = vld [vmem:[%s1 + $0x10] sm:$0xf]
        %v291 = vld [vmem:[%s1 + $0x14] sm:$0xf]
        %v292 = vld [vmem:[%s1 + $0x18] sm:$0xf]
        %v293 = vld [vmem:[%s1 + $0x1c] sm:$0xf]
        %v294 = vld [vmem:[%s1 + $0x20] sm:$0xf]
        %v295 = vld [vmem:[%s1 + $0x24] sm:$0xf]
        %v296 = vld [vmem:[%s1 + $0x28] sm:$0xf]
        %v297 = vld [vmem:[%s1 + $0x2c] sm:$0xf]
        %v298 = vld [vmem:[%s1 + $0x30] sm:$0xf]
        %v299 = vld [vmem:[%s1 + $0x34] sm:$0xf]
        %v300 = vld [vmem:[%s1 + $0x38] sm:$0xf]
        %v301 = vld [vmem:[%s1 + $0x3c] sm:$0xf]
        %v302 = vld [vmem:[%s1 + $0x40] sm:$0xf]
        %v303 = vld [vmem:[%s1 + $0x44] sm:$0xf]
        %v304 = vld [vmem:[%s1 + $0x48] sm:$0xf]
        %v305 = vld [vmem:[%s1 + $0x4c] sm:$0xf]
        %v322 = vunpack.c.l.b16 %v270
        %v323 = vunpack.c.h.b16 %v270
        %v324 = vunpack.c.l.b16 %v271
        %v325 = vunpack.c.h.b16 %v271
        %v326 = vunpack.c.l.b16 %v272
        %v327 = vunpack.c.h.b16 %v272
        %v328 = vunpack.c.l.b16 %v273
        %v329 = vunpack.c.h.b16 %v273
        %v330 = vunpack.c.l.b16 %v274
        %v331 = vunpack.c.h.b16 %v274
        %v332 = vunpack.c.l.b16 %v275
        %v333 = vunpack.c.h.b16 %v275
        %v334 = vunpack.c.l.b16 %v276
        %v335 = vunpack.c.h.b16 %v276
        %v336 = vunpack.c.l.b16 %v277
        %v337 = vunpack.c.h.b16 %v277
        %v338 = vunpack.c.l.b16 %v278
        %v339 = vunpack.c.h.b16 %v278
        %v340 = vunpack.c.l.b16 %v279
        %v341 = vunpack.c.h.b16 %v279
        %v342 = vunpack.c.l.b16 %v280
        %v343 = vunpack.c.h.b16 %v280
        %v344 = vunpack.c.l.b16 %v281
        %v345 = vunpack.c.h.b16 %v281
        %v346 = vunpack.c.l.b16 %v282
        %v347 = vunpack.c.h.b16 %v282
        %v348 = vunpack.c.l.b16 %v283
        %v349 = vunpack.c.h.b16 %v283
        %v350 = vunpack.c.l.b16 %v284
        %v351 = vunpack.c.h.b16 %v284
        %v352 = vunpack.c.l.b16 %v285
        %v353 = vunpack.c.h.b16 %v285
        %v354 = vpack.c.b16 %v324, %v322
        %v355 = vpack.c.b16 %v325, %v323
        %v356 = vpack.c.b16 %v328, %v326
        %v357 = vpack.c.b16 %v329, %v327
        %v358 = vpack.c.b16 %v332, %v330
        %v359 = vpack.c.b16 %v333, %v331
        %v360 = vpack.c.b16 %v336, %v334
        %v361 = vpack.c.b16 %v337, %v335
        %v362 = vpack.c.b16 %v340, %v338
        %v363 = vpack.c.b16 %v341, %v339
        %v364 = vpack.c.b16 %v344, %v342
        %v365 = vpack.c.b16 %v345, %v343
        %v366 = vpack.c.b16 %v348, %v346
        %v367 = vpack.c.b16 %v349, %v347
        %v368 = vpack.c.b16 %v352, %v350
        %v369 = vpack.c.b16 %v353, %v351
        %v398 = vunpack.c.l.b16 %v286
        %v399 = vunpack.c.l.b16 %v287
        %v400 = vunpack.c.l.b16 %v288
        %v401 = vunpack.c.l.b16 %v289
        %v402 = vunpack.c.l.b16 %v290
        %v403 = vunpack.c.l.b16 %v291
        %v404 = vunpack.c.l.b16 %v292
        %v405 = vunpack.c.l.b16 %v293
        %v406 = vunpack.c.l.b16 %v294
        %v407 = vunpack.c.l.b16 %v295
        %v408 = vunpack.c.l.b16 %v296
        %v409 = vunpack.c.l.b16 %v297
        %v410 = vunpack.c.l.b16 %v298
        %v411 = vunpack.c.l.b16 %v299
        %v412 = vunpack.c.l.b16 %v300
        %v413 = vunpack.c.l.b16 %v301
        %v414 = vunpack.c.l.b16 %v302
        %v415 = vunpack.c.l.b16 %v303
        %v416 = vunpack.c.l.b16 %v304
        %v417 = vunpack.c.l.b16 %v305
        %v418 = vpack.c.b16 %v399, %v398
        %v419 = vpack.c.b16 %v401, %v400
        %v420 = vpack.c.b16 %v403, %v402
        %v421 = vpack.c.b16 %v405, %v404
        %v422 = vpack.c.b16 %v407, %v406
        %v423 = vpack.c.b16 %v409, %v408
        %v424 = vpack.c.b16 %v411, %v410
        %v425 = vpack.c.b16 %v413, %v412
        %v426 = vpack.c.b16 %v415, %v414
        %v427 = vpack.c.b16 %v417, %v416
        %vm438 = vcmask 261120
        %v440 = vsel %vm438, %v355, 0
        %v443 = vsel %vm438, %v357, 0
        %v446 = vsel %vm438, %v359, 0
        %v449 = vsel %vm438, %v361, 0
        %v452 = vsel %vm438, %v363, 0
        %v455 = vsel %vm438, %v365, 0
        %v458 = vsel %vm438, %v367, 0
        %v461 = vsel %vm438, %v369, 0
        %463 = vmatprep.subr.bf16.mxu0 0
        %464 = vmatpush1.bf16.msra.mxu0 %v418
        %465 = vmatprep.subr.bf16.mxu0 0
        %466 = vmatpush1.bf16.msra.mxu0 %v419
        %467 = vmatprep.subr.bf16.mxu0 0
        %468 = vmatpush1.bf16.msra.mxu0 %v420
        %469 = vmatprep.subr.bf16.mxu0 0
        %470 = vmatpush1.bf16.msra.mxu0 %v421
        %471 = vmatprep.subr.bf16.mxu0 0
        %472 = vmatpush1.bf16.msra.mxu0 %v422
        %473 = vmatprep.subr.bf16.mxu0 0
        %474 = vmatpush1.bf16.msra.mxu0 %v423
        %475 = vmatprep.subr.bf16.mxu0 0
        %476 = vmatpush1.bf16.msra.mxu0 %v424
        %477 = vmatprep.subr.bf16.mxu0 0
        %478 = vmatpush1.bf16.msra.mxu0 %v425
        %479 = vmatprep.subr.bf16.mxu0 0
        %480 = vmatpush1.bf16.msra.mxu0 %v426
        %481 = vmatprep.subr.bf16.mxu0 0
        %482 = vmatpush1.bf16.msra.mxu0 %v427
        %483 = vmatprep.subr.bf16.mxu0 0
        %484 = vmatpush1.bf16.msra.mxu0 0
        %485 = vmatprep.subr.bf16.mxu0 0
        %486 = vmatpush1.bf16.msra.mxu0 0
        %487 = vmatprep.subr.bf16.mxu0 0
        %488 = vmatpush1.bf16.msra.mxu0 0
        %489 = vmatprep.subr.bf16.mxu0 0
        %490 = vmatpush1.bf16.msra.mxu0 0
        %491 = vmatprep.subr.bf16.mxu0 0
        %492 = vmatpush1.bf16.msra.mxu0 0
        %493 = vmatprep.subr.bf16.mxu0 0
        %494 = vmatpush1.bf16.msra.mxu0 0
        %495 = vmatprep.mubr.bf16.mxu0 %v440
        %496 = vmatmul.mubr.bf16.gmra.mrb[0].mxu0 %v354
        %v497 = vpop.f32.mrb[0].mxu0
        %v498 = vadd.f32 0.0, %v497
        %v499 = vpop.f32.mrb[0].mxu0
        %v500 = vpop.f32.mrb[0].mxu0
        %v501 = vadd.f32 0.0, %v500
        %v502 = vpop.f32.mrb[0].mxu0
        %503 = vmatprep.mubr.bf16.mxu0 %v443
        %504 = vmatmul.mubr.bf16.gmra.mrb[0].mxu0 %v356
        %v505 = vpop.f32.mrb[0].mxu0
        %v506 = vadd.f32 0.0, %v505
        %v507 = vpop.f32.mrb[0].mxu0
        %v508 = vpop.f32.mrb[0].mxu0
        %v509 = vadd.f32 0.0, %v508
        %v510 = vpop.f32.mrb[0].mxu0
        %511 = vmatprep.mubr.bf16.mxu0 %v446
        %512 = vmatmul.mubr.bf16.gmra.mrb[0].mxu0 %v358
        %v513 = vpop.f32.mrb[0].mxu0
        %v514 = vadd.f32 0.0, %v513
        %v515 = vpop.f32.mrb[0].mxu0
        %v516 = vpop.f32.mrb[0].mxu0
        %v517 = vadd.f32 0.0, %v516
        %v518 = vpop.f32.mrb[0].mxu0
        %519 = vmatprep.mubr.bf16.mxu0 %v449
        %520 = vmatmul.mubr.bf16.gmra.mrb[0].mxu0 %v360
        %v521 = vpop.f32.mrb[0].mxu0
        %v522 = vadd.f32 0.0, %v521
        %v523 = vpop.f32.mrb[0].mxu0
        %v524 = vpop.f32.mrb[0].mxu0
        %v525 = vadd.f32 0.0, %v524
        %v526 = vpop.f32.mrb[0].mxu0
        %527 = vmatprep.mubr.bf16.mxu0 %v452
        %528 = vmatmul.mubr.bf16.gmra.mrb[0].mxu0 %v362
        %v529 = vpop.f32.mrb[0].mxu0
        %v530 = vadd.f32 0.0, %v529
        %v531 = vpop.f32.mrb[0].mxu0
        %v532 = vpop.f32.mrb[0].mxu0
        %v533 = vadd.f32 0.0, %v532
        %v534 = vpop.f32.mrb[0].mxu0
        %535 = vmatprep.mubr.bf16.mxu0 %v455
        %536 = vmatmul.mubr.bf16.gmra.mrb[0].mxu0 %v364
        %v537 = vpop.f32.mrb[0].mxu0
        %v538 = vadd.f32 0.0, %v537
        %v539 = vpop.f32.mrb[0].mxu0
        %v540 = vpop.f32.mrb[0].mxu0
        %v541 = vadd.f32 0.0, %v540
        %v542 = vpop.f32.mrb[0].mxu0
        %543 = vmatprep.mubr.bf16.mxu0 %v458
        %544 = vmatmul.mubr.bf16.gmra.mrb[0].mxu0 %v366
        %v545 = vpop.f32.mrb[0].mxu0
        %v546 = vadd.f32 0.0, %v545
        %v547 = vpop.f32.mrb[0].mxu0
        %v548 = vpop.f32.mrb[0].mxu0
        %v549 = vadd.f32 0.0, %v548
        %v550 = vpop.f32.mrb[0].mxu0
        %551 = vmatprep.mubr.bf16.mxu0 %v461
        %552 = vmatmul.mubr.bf16.gmra.mrb[0].mxu0 %v368
        %v553 = vpop.f32.mrb[0].mxu0
        %v554 = vadd.f32 0.0, %v553
        %v555 = vpop.f32.mrb[0].mxu0
        %v556 = vpop.f32.mrb[0].mxu0
        %v557 = vadd.f32 0.0, %v556
        %v558 = vpop.f32.mrb[0].mxu0
        %559 = vdwg.mxu0
        %v560 = vmax.f32 %v498, %v514
        %v561 = vmax.f32 %v560, %v530
        %v562 = vmax.f32 %v561, %v546
        %v563 = vmax.f32 %v501, %v517
        %v564 = vmax.f32 %v563, %v533
        %v565 = vmax.f32 %v564, %v549
        %v566 = vmax.f32 %v506, %v522
        %v567 = vmax.f32 %v566, %v538
        %v568 = vmax.f32 %v567, %v554
        %v569 = vmax.f32 %v509, %v525
        %v570 = vmax.f32 %v569, %v541
        %v571 = vmax.f32 %v570, %v557
        %v572 = vld [vmem:[%s2] sm:$0x1]
        %v574 = vlaneseq
        %v575 = vshrl.u32 %v574, 7
        %v576 = vsub.s32 0, %v575
        %v577 = vrot.slane %v572, %v576
        %v579 = vadd.f32 %v562, %v577
        %v580 = vadd.f32 %v565, %v577
        %v581 = vadd.f32 %v568, %v577
        %v582 = vadd.f32 %v571, %v577
        %v583 = vmax.f32 %v579, 0.0
        %v584 = vmax.f32 %v580, 0.0
        %v585 = vmax.f32 %v581, 0.0
        %v586 = vmax.f32 %v582, 0.0
        %v587 = vpack.c.bf16 %v584, %v583
        %v588 = vpack.c.bf16 %v586, %v585
        %v591 = vunpack.c.l.b16 %v587
        %v592 = vunpack.c.h.b16 %v587
        %v593 = vunpack.c.l.b16 %v588
        %v594 = vunpack.c.h.b16 %v588
        %v595 = vpack.c.b16 %v591, %v591
        %v596 = vpack.c.b16 %v592, %v592
        %v597 = vpack.c.b16 %v593, %v593
        %v598 = vpack.c.b16 %v594, %v594
        %603 = vst [vmem:[%s267] sm:$0xf] %v595
        %604 = vst [vmem:[%s267 + $0x4] sm:$0xf] %v596
        %605 = vst [vmem:[%s267 + $0x8] sm:$0xf] %v597
        %606 = vst [vmem:[%s267 + $0xc] sm:$0xf] %v598
        %s607 = smul.u32 4, %s14
        %p608 = scmp.lt.s32.totalorder %s607, 7
        %s609 = scalar_select %p608, %s607, 7
        %s610 = smul.addr %s609, 4
        %s611 = scalar_lea.vmem %s3, %s610
        // Predicated region
        $region71: #{lenet5_forward.4} parent=65 // pred_check
          %p612 = pneg %p100
        $region72: #{lenet5_forward.4} parent=65 // pred_check_branch
          %614 = sbr.rel (%p612) target = $region74
        $region73: #{lenet5_forward.4} parent=65 // pred_region
          %s615 = smul.u32 4, %s14
        $region74: #{lenet5_forward.4} parent=65 // pred_fallthru
          _
      $region66: #{lenet5_forward.4} parent=5 // pred_fallthru
        _
      %p616 = scmp.le.s32.totalorder 2, %s9
      // Predicated region
      $region75: #{lenet5_forward.4} parent=5 // pred_check
        %p617 = pneg %p616
      $region76: #{lenet5_forward.4} parent=5 // pred_check_branch
        %619 = sbr.rel (%p617) target = $region78
      $region77: #{lenet5_forward.4} parent=5 // pred_region
        %s620 = ssub.s32 %s9, 2
        // Predicated region
        $region79: #{lenet5_forward.4} parent=77 // pred_check
          %p621 = pneg %p106
        $region80: #{lenet5_forward.4} parent=77 // pred_check_branch
          %623 = sbr.rel (%p621) target = $region82
        $region81: #{lenet5_forward.4} parent=77 // pred_region
          %s624 = smul.u32 4, %s15
          %p625 = scmp.lt.s32.totalorder %s624, 7
          %s626 = scalar_select %p625, %s624, 7
          %s627 = smul.addr %s626, 4
          %s628 = scalar_lea.vmem %s3, %s627
        $region82: #{lenet5_forward.4} parent=77 // pred_fallthru
          _
      $region78: #{lenet5_forward.4} parent=5 // pred_fallthru
        _
    $region6: #{lenet5_forward.4} parent=1 // loop_footer
      %s13 = sadd.s32 1, %s9
    $region7: #{lenet5_forward.4} parent=1 // loop_footer_branch
      %8 = sbr.rel target = $region3
    $region8: #{lenet5_forward.4} parent=1 // loop_exit
      _

// kernel: lenet5_forward.5
$region0: #{lenet5_forward.5}
  #allocation0 [shape = 'u32[]', space=smem, size = 0x4, offset = 0x4, fixed_abs, tag = 'smem constant byte address 0x4 - core index']
  #allocation1 [shape = 'u32[144,128]{1,0:T(1,128)}', space=vmem, size = 0x12000, scoped, tag = 'internal scratch']
  %s0 = inlined_call_operand.vmem [shape: bf16[16,400], index: 0, kind: input, shape index: {}]
  %s1 = inlined_call_operand.vmem [shape: bf16[400,128], index: 1, kind: input, shape index: {}]
  %s2 = inlined_call_operand.vmem [shape: f32[1,128], index: 2, kind: input, shape index: {}]
  %s3 = inlined_call_operand.vmem [shape: bf16[128,128], index: 3, kind: input, shape index: {}]
  %s4 = inlined_call_operand.vmem [shape: f32[1,128], index: 4, kind: input, shape index: {}]
  %s5 = inlined_call_operand.vmem [shape: bf16[128,128], index: 5, kind: input, shape index: {}]
  %s6 = inlined_call_operand.vmem [shape: f32[1,128], index: 6, kind: input, shape index: {}]
  %s7 = inlined_call_operand.vmem [shape: f32[16,128], index: 7, kind: output, shape index: {}]
  %s8 = sld [smem:[#allocation0]]
  $region38: #{lenet5_forward.5} parent=0
    _
  %s10 = ssub.s32 1, %s8
  %s11 = scalar_select 0, %s10, %s8
  // Predicated region
  $region2: #{lenet5_forward.5} parent=0 // pred_check
    _
  $region3: #{lenet5_forward.5} parent=0 // pred_check_branch
    %13 = sbr.rel (0) target = $region5
  $region4: #{lenet5_forward.5} parent=0 // pred_region
    _
  $region5: #{lenet5_forward.5} parent=0 // pred_fallthru
    _
  // Predicated region
  $region6: #{lenet5_forward.5} parent=0 // pred_check
    _
  $region7: #{lenet5_forward.5} parent=0 // pred_check_branch
    %15 = sbr.rel (0) target = $region9
  $region8: #{lenet5_forward.5} parent=0 // pred_region
    _
  $region9: #{lenet5_forward.5} parent=0 // pred_fallthru
    _
  // Predicated region
  $region10: #{lenet5_forward.5} parent=0 // pred_check
    _
  $region11: #{lenet5_forward.5} parent=0 // pred_check_branch
    %17 = sbr.rel (0) target = $region13
  $region12: #{lenet5_forward.5} parent=0 // pred_region
    _
  $region13: #{lenet5_forward.5} parent=0 // pred_fallthru
    _
  // Predicated region
  $region14: #{lenet5_forward.5} parent=0 // pred_check
    _
  $region15: #{lenet5_forward.5} parent=0 // pred_check_branch
    %19 = sbr.rel (0) target = $region17
  $region16: #{lenet5_forward.5} parent=0 // pred_region
    _
  $region17: #{lenet5_forward.5} parent=0 // pred_fallthru
    _
  // Predicated region
  $region18: #{lenet5_forward.5} parent=0 // pred_check
    _
  $region19: #{lenet5_forward.5} parent=0 // pred_check_branch
    %21 = sbr.rel (0) target = $region21
  $region20: #{lenet5_forward.5} parent=0 // pred_region
    _
  $region21: #{lenet5_forward.5} parent=0 // pred_fallthru
    _
  // Predicated region
  $region22: #{lenet5_forward.5} parent=0 // pred_check
    _
  $region23: #{lenet5_forward.5} parent=0 // pred_check_branch
    %23 = sbr.rel (0) target = $region25
  $region24: #{lenet5_forward.5} parent=0 // pred_region
    _
  $region25: #{lenet5_forward.5} parent=0 // pred_fallthru
    _
  // Predicated region
  $region26: #{lenet5_forward.5} parent=0 // pred_check
    _
  $region27: #{lenet5_forward.5} parent=0 // pred_check_branch
    %25 = sbr.rel (0) target = $region29
  $region28: #{lenet5_forward.5} parent=0 // pred_region
    _
  $region29: #{lenet5_forward.5} parent=0 // pred_fallthru
    _
  %v27 = vld [vmem:[%s0] sm:$0xff]
  %v28 = vld [vmem:[%s0 + $0x8] sm:$0xff]
  %v29 = vld [vmem:[%s0 + $0x10] sm:$0xff]
  %v30 = vld [vmem:[%s0 + $0x18] sm:$0xff]
  %v31 = vld [vmem:[%s1] sm:$0xf]
  %v32 = vld [vmem:[%s1 + $0x4] sm:$0xf]
  %v33 = vld [vmem:[%s1 + $0x8] sm:$0xf]
  %v34 = vld [vmem:[%s1 + $0xc] sm:$0xf]
  %v35 = vld [vmem:[%s1 + $0x10] sm:$0xf]
  %v36 = vld [vmem:[%s1 + $0x14] sm:$0xf]
  %v37 = vld [vmem:[%s1 + $0x18] sm:$0xf]
  %v38 = vld [vmem:[%s1 + $0x1c] sm:$0xf]
  %v39 = vld [vmem:[%s1 + $0x20] sm:$0xf]
  %v40 = vld [vmem:[%s1 + $0x24] sm:$0xf]
  %v41 = vld [vmem:[%s1 + $0x28] sm:$0xf]
  %v42 = vld [vmem:[%s1 + $0x2c] sm:$0xf]
  %v43 = vld [vmem:[%s1 + $0x30] sm:$0xf]
  %v44 = vld [vmem:[%s1 + $0x34] sm:$0xf]
  %v45 = vld [vmem:[%s1 + $0x38] sm:$0xf]
  %v46 = vld [vmem:[%s1 + $0x3c] sm:$0xf]
  %v47 = vld [vmem:[%s1 + $0x40] sm:$0xf]
  %v48 = vld [vmem:[%s1 + $0x44] sm:$0xf]
  %v49 = vld [vmem:[%s1 + $0x48] sm:$0xf]
  %v50 = vld [vmem:[%s1 + $0x4c] sm:$0xf]
  %v51 = vld [vmem:[%s1 + $0x50] sm:$0xf]
  %v52 = vld [vmem:[%s1 + $0x54] sm:$0xf]
  %v53 = vld [vmem:[%s1 + $0x58] sm:$0xf]
  %v54 = vld [vmem:[%s1 + $0x5c] sm:$0xf]
  %v55 = vld [vmem:[%s1 + $0x60] sm:$0xf]
  %v56 = vld [vmem:[%s1 + $0x64] sm:$0xf]
  %v57 = vld [vmem:[%s1 + $0x68] sm:$0xf]
  %v58 = vld [vmem:[%s1 + $0x6c] sm:$0xf]
  %v59 = vld [vmem:[%s1 + $0x70] sm:$0xf]
  %v60 = vld [vmem:[%s1 + $0x74] sm:$0xf]
  %v61 = vld [vmem:[%s1 + $0x78] sm:$0xf]
  %v62 = vld [vmem:[%s1 + $0x7c] sm:$0xf]
  %v63 = vld [vmem:[%s1 + $0x80] sm:$0xf]
  %v64 = vld [vmem:[%s1 + $0x84] sm:$0xf]
  %v65 = vld [vmem:[%s1 + $0x88] sm:$0xf]
  %v66 = vld [vmem:[%s1 + $0x8c] sm:$0xf]
  %v67 = vld [vmem:[%s1 + $0x90] sm:$0xf]
  %v68 = vld [vmem:[%s1 + $0x94] sm:$0xf]
  %v69 = vld [vmem:[%s1 + $0x98] sm:$0xf]
  %v70 = vld [vmem:[%s1 + $0x9c] sm:$0xf]
  %v71 = vld [vmem:[%s1 + $0xa0] sm:$0xf]
  %v72 = vld [vmem:[%s1 + $0xa4] sm:$0xf]
  %v73 = vld [vmem:[%s1 + $0xa8] sm:$0xf]
  %v74 = vld [vmem:[%s1 + $0xac] sm:$0xf]
  %v75 = vld [vmem:[%s1 + $0xb0] sm:$0xf]
  %v76 = vld [vmem:[%s1 + $0xb4] sm:$0xf]
  %v77 = vld [vmem:[%s1 + $0xb8] sm:$0xf]
  %v78 = vld [vmem:[%s1 + $0xbc] sm:$0xf]
  %v79 = vld [vmem:[%s1 + $0xc0] sm:$0xf]
  %v80 = vld [vmem:[%s1 + $0xc4] sm:$0xf]
  %v81 = vld [vmem:[%s2] sm:$0x1]
  %v83 = vlaneseq
  %v84 = vshrl.u32 %v83, 7
  %v85 = vsub.s32 0, %v84
  %v86 = vrot.slane %v81, %v85
  %v92 = vunpack.c.l.b16 %v27
  %v93 = vunpack.c.h.b16 %v27
  %v94 = vunpack.c.l.b16 %v28
  %v95 = vunpack.c.h.b16 %v28
  %v96 = vunpack.c.l.b16 %v29
  %v97 = vunpack.c.h.b16 %v29
  %v98 = vunpack.c.l.b16 %v30
  %v99 = vunpack.c.h.b16 %v30
  %v100 = vpack.c.b16 %v96, %v92
  %v101 = vpack.c.b16 %v97, %v93
  %v102 = vpack.c.b16 %v98, %v94
  %v103 = vpack.c.b16 %v99, %v95
  %v157 = vunpack.c.l.b16 %v31
  %v158 = vunpack.c.l.b16 %v32
  %v159 = vunpack.c.l.b16 %v33
  %v160 = vunpack.c.l.b16 %v34
  %v161 = vunpack.c.l.b16 %v35
  %v162 = vunpack.c.l.b16 %v36
  %v163 = vunpack.c.l.b16 %v37
  %v164 = vunpack.c.l.b16 %v38
  %v165 = vunpack.c.l.b16 %v39
  %v166 = vunpack.c.l.b16 %v40
  %v167 = vunpack.c.l.b16 %v41
  %v168 = vunpack.c.l.b16 %v42
  %v169 = vunpack.c.l.b16 %v43
  %v170 = vunpack.c.l.b16 %v44
  %v171 = vunpack.c.l.b16 %v45
  %v172 = vunpack.c.l.b16 %v46
  %v173 = vunpack.c.l.b16 %v47
  %v174 = vunpack.c.l.b16 %v48
  %v175 = vunpack.c.l.b16 %v49
  %v176 = vunpack.c.l.b16 %v50
  %v177 = vunpack.c.l.b16 %v51
  %v178 = vunpack.c.l.b16 %v52
  %v179 = vunpack.c.l.b16 %v53
  %v180 = vunpack.c.l.b16 %v54
  %v181 = vunpack.c.l.b16 %v55
  %v182 = vunpack.c.l.b16 %v56
  %v183 = vunpack.c.l.b16 %v57
  %v184 = vunpack.c.l.b16 %v58
  %v185 = vunpack.c.l.b16 %v59
  %v186 = vunpack.c.l.b16 %v60
  %v187 = vunpack.c.l.b16 %v61
  %v188 = vunpack.c.l.b16 %v62
  %v189 = vunpack.c.l.b16 %v63
  %v190 = vunpack.c.l.b16 %v64
  %v191 = vunpack.c.l.b16 %v65
  %v192 = vunpack.c.l.b16 %v66
  %v193 = vunpack.c.l.b16 %v67
  %v194 = vunpack.c.l.b16 %v68
  %v195 = vunpack.c.l.b16 %v69
  %v196 = vunpack.c.l.b16 %v70
  %v197 = vunpack.c.l.b16 %v71
  %v198 = vunpack.c.l.b16 %v72
  %v199 = vunpack.c.l.b16 %v73
  %v200 = vunpack.c.l.b16 %v74
  %v201 = vunpack.c.l.b16 %v75
  %v202 = vunpack.c.l.b16 %v76
  %v203 = vunpack.c.l.b16 %v77
  %v204 = vunpack.c.l.b16 %v78
  %v205 = vunpack.c.l.b16 %v79
  %v206 = vunpack.c.l.b16 %v80
  %v207 = vpack.c.b16 %v158, %v157
  %v208 = vpack.c.b16 %v160, %v159
  %v209 = vpack.c.b16 %v162, %v161
  %v210 = vpack.c.b16 %v164, %v163
  %v211 = vpack.c.b16 %v166, %v165
  %v212 = vpack.c.b16 %v168, %v167
  %v213 = vpack.c.b16 %v170, %v169
  %v214 = vpack.c.b16 %v172, %v171
  %v215 = vpack.c.b16 %v174, %v173
  %v216 = vpack.c.b16 %v176, %v175
  %v217 = vpack.c.b16 %v178, %v177
  %v218 = vpack.c.b16 %v180, %v179
  %v219 = vpack.c.b16 %v182, %v181
  %v220 = vpack.c.b16 %v184, %v183
  %v221 = vpack.c.b16 %v186, %v185
  %v222 = vpack.c.b16 %v188, %v187
  %v223 = vpack.c.b16 %v190, %v189
  %v224 = vpack.c.b16 %v192, %v191
  %v225 = vpack.c.b16 %v194, %v193
  %v226 = vpack.c.b16 %v196, %v195
  %v227 = vpack.c.b16 %v198, %v197
  %v228 = vpack.c.b16 %v200, %v199
  %v229 = vpack.c.b16 %v202, %v201
  %v230 = vpack.c.b16 %v204, %v203
  %v231 = vpack.c.b16 %v206, %v205
  %vm257 = vcmask 130048
  %v259 = vsel %vm257, %v103, 0
  %261 = vmatprep.subr.bf16.mxu0 0
  %262 = vmatpush1.bf16.msra.mxu0 %v207
  %263 = vmatprep.subr.bf16.mxu0 0
  %264 = vmatpush1.bf16.msra.mxu0 %v208
  %265 = vmatprep.subr.bf16.mxu0 0
  %266 = vmatpush1.bf16.msra.mxu0 %v209
  %267 = vmatprep.subr.bf16.mxu0 0
  %268 = vmatpush1.bf16.msra.mxu0 %v210
  %269 = vmatprep.subr.bf16.mxu0 0
  %270 = vmatpush1.bf16.msra.mxu0 %v211
  %271 = vmatprep.subr.bf16.mxu0 0
  %272 = vmatpush1.bf16.msra.mxu0 %v212
  %273 = vmatprep.subr.bf16.mxu0 0
  %274 = vmatpush1.bf16.msra.mxu0 %v213
  %275 = vmatprep.subr.bf16.mxu0 0
  %276 = vmatpush1.bf16.msra.mxu0 %v214
  %277 = vmatprep.subr.bf16.mxu0 0
  %278 = vmatpush1.bf16.msra.mxu0 %v215
  %279 = vmatprep.subr.bf16.mxu0 0
  %280 = vmatpush1.bf16.msra.mxu0 %v216
  %281 = vmatprep.subr.bf16.mxu0 0
  %282 = vmatpush1.bf16.msra.mxu0 %v217
  %283 = vmatprep.subr.bf16.mxu0 0
  %284 = vmatpush1.bf16.msra.mxu0 %v218
  %285 = vmatprep.subr.bf16.mxu0 0
  %286 = vmatpush1.bf16.msra.mxu0 %v219
  %287 = vmatprep.subr.bf16.mxu0 0
  %288 = vmatpush1.bf16.msra.mxu0 %v220
  %289 = vmatprep.subr.bf16.mxu0 0
  %290 = vmatpush1.bf16.msra.mxu0 %v221
  %291 = vmatprep.subr.bf16.mxu0 0
  %292 = vmatpush1.bf16.msra.mxu0 %v222
  %293 = vmatprep.mubr.bf16.mxu0 %v101
  %294 = vmatmul.mubr.bf16.gmra.mrb[0].mxu0 %v100
  %v295 = vpop.f32.mrb[0].mxu0
  %v296 = vadd.f32 %v86, %v295
  %v297 = vpop.f32.mrb[0].mxu0
  %v298 = vpop.f32.mrb[0].mxu0
  %v299 = vadd.f32 %v86, %v298
  %v300 = vpop.f32.mrb[0].mxu0
  %301 = vdwg.mxu0
  %302 = vmatprep.subr.bf16.mxu0 0
  %303 = vmatpush1.bf16.msra.mxu0 %v223
  %304 = vmatprep.subr.bf16.mxu0 0
  %305 = vmatpush1.bf16.msra.mxu0 %v224
  %306 = vmatprep.subr.bf16.mxu0 0
  %307 = vmatpush1.bf16.msra.mxu0 %v225
  %308 = vmatprep.subr.bf16.mxu0 0
  %309 = vmatpush1.bf16.msra.mxu0 %v226
  %310 = vmatprep.subr.bf16.mxu0 0
  %311 = vmatpush1.bf16.msra.mxu0 %v227
  %312 = vmatprep.subr.bf16.mxu0 0
  %313 = vmatpush1.bf16.msra.mxu0 %v228
  %314 = vmatprep.subr.bf16.mxu0 0
  %315 = vmatpush1.bf16.msra.mxu0 %v229
  %316 = vmatprep.subr.bf16.mxu0 0
  %317 = vmatpush1.bf16.msra.mxu0 %v230
  %318 = vmatprep.subr.bf16.mxu0 0
  %319 = vmatpush1.bf16.msra.mxu0 %v231
  %320 = vmatprep.subr.bf16.mxu0 0
  %321 = vmatpush1.bf16.msra.mxu0 0
  %322 = vmatprep.subr.bf16.mxu0 0
  %323 = vmatpush1.bf16.msra.mxu0 0
  %324 = vmatprep.subr.bf16.mxu0 0
  %325 = vmatpush1.bf16.msra.mxu0 0
  %326 = vmatprep.subr.bf16.mxu0 0
  %327 = vmatpush1.bf16.msra.mxu0 0
  %328 = vmatprep.subr.bf16.mxu0 0
  %329 = vmatpush1.bf16.msra.mxu0 0
  %330 = vmatprep.subr.bf16.mxu0 0
  %331 = vmatpush1.bf16.msra.mxu0 0
  %332 = vmatprep.subr.bf16.mxu0 0
  %333 = vmatpush1.bf16.msra.mxu0 0
  %334 = vmatprep.mubr.bf16.mxu0 %v259
  %335 = vmatmul.mubr.bf16.gmra.mrb[0].mxu0 %v102
  %v336 = vpop.f32.mrb[0].mxu0
  %v337 = vadd.f32 %v296, %v336
  %v338 = vpop.f32.mrb[0].mxu0
  %v339 = vpop.f32.mrb[0].mxu0
  %v340 = vadd.f32 %v299, %v339
  %v341 = vpop.f32.mrb[0].mxu0
  %342 = vdwg.mxu0
  %v343 = vmax.f32 %v337, 0.0
  %v344 = vmax.f32 %v340, 0.0
  %v345 = vpack.c.bf16 %v344, %v343
  %v346 = vld [vmem:[%s3] sm:$0xf]
  %v347 = vld [vmem:[%s3 + $0x4] sm:$0xf]
  %v348 = vld [vmem:[%s3 + $0x8] sm:$0xf]
  %v349 = vld [vmem:[%s3 + $0xc] sm:$0xf]
  %v350 = vld [vmem:[%s3 + $0x10] sm:$0xf]
  %v351 = vld [vmem:[%s3 + $0x14] sm:$0xf]
  %v352 = vld [vmem:[%s3 + $0x18] sm:$0xf]
  %v353 = vld [vmem:[%s3 + $0x1c] sm:$0xf]
  %v354 = vld [vmem:[%s3 + $0x20] sm:$0xf]
  %v355 = vld [vmem:[%s3 + $0x24] sm:$0xf]
  %v356 = vld [vmem:[%s3 + $0x28] sm:$0xf]
  %v357 = vld [vmem:[%s3 + $0x2c] sm:$0xf]
  %v358 = vld [vmem:[%s3 + $0x30] sm:$0xf]
  %v359 = vld [vmem:[%s3 + $0x34] sm:$0xf]
  %v360 = vld [vmem:[%s3 + $0x38] sm:$0xf]
  %v361 = vld [vmem:[%s3 + $0x3c] sm:$0xf]
  %v362 = vld [vmem:[%s4] sm:$0x1]
  %v364 = vlaneseq
  %v365 = vshrl.u32 %v364, 7
  %v366 = vsub.s32 0, %v365
  %v367 = vrot.slane %v362, %v366
  %v385 = vunpack.c.l.b16 %v346
  %v386 = vunpack.c.l.b16 %v347
  %v387 = vunpack.c.l.b16 %v348
  %v388 = vunpack.c.l.b16 %v349
  %v389 = vunpack.c.l.b16 %v350
  %v390 = vunpack.c.l.b16 %v351
  %v391 = vunpack.c.l.b16 %v352
  %v392 = vunpack.c.l.b16 %v353
  %v393 = vunpack.c.l.b16 %v354
  %v394 = vunpack.c.l.b16 %v355
  %v395 = vunpack.c.l.b16 %v356
  %v396 = vunpack.c.l.b16 %v357
  %v397 = vunpack.c.l.b16 %v358
  %v398 = vunpack.c.l.b16 %v359
  %v399 = vunpack.c.l.b16 %v360
  %v400 = vunpack.c.l.b16 %v361
  %v401 = vpack.c.b16 %v386, %v385
  %v402 = vpack.c.b16 %v388, %v387
  %v403 = vpack.c.b16 %v390, %v389
  %v404 = vpack.c.b16 %v392, %v391
  %v405 = vpack.c.b16 %v394, %v393
  %v406 = vpack.c.b16 %v396, %v395
  %v407 = vpack.c.b16 %v398, %v397
  %v408 = vpack.c.b16 %v400, %v399
  %417 = vmatprep.subr.bf16.mxu0 0
  %418 = vmatpush1.bf16.msra.mxu0 %v401
  %419 = vmatprep.subr.bf16.mxu0 0
  %420 = vmatpush1.bf16.msra.mxu0 %v402
  %421 = vmatprep.subr.bf16.mxu0 0
  %422 = vmatpush1.bf16.msra.mxu0 %v403
  %423 = vmatprep.subr.bf16.mxu0 0
  %424 = vmatpush1.bf16.msra.mxu0 %v404
  %425 = vmatprep.subr.bf16.mxu0 0
  %426 = vmatpush1.bf16.msra.mxu0 %v405
  %427 = vmatprep.subr.bf16.mxu0 0
  %428 = vmatpush1.bf16.msra.mxu0 %v406
  %429 = vmatprep.subr.bf16.mxu0 0
  %430 = vmatpush1.bf16.msra.mxu0 %v407
  %431 = vmatprep.subr.bf16.mxu0 0
  %432 = vmatpush1.bf16.msra.mxu0 %v408
  %433 = vmatprep.subr.bf16.mxu0 0
  %434 = vmatpush1.bf16.msra.mxu0 0
  %435 = vmatprep.subr.bf16.mxu0 0
  %436 = vmatpush1.bf16.msra.mxu0 0
  %437 = vmatprep.subr.bf16.mxu0 0
  %438 = vmatpush1.bf16.msra.mxu0 0
  %439 = vmatprep.subr.bf16.mxu0 0
  %440 = vmatpush1.bf16.msra.mxu0 0
  %441 = vmatprep.subr.bf16.mxu0 0
  %442 = vmatpush1.bf16.msra.mxu0 0
  %443 = vmatprep.subr.bf16.mxu0 0
  %444 = vmatpush1.bf16.msra.mxu0 0
  %445 = vmatprep.subr.bf16.mxu0 0
  %446 = vmatpush1.bf16.msra.mxu0 0
  %447 = vmatprep.subr.bf16.mxu0 0
  %448 = vmatpush1.bf16.msra.mxu0 0
  %449 = vmatprep.mubr.bf16.mxu0 0
  %450 = vmatmul.mubr.bf16.gmra.mrb[0].mxu0 %v345
  %v451 = vpop.f32.mrb[0].mxu0
  %v452 = vadd.f32 %v367, %v451
  %v453 = vpop.f32.mrb[0].mxu0
  %v454 = vpop.f32.mrb[0].mxu0
  %v455 = vadd.f32 %v367, %v454
  %v456 = vpop.f32.mrb[0].mxu0
  %457 = vdwg.mxu0
  %v458 = vmax.f32 %v452, 0.0
  %v459 = vmax.f32 %v455, 0.0
  %v460 = vpack.c.bf16 %v459, %v458
  %v461 = vld [vmem:[%s5] sm:$0xf]
  %v462 = vld [vmem:[%s5 + $0x4] sm:$0xf]
  %v463 = vld [vmem:[%s5 + $0x8] sm:$0xf]
  %v464 = vld [vmem:[%s5 + $0xc] sm:$0xf]
  %v465 = vld [vmem:[%s5 + $0x10] sm:$0xf]
  %v466 = vld [vmem:[%s5 + $0x14] sm:$0xf]
  %v467 = vld [vmem:[%s5 + $0x18] sm:$0xf]
  %v468 = vld [vmem:[%s5 + $0x1c] sm:$0xf]
  %v469 = vld [vmem:[%s5 + $0x20] sm:$0xf]
  %v470 = vld [vmem:[%s5 + $0x24] sm:$0xf]
  %v471 = vld [vmem:[%s5 + $0x28] sm:$0xf]
  %v472 = vld [vmem:[%s5 + $0x2c] sm:$0xf]
  %v473 = vld [vmem:[%s5 + $0x30] sm:$0xf]
  %v474 = vld [vmem:[%s5 + $0x34] sm:$0xf]
  %v475 = vld [vmem:[%s5 + $0x38] sm:$0xf]
  %v476 = vld [vmem:[%s5 + $0x3c] sm:$0xf]
  %v477 = vld [vmem:[%s6] sm:$0x1]
  %v479 = vlaneseq
  %v480 = vshrl.u32 %v479, 7
  %v481 = vsub.s32 0, %v480
  %v482 = vrot.slane %v477, %v481
  %v500 = vunpack.c.l.b16 %v461
  %v501 = vunpack.c.l.b16 %v462
  %v502 = vunpack.c.l.b16 %v463
  %v503 = vunpack.c.l.b16 %v464
  %v504 = vunpack.c.l.b16 %v465
  %v505 = vunpack.c.l.b16 %v466
  %v506 = vunpack.c.l.b16 %v467
  %v507 = vunpack.c.l.b16 %v468
  %v508 = vunpack.c.l.b16 %v469
  %v509 = vunpack.c.l.b16 %v470
  %v510 = vunpack.c.l.b16 %v471
  %v511 = vunpack.c.l.b16 %v472
  %v512 = vunpack.c.l.b16 %v473
  %v513 = vunpack.c.l.b16 %v474
  %v514 = vunpack.c.l.b16 %v475
  %v515 = vunpack.c.l.b16 %v476
  %v516 = vpack.c.b16 %v501, %v500
  %v517 = vpack.c.b16 %v503, %v502
  %v518 = vpack.c.b16 %v505, %v504
  %v519 = vpack.c.b16 %v507, %v506
  %v520 = vpack.c.b16 %v509, %v508
  %v521 = vpack.c.b16 %v511, %v510
  %v522 = vpack.c.b16 %v513, %v512
  %v523 = vpack.c.b16 %v515, %v514
  %532 = vmatprep.subr.bf16.mxu0 0
  %533 = vmatpush1.bf16.msra.mxu0 %v516
  %534 = vmatprep.subr.bf16.mxu0 0
  %535 = vmatpush1.bf16.msra.mxu0 %v517
  %536 = vmatprep.subr.bf16.mxu0 0
  %537 = vmatpush1.bf16.msra.mxu0 %v518
  %538 = vmatprep.subr.bf16.mxu0 0
  %539 = vmatpush1.bf16.msra.mxu0 %v519
  %540 = vmatprep.subr.bf16.mxu0 0
  %541 = vmatpush1.bf16.msra.mxu0 %v520
  %542 = vmatprep.subr.bf16.mxu0 0
  %543 = vmatpush1.bf16.msra.mxu0 %v521
  %544 = vmatprep.subr.bf16.mxu0 0
  %545 = vmatpush1.bf16.msra.mxu0 %v522
  %546 = vmatprep.subr.bf16.mxu0 0
  %547 = vmatpush1.bf16.msra.mxu0 %v523
  %548 = vmatprep.subr.bf16.mxu0 0
  %549 = vmatpush1.bf16.msra.mxu0 0
  %550 = vmatprep.subr.bf16.mxu0 0
  %551 = vmatpush1.bf16.msra.mxu0 0
  %552 = vmatprep.subr.bf16.mxu0 0
  %553 = vmatpush1.bf16.msra.mxu0 0
  %554 = vmatprep.subr.bf16.mxu0 0
  %555 = vmatpush1.bf16.msra.mxu0 0
  %556 = vmatprep.subr.bf16.mxu0 0
  %557 = vmatpush1.bf16.msra.mxu0 0
  %558 = vmatprep.subr.bf16.mxu0 0
  %559 = vmatpush1.bf16.msra.mxu0 0
  %560 = vmatprep.subr.bf16.mxu0 0
  %561 = vmatpush1.bf16.msra.mxu0 0
  %562 = vmatprep.subr.bf16.mxu0 0
  %563 = vmatpush1.bf16.msra.mxu0 0
  %564 = vmatprep.mubr.bf16.mxu0 0
  %565 = vmatmul.mubr.bf16.gmra.mrb[0].mxu0 %v460
  %v566 = vpop.f32.mrb[0].mxu0
  %v567 = vadd.f32 %v482, %v566
  %v568 = vpop.f32.mrb[0].mxu0
  %v569 = vpop.f32.mrb[0].mxu0
  %v570 = vadd.f32 %v482, %v569
  %v571 = vpop.f32.mrb[0].mxu0
  %572 = vdwg.mxu0
  %573 = vst [vmem:[%s7] sm:$0xff] %v567
  %574 = vst [vmem:[%s7 + $0x8] sm:$0xff] %v570
  // Predicated region
  $region30: #{lenet5_forward.5} parent=0 // pred_check
    _
  $region31: #{lenet5_forward.5} parent=0 // pred_check_branch
    %576 = sbr.rel (0) target = $region33
  $region32: #{lenet5_forward.5} parent=0 // pred_region
    _
  $region33: #{lenet5_forward.5} parent=0 // pred_fallthru
    _
  // Predicated region
  $region34: #{lenet5_forward.5} parent=0 // pred_check
    _
  $region35: #{lenet5_forward.5} parent=0 // pred_check_branch
    %578 = sbr.rel (0) target = $region37
  $region36: #{lenet5_forward.5} parent=0 // pred_region
    _
  $region37: #{lenet5_forward.5} parent=0 // pred_fallthru
    _

</llo_original>
